<compile_context>
chip_gen: v7x
topology: tpu7x:2x2x1
jax: 0.10.0
libtpu: 0.0.40
codegen_flags: <defaults>
</compile_context>

<pallas_src>
import jax
import jax.numpy as jnp
from jax.experimental import pallas as pl
from jax.experimental.pallas import tpu as pltpu

N = 2                          # batch
C_IN, H, W = 3, 8, 8           # spatial must be 8 so fc1 sees 16*8*8
C_OUT = 16
KH = KW = 3
K_RAW = KH * KW * C_IN         # 27
K_PAD = 32                     # im2col contraction dim padded for clean vregs
HW = H * W                     # 64
HID = 128
N_CLASSES = 10
BN_EPS = 1e-5


# ----------------------------------------------------------------------------
# Single fused kernel: conv (im2col matmul, transposed layout) + BatchNorm
# (batch stats) + ReLU + folded fc1@fc2.
# ----------------------------------------------------------------------------
def fused_kernel(patches_t_ref, wmat_t_ref, gamma_ref, beta_ref,
                 w3_ref, b_ref, out_ref):
    # Conv: (C_OUT, K_PAD) @ (K_PAD, N*H*W) -> (16, 128); channels on sublanes,
    # the 128 (n, h, w) positions lane-dense.
    conv_t = jnp.dot(wmat_t_ref[...], patches_t_ref[...],
                     preferred_element_type=jnp.float32)

    # BatchNorm2d, training mode: per-channel stats over all (n, h, w)
    # positions (the lane axis).  Centered two-pass variance, biased (PyTorch).
    inv_r = 1.0 / conv_t.shape[1]
    mean = jnp.sum(conv_t, axis=1, keepdims=True) * inv_r            # (16, 1)
    centered = conv_t - mean
    var = jnp.sum(centered * centered, axis=1, keepdims=True) * inv_r
    scale = gamma_ref[...] * jax.lax.rsqrt(var + BN_EPS)             # (16, 1)
    act_t = jnp.maximum(centered * scale + beta_ref[...], 0.0)       # (16, 128)

    # NCHW flatten + folded fc1@fc2, with no in-kernel reshape:
    #   out[n, o] = sum_c sum_hw act_t[c, n*HW + hw] * w3[c, hw, o] + b[o]
    # Unrolled over the 16 channels as (1, 64) @ (64, 10) dots per batch row.
    acc = [b_ref[...] for _ in range(N)]                             # N x (1, 10)
    for c in range(C_OUT):
        w_c = w3_ref[c]                                              # (64, 10)
        row_c = act_t[c:c + 1, :]                                    # (1, 128)
        for n in range(N):
            acc[n] = acc[n] + jnp.dot(row_c[:, n * HW:(n + 1) * HW], w_c,
                                      preferred_element_type=jnp.float32)
    out_ref[...] = jnp.concatenate(acc, axis=0)                      # (N, 10)


def fused_forward(patches_t, wmat_t, gamma, beta, w3, bcomb):
    vmem = pl.BlockSpec(memory_space=pltpu.MemorySpace.VMEM)
    return pl.pallas_call(
        fused_kernel,
        out_shape=jax.ShapeDtypeStruct((N, N_CLASSES), jnp.float32),
        in_specs=[vmem] * 6,
        out_specs=vmem,
    )(patches_t, wmat_t, gamma, beta, w3, bcomb)


# ----------------------------------------------------------------------------
# Parameter initialization (mirrors _initialize_weights)
# ----------------------------------------------------------------------------
def init_params(key):
    k_conv, k_fc1, k_fc2 = jax.random.split(key, 3)
    # Conv2d: kaiming_normal_(mode='fan_out', relu) -> std = sqrt(2/(Cout*KH*KW))
    conv_std = (2.0 / (C_OUT * KH * KW)) ** 0.5
    conv_w = conv_std * jax.random.normal(k_conv, (C_OUT, C_IN, KH, KW),
                                          jnp.float32)               # OIHW
    conv_b = jnp.zeros((C_OUT,), jnp.float32)
    # BatchNorm2d: weight=1, bias=0
    gamma = jnp.ones((C_OUT,), jnp.float32)
    beta = jnp.zeros((C_OUT,), jnp.float32)
    # Linear: xavier_normal_ -> std = sqrt(2/(fan_in+fan_out)), bias = 0
    fc1_in = C_OUT * H * W
    fc1_std = (2.0 / (fc1_in + HID)) ** 0.5
    fc1_w = fc1_std * jax.random.normal(k_fc1, (HID, fc1_in), jnp.float32)
    fc1_b = jnp.zeros((HID,), jnp.float32)
    fc2_std = (2.0 / (HID + N_CLASSES)) ** 0.5
    fc2_w = fc2_std * jax.random.normal(k_fc2, (N_CLASSES, HID), jnp.float32)
    fc2_b = jnp.zeros((N_CLASSES,), jnp.float32)
    return dict(conv_w=conv_w, conv_b=conv_b, gamma=gamma, beta=beta,
                fc1_w=fc1_w, fc1_b=fc1_b, fc2_w=fc2_w, fc2_b=fc2_b)


# ----------------------------------------------------------------------------
# One-time layout/algebra preparation (hoisted off the inference path)
# ----------------------------------------------------------------------------
def prepare_params(p):
    # conv OIHW -> (ky, kx, ci, co) -> (27, 16) -> transposed (16, 27),
    # columns zero-padded to 32 to match the padded im2col contraction dim.
    wmat = jnp.transpose(p['conv_w'], (2, 3, 1, 0)).reshape(K_RAW, C_OUT)
    wmat_t = jnp.pad(wmat.T, ((0, 0), (0, K_PAD - K_RAW)))           # (16, 32)
    # conv bias intentionally dropped: exact under training-mode BatchNorm.
    # Fold fc1 @ fc2 (no nonlinearity between): logits = flat @ Wcomb + bcomb
    w_comb = p['fc1_w'].T @ p['fc2_w'].T                             # (1024, 10)
    b_comb = p['fc1_b'] @ p['fc2_w'].T + p['fc2_b']                  # (10,)
    # NCHW-flatten index j = c*HW + hw  ->  (C_OUT, HW, 10) for the kernel.
    w3 = w_comb.reshape(C_OUT, HW, N_CLASSES)
    return dict(wmat_t=wmat_t,
                gamma=p['gamma'][:, None], beta=p['beta'][:, None],
                w3=w3, bcomb=b_comb[None, :])


# ----------------------------------------------------------------------------
# Forward pass: one tiny XLA im2col fusion + ONE fused Pallas kernel
# ----------------------------------------------------------------------------
@jax.jit
def forward(x_nchw, prep):
    n = x_nchw.shape[0]
    # NCHW -> NHWC, pad=1
    x_nhwc = jnp.transpose(x_nchw, (0, 2, 3, 1))
    xpad = jnp.pad(x_nhwc, ((0, 0), (1, 1), (1, 1), (0, 0)))
    # im2col: rows = n*HW + h*W + w, cols = (ky*KW + kx)*C_IN + ci
    cols = [xpad[:, ky:ky + H, kx:kx + W, :]
            for ky in range(KH) for kx in range(KW)]                 # 9 x (N,H,W,Cin)
    patches = jnp.stack(cols, axis=3).reshape(n * H * W, K_RAW)      # (128, 27)
    patches_t = jnp.pad(patches.T, ((0, K_PAD - K_RAW), (0, 0)))     # (32, 128)
    return fused_forward(patches_t, prep['wmat_t'], prep['gamma'],
                         prep['beta'], prep['w3'], prep['bcomb'])    # (N, 10)


# ----------------------------------------------------------------------------
# Pure-JAX reference (uses the original PyTorch layout / unfused layers)
# ----------------------------------------------------------------------------
def reference(x_nchw, params):
    conv = jax.lax.conv_general_dilated(
        x_nchw, params['conv_w'], window_strides=(1, 1), padding='SAME',
        dimension_numbers=('NCHW', 'OIHW', 'NCHW'))
    conv = conv + params['conv_b'][None, :, None, None]
    mean = conv.mean(axis=(0, 2, 3), keepdims=True)
    var = ((conv - mean) ** 2).mean(axis=(0, 2, 3), keepdims=True)
    bn = (conv - mean) / jnp.sqrt(var + BN_EPS)
    bn = bn * params['gamma'][None, :, None, None] \
         + params['beta'][None, :, None, None]
    act = jnp.maximum(bn, 0.0)
    flat = act.reshape(x_nchw.shape[0], -1)                          # NCHW flatten
    h1 = flat @ params['fc1_w'].T + params['fc1_b']
    return h1 @ params['fc2_w'].T + params['fc2_b']


if __name__ == "__main__":
    key = jax.random.PRNGKey(0)
    k_param, k_x = jax.random.split(key)
    params = init_params(k_param)
    prep = prepare_params(params)                                    # one-time prep
    x = jax.random.normal(k_x, (N, C_IN, H, W), jnp.float32)         # NCHW input

    out = forward(x, prep)
    out = jax.block_until_ready(out)

    ref = reference(x, params)
    assert out.shape == (N, N_CLASSES)
    # Tolerance covers TPU default matmul precision (bf16 passes) differing
    # between the folded single-dot kernel path and the sequential reference.
    assert jnp.allclose(out, ref, atol=2e-2, rtol=2e-2), \
        f"mismatch: max abs err {jnp.max(jnp.abs(out - ref))}"

    print("KERNEL_OK")
</pallas_src>

<mosaic_0001>
module attributes {stable_mosaic.version = 11 : i64} {
  func.func @fused_kernel(%arg0: memref<32x128xf32, #tpu.memory_space<vmem>>, %arg1: memref<16x32xf32, #tpu.memory_space<vmem>>, %arg2: memref<16x1xf32, #tpu.memory_space<vmem>>, %arg3: memref<16x1xf32, #tpu.memory_space<vmem>>, %arg4: memref<16x64x10xf32, #tpu.memory_space<vmem>>, %arg5: memref<1x10xf32, #tpu.memory_space<vmem>>, %arg6: memref<2x10xf32, #tpu.memory_space<vmem>>) attributes {dimension_semantics = [], scalar_prefetch = 0 : i64, scratch_operands = 0 : i64, tpu.core_type = #tpu.core_type<tc>} {
    %c0 = arith.constant 0 : index
    %c0_0 = arith.constant 0 : index
    %0 = vector.load %arg1[%c0, %c0_0] : memref<16x32xf32, #tpu.memory_space<vmem>>, vector<16x32xf32>
    %c0_1 = arith.constant 0 : index
    %c0_2 = arith.constant 0 : index
    %1 = vector.load %arg0[%c0_1, %c0_2] : memref<32x128xf32, #tpu.memory_space<vmem>>, vector<32x128xf32>
    %cst = arith.constant dense<0.000000e+00> : vector<16x128xf32>
    %2 = tpu.matmul %0, %1, %cst {dimension_numbers = #tpu.dot_dimension_numbers<[1], [0], [0], [1], [0, 0, 1, 1], [], []>} : vector<16x32xf32>, vector<32x128xf32>, vector<16x128xf32> -> vector<16x128xf32>
    %cst_3 = arith.constant dense<0.000000e+00> : vector<16xf32>
    %3 = vector.multi_reduction <add>, %2, %cst_3 [1] : vector<16x128xf32> to vector<16xf32>
    %4 = vector.shape_cast %3 : vector<16xf32> to vector<16x1xf32>
    %cst_4 = arith.constant 7.812500e-03 : f32
    %5 = vector.broadcast %cst_4 : f32 to vector<16x1xf32>
    %6 = arith.mulf %4, %5 : vector<16x1xf32>
    %7 = vector.broadcast %6 : vector<16x1xf32> to vector<16x128xf32>
    %8 = arith.subf %2, %7 : vector<16x128xf32>
    %9 = arith.mulf %8, %8 : vector<16x128xf32>
    %cst_5 = arith.constant dense<0.000000e+00> : vector<16xf32>
    %10 = vector.multi_reduction <add>, %9, %cst_5 [1] : vector<16x128xf32> to vector<16xf32>
    %11 = vector.shape_cast %10 : vector<16xf32> to vector<16x1xf32>
    %cst_6 = arith.constant 7.812500e-03 : f32
    %12 = vector.broadcast %cst_6 : f32 to vector<16x1xf32>
    %13 = arith.mulf %11, %12 : vector<16x1xf32>
    %c0_7 = arith.constant 0 : index
    %c0_8 = arith.constant 0 : index
    %14 = vector.load %arg2[%c0_7, %c0_8] : memref<16x1xf32, #tpu.memory_space<vmem>>, vector<16x1xf32>
    %cst_9 = arith.constant 9.99999974E-6 : f32
    %15 = vector.broadcast %cst_9 : f32 to vector<16x1xf32>
    %16 = arith.addf %13, %15 : vector<16x1xf32>
    %17 = math.rsqrt %16 : vector<16x1xf32>
    %18 = arith.mulf %14, %17 : vector<16x1xf32>
    %19 = vector.broadcast %18 : vector<16x1xf32> to vector<16x128xf32>
    %20 = arith.mulf %8, %19 : vector<16x128xf32>
    %c0_10 = arith.constant 0 : index
    %c0_11 = arith.constant 0 : index
    %21 = vector.load %arg3[%c0_10, %c0_11] : memref<16x1xf32, #tpu.memory_space<vmem>>, vector<16x1xf32>
    %22 = vector.broadcast %21 : vector<16x1xf32> to vector<16x128xf32>
    %23 = arith.addf %20, %22 : vector<16x128xf32>
    %cst_12 = arith.constant 0.000000e+00 : f32
    %24 = vector.broadcast %cst_12 : f32 to vector<16x128xf32>
    %25 = arith.maximumf %23, %24 : vector<16x128xf32>
    %c0_13 = arith.constant 0 : index
    %c0_14 = arith.constant 0 : index
    %26 = vector.load %arg5[%c0_13, %c0_14] : memref<1x10xf32, #tpu.memory_space<vmem>>, vector<1x10xf32>
    %c0_15 = arith.constant 0 : index
    %c0_16 = arith.constant 0 : index
    %27 = vector.load %arg5[%c0_15, %c0_16] : memref<1x10xf32, #tpu.memory_space<vmem>>, vector<1x10xf32>
    %c0_17 = arith.constant 0 : index
    %c0_18 = arith.constant 0 : index
    %c0_19 = arith.constant 0 : index
    %28 = vector.load %arg4[%c0_17, %c0_18, %c0_19] : memref<16x64x10xf32, #tpu.memory_space<vmem>>, vector<1x64x10xf32>
    %29 = vector.shape_cast %28 : vector<1x64x10xf32> to vector<64x10xf32>
    %30 = vector.extract_strided_slice %25 {offsets = [0, 0], sizes = [1, 128], strides = [1, 1]} : vector<16x128xf32> to vector<1x128xf32>
    %31 = vector.extract_strided_slice %30 {offsets = [0, 0], sizes = [1, 64], strides = [1, 1]} : vector<1x128xf32> to vector<1x64xf32>
    %cst_20 = arith.constant dense<0.000000e+00> : vector<1x10xf32>
    %32 = tpu.matmul %31, %29, %cst_20 {dimension_numbers = #tpu.dot_dimension_numbers<[1], [0], [0], [1], [0, 0, 1, 1], [], []>} : vector<1x64xf32>, vector<64x10xf32>, vector<1x10xf32> -> vector<1x10xf32>
    %33 = arith.addf %26, %32 : vector<1x10xf32>
    %34 = vector.extract_strided_slice %30 {offsets = [0, 64], sizes = [1, 64], strides = [1, 1]} : vector<1x128xf32> to vector<1x64xf32>
    %cst_21 = arith.constant dense<0.000000e+00> : vector<1x10xf32>
    %35 = tpu.matmul %34, %29, %cst_21 {dimension_numbers = #tpu.dot_dimension_numbers<[1], [0], [0], [1], [0, 0, 1, 1], [], []>} : vector<1x64xf32>, vector<64x10xf32>, vector<1x10xf32> -> vector<1x10xf32>
    %36 = arith.addf %27, %35 : vector<1x10xf32>
    %c1 = arith.constant 1 : index
    %c0_22 = arith.constant 0 : index
    %c0_23 = arith.constant 0 : index
    %37 = vector.load %arg4[%c1, %c0_22, %c0_23] : memref<16x64x10xf32, #tpu.memory_space<vmem>>, vector<1x64x10xf32>
    %38 = vector.shape_cast %37 : vector<1x64x10xf32> to vector<64x10xf32>
    %39 = vector.extract_strided_slice %25 {offsets = [1, 0], sizes = [1, 128], strides = [1, 1]} : vector<16x128xf32> to vector<1x128xf32>
    %40 = vector.extract_strided_slice %39 {offsets = [0, 0], sizes = [1, 64], strides = [1, 1]} : vector<1x128xf32> to vector<1x64xf32>
    %cst_24 = arith.constant dense<0.000000e+00> : vector<1x10xf32>
    %41 = tpu.matmul %40, %38, %cst_24 {dimension_numbers = #tpu.dot_dimension_numbers<[1], [0], [0], [1], [0, 0, 1, 1], [], []>} : vector<1x64xf32>, vector<64x10xf32>, vector<1x10xf32> -> vector<1x10xf32>
    %42 = arith.addf %33, %41 : vector<1x10xf32>
    %43 = vector.extract_strided_slice %39 {offsets = [0, 64], sizes = [1, 64], strides = [1, 1]} : vector<1x128xf32> to vector<1x64xf32>
    %cst_25 = arith.constant dense<0.000000e+00> : vector<1x10xf32>
    %44 = tpu.matmul %43, %38, %cst_25 {dimension_numbers = #tpu.dot_dimension_numbers<[1], [0], [0], [1], [0, 0, 1, 1], [], []>} : vector<1x64xf32>, vector<64x10xf32>, vector<1x10xf32> -> vector<1x10xf32>
    %45 = arith.addf %36, %44 : vector<1x10xf32>
    %c2 = arith.constant 2 : index
    %c0_26 = arith.constant 0 : index
    %c0_27 = arith.constant 0 : index
    %46 = vector.load %arg4[%c2, %c0_26, %c0_27] : memref<16x64x10xf32, #tpu.memory_space<vmem>>, vector<1x64x10xf32>
    %47 = vector.shape_cast %46 : vector<1x64x10xf32> to vector<64x10xf32>
    %48 = vector.extract_strided_slice %25 {offsets = [2, 0], sizes = [1, 128], strides = [1, 1]} : vector<16x128xf32> to vector<1x128xf32>
    %49 = vector.extract_strided_slice %48 {offsets = [0, 0], sizes = [1, 64], strides = [1, 1]} : vector<1x128xf32> to vector<1x64xf32>
    %cst_28 = arith.constant dense<0.000000e+00> : vector<1x10xf32>
    %50 = tpu.matmul %49, %47, %cst_28 {dimension_numbers = #tpu.dot_dimension_numbers<[1], [0], [0], [1], [0, 0, 1, 1], [], []>} : vector<1x64xf32>, vector<64x10xf32>, vector<1x10xf32> -> vector<1x10xf32>
    %51 = arith.addf %42, %50 : vector<1x10xf32>
    %52 = vector.extract_strided_slice %48 {offsets = [0, 64], sizes = [1, 64], strides = [1, 1]} : vector<1x128xf32> to vector<1x64xf32>
    %cst_29 = arith.constant dense<0.000000e+00> : vector<1x10xf32>
    %53 = tpu.matmul %52, %47, %cst_29 {dimension_numbers = #tpu.dot_dimension_numbers<[1], [0], [0], [1], [0, 0, 1, 1], [], []>} : vector<1x64xf32>, vector<64x10xf32>, vector<1x10xf32> -> vector<1x10xf32>
    %54 = arith.addf %45, %53 : vector<1x10xf32>
    %c3 = arith.constant 3 : index
    %c0_30 = arith.constant 0 : index
    %c0_31 = arith.constant 0 : index
    %55 = vector.load %arg4[%c3, %c0_30, %c0_31] : memref<16x64x10xf32, #tpu.memory_space<vmem>>, vector<1x64x10xf32>
    %56 = vector.shape_cast %55 : vector<1x64x10xf32> to vector<64x10xf32>
    %57 = vector.extract_strided_slice %25 {offsets = [3, 0], sizes = [1, 128], strides = [1, 1]} : vector<16x128xf32> to vector<1x128xf32>
    %58 = vector.extract_strided_slice %57 {offsets = [0, 0], sizes = [1, 64], strides = [1, 1]} : vector<1x128xf32> to vector<1x64xf32>
    %cst_32 = arith.constant dense<0.000000e+00> : vector<1x10xf32>
    %59 = tpu.matmul %58, %56, %cst_32 {dimension_numbers = #tpu.dot_dimension_numbers<[1], [0], [0], [1], [0, 0, 1, 1], [], []>} : vector<1x64xf32>, vector<64x10xf32>, vector<1x10xf32> -> vector<1x10xf32>
    %60 = arith.addf %51, %59 : vector<1x10xf32>
    %61 = vector.extract_strided_slice %57 {offsets = [0, 64], sizes = [1, 64], strides = [1, 1]} : vector<1x128xf32> to vector<1x64xf32>
    %cst_33 = arith.constant dense<0.000000e+00> : vector<1x10xf32>
    %62 = tpu.matmul %61, %56, %cst_33 {dimension_numbers = #tpu.dot_dimension_numbers<[1], [0], [0], [1], [0, 0, 1, 1], [], []>} : vector<1x64xf32>, vector<64x10xf32>, vector<1x10xf32> -> vector<1x10xf32>
    %63 = arith.addf %54, %62 : vector<1x10xf32>
    %c4 = arith.constant 4 : index
    %c0_34 = arith.constant 0 : index
    %c0_35 = arith.constant 0 : index
    %64 = vector.load %arg4[%c4, %c0_34, %c0_35] : memref<16x64x10xf32, #tpu.memory_space<vmem>>, vector<1x64x10xf32>
    %65 = vector.shape_cast %64 : vector<1x64x10xf32> to vector<64x10xf32>
    %66 = vector.extract_strided_slice %25 {offsets = [4, 0], sizes = [1, 128], strides = [1, 1]} : vector<16x128xf32> to vector<1x128xf32>
    %67 = vector.extract_strided_slice %66 {offsets = [0, 0], sizes = [1, 64], strides = [1, 1]} : vector<1x128xf32> to vector<1x64xf32>
    %cst_36 = arith.constant dense<0.000000e+00> : vector<1x10xf32>
    %68 = tpu.matmul %67, %65, %cst_36 {dimension_numbers = #tpu.dot_dimension_numbers<[1], [0], [0], [1], [0, 0, 1, 1], [], []>} : vector<1x64xf32>, vector<64x10xf32>, vector<1x10xf32> -> vector<1x10xf32>
    %69 = arith.addf %60, %68 : vector<1x10xf32>
    %70 = vector.extract_strided_slice %66 {offsets = [0, 64], sizes = [1, 64], strides = [1, 1]} : vector<1x128xf32> to vector<1x64xf32>
    %cst_37 = arith.constant dense<0.000000e+00> : vector<1x10xf32>
    %71 = tpu.matmul %70, %65, %cst_37 {dimension_numbers = #tpu.dot_dimension_numbers<[1], [0], [0], [1], [0, 0, 1, 1], [], []>} : vector<1x64xf32>, vector<64x10xf32>, vector<1x10xf32> -> vector<1x10xf32>
    %72 = arith.addf %63, %71 : vector<1x10xf32>
    %c5 = arith.constant 5 : index
    %c0_38 = arith.constant 0 : index
    %c0_39 = arith.constant 0 : index
    %73 = vector.load %arg4[%c5, %c0_38, %c0_39] : memref<16x64x10xf32, #tpu.memory_space<vmem>>, vector<1x64x10xf32>
    %74 = vector.shape_cast %73 : vector<1x64x10xf32> to vector<64x10xf32>
    %75 = vector.extract_strided_slice %25 {offsets = [5, 0], sizes = [1, 128], strides = [1, 1]} : vector<16x128xf32> to vector<1x128xf32>
    %76 = vector.extract_strided_slice %75 {offsets = [0, 0], sizes = [1, 64], strides = [1, 1]} : vector<1x128xf32> to vector<1x64xf32>
    %cst_40 = arith.constant dense<0.000000e+00> : vector<1x10xf32>
    %77 = tpu.matmul %76, %74, %cst_40 {dimension_numbers = #tpu.dot_dimension_numbers<[1], [0], [0], [1], [0, 0, 1, 1], [], []>} : vector<1x64xf32>, vector<64x10xf32>, vector<1x10xf32> -> vector<1x10xf32>
    %78 = arith.addf %69, %77 : vector<1x10xf32>
    %79 = vector.extract_strided_slice %75 {offsets = [0, 64], sizes = [1, 64], strides = [1, 1]} : vector<1x128xf32> to vector<1x64xf32>
    %cst_41 = arith.constant dense<0.000000e+00> : vector<1x10xf32>
    %80 = tpu.matmul %79, %74, %cst_41 {dimension_numbers = #tpu.dot_dimension_numbers<[1], [0], [0], [1], [0, 0, 1, 1], [], []>} : vector<1x64xf32>, vector<64x10xf32>, vector<1x10xf32> -> vector<1x10xf32>
    %81 = arith.addf %72, %80 : vector<1x10xf32>
    %c6 = arith.constant 6 : index
    %c0_42 = arith.constant 0 : index
    %c0_43 = arith.constant 0 : index
    %82 = vector.load %arg4[%c6, %c0_42, %c0_43] : memref<16x64x10xf32, #tpu.memory_space<vmem>>, vector<1x64x10xf32>
    %83 = vector.shape_cast %82 : vector<1x64x10xf32> to vector<64x10xf32>
    %84 = vector.extract_strided_slice %25 {offsets = [6, 0], sizes = [1, 128], strides = [1, 1]} : vector<16x128xf32> to vector<1x128xf32>
    %85 = vector.extract_strided_slice %84 {offsets = [0, 0], sizes = [1, 64], strides = [1, 1]} : vector<1x128xf32> to vector<1x64xf32>
    %cst_44 = arith.constant dense<0.000000e+00> : vector<1x10xf32>
    %86 = tpu.matmul %85, %83, %cst_44 {dimension_numbers = #tpu.dot_dimension_numbers<[1], [0], [0], [1], [0, 0, 1, 1], [], []>} : vector<1x64xf32>, vector<64x10xf32>, vector<1x10xf32> -> vector<1x10xf32>
    %87 = arith.addf %78, %86 : vector<1x10xf32>
    %88 = vector.extract_strided_slice %84 {offsets = [0, 64], sizes = [1, 64], strides = [1, 1]} : vector<1x128xf32> to vector<1x64xf32>
    %cst_45 = arith.constant dense<0.000000e+00> : vector<1x10xf32>
    %89 = tpu.matmul %88, %83, %cst_45 {dimension_numbers = #tpu.dot_dimension_numbers<[1], [0], [0], [1], [0, 0, 1, 1], [], []>} : vector<1x64xf32>, vector<64x10xf32>, vector<1x10xf32> -> vector<1x10xf32>
    %90 = arith.addf %81, %89 : vector<1x10xf32>
    %c7 = arith.constant 7 : index
    %c0_46 = arith.constant 0 : index
    %c0_47 = arith.constant 0 : index
    %91 = vector.load %arg4[%c7, %c0_46, %c0_47] : memref<16x64x10xf32, #tpu.memory_space<vmem>>, vector<1x64x10xf32>
    %92 = vector.shape_cast %91 : vector<1x64x10xf32> to vector<64x10xf32>
    %93 = vector.extract_strided_slice %25 {offsets = [7, 0], sizes = [1, 128], strides = [1, 1]} : vector<16x128xf32> to vector<1x128xf32>
    %94 = vector.extract_strided_slice %93 {offsets = [0, 0], sizes = [1, 64], strides = [1, 1]} : vector<1x128xf32> to vector<1x64xf32>
    %cst_48 = arith.constant dense<0.000000e+00> : vector<1x10xf32>
    %95 = tpu.matmul %94, %92, %cst_48 {dimension_numbers = #tpu.dot_dimension_numbers<[1], [0], [0], [1], [0, 0, 1, 1], [], []>} : vector<1x64xf32>, vector<64x10xf32>, vector<1x10xf32> -> vector<1x10xf32>
    %96 = arith.addf %87, %95 : vector<1x10xf32>
    %97 = vector.extract_strided_slice %93 {offsets = [0, 64], sizes = [1, 64], strides = [1, 1]} : vector<1x128xf32> to vector<1x64xf32>
    %cst_49 = arith.constant dense<0.000000e+00> : vector<1x10xf32>
    %98 = tpu.matmul %97, %92, %cst_49 {dimension_numbers = #tpu.dot_dimension_numbers<[1], [0], [0], [1], [0, 0, 1, 1], [], []>} : vector<1x64xf32>, vector<64x10xf32>, vector<1x10xf32> -> vector<1x10xf32>
    %99 = arith.addf %90, %98 : vector<1x10xf32>
    %c8 = arith.constant 8 : index
    %c0_50 = arith.constant 0 : index
    %c0_51 = arith.constant 0 : index
    %100 = vector.load %arg4[%c8, %c0_50, %c0_51] : memref<16x64x10xf32, #tpu.memory_space<vmem>>, vector<1x64x10xf32>
    %101 = vector.shape_cast %100 : vector<1x64x10xf32> to vector<64x10xf32>
    %102 = vector.extract_strided_slice %25 {offsets = [8, 0], sizes = [1, 128], strides = [1, 1]} : vector<16x128xf32> to vector<1x128xf32>
    %103 = vector.extract_strided_slice %102 {offsets = [0, 0], sizes = [1, 64], strides = [1, 1]} : vector<1x128xf32> to vector<1x64xf32>
    %cst_52 = arith.constant dense<0.000000e+00> : vector<1x10xf32>
    %104 = tpu.matmul %103, %101, %cst_52 {dimension_numbers = #tpu.dot_dimension_numbers<[1], [0], [0], [1], [0, 0, 1, 1], [], []>} : vector<1x64xf32>, vector<64x10xf32>, vector<1x10xf32> -> vector<1x10xf32>
    %105 = arith.addf %96, %104 : vector<1x10xf32>
    %106 = vector.extract_strided_slice %102 {offsets = [0, 64], sizes = [1, 64], strides = [1, 1]} : vector<1x128xf32> to vector<1x64xf32>
    %cst_53 = arith.constant dense<0.000000e+00> : vector<1x10xf32>
    %107 = tpu.matmul %106, %101, %cst_53 {dimension_numbers = #tpu.dot_dimension_numbers<[1], [0], [0], [1], [0, 0, 1, 1], [], []>} : vector<1x64xf32>, vector<64x10xf32>, vector<1x10xf32> -> vector<1x10xf32>
    %108 = arith.addf %99, %107 : vector<1x10xf32>
    %c9 = arith.constant 9 : index
    %c0_54 = arith.constant 0 : index
    %c0_55 = arith.constant 0 : index
    %109 = vector.load %arg4[%c9, %c0_54, %c0_55] : memref<16x64x10xf32, #tpu.memory_space<vmem>>, vector<1x64x10xf32>
    %110 = vector.shape_cast %109 : vector<1x64x10xf32> to vector<64x10xf32>
    %111 = vector.extract_strided_slice %25 {offsets = [9, 0], sizes = [1, 128], strides = [1, 1]} : vector<16x128xf32> to vector<1x128xf32>
    %112 = vector.extract_strided_slice %111 {offsets = [0, 0], sizes = [1, 64], strides = [1, 1]} : vector<1x128xf32> to vector<1x64xf32>
    %cst_56 = arith.constant dense<0.000000e+00> : vector<1x10xf32>
    %113 = tpu.matmul %112, %110, %cst_56 {dimension_numbers = #tpu.dot_dimension_numbers<[1], [0], [0], [1], [0, 0, 1, 1], [], []>} : vector<1x64xf32>, vector<64x10xf32>, vector<1x10xf32> -> vector<1x10xf32>
    %114 = arith.addf %105, %113 : vector<1x10xf32>
    %115 = vector.extract_strided_slice %111 {offsets = [0, 64], sizes = [1, 64], strides = [1, 1]} : vector<1x128xf32> to vector<1x64xf32>
    %cst_57 = arith.constant dense<0.000000e+00> : vector<1x10xf32>
    %116 = tpu.matmul %115, %110, %cst_57 {dimension_numbers = #tpu.dot_dimension_numbers<[1], [0], [0], [1], [0, 0, 1, 1], [], []>} : vector<1x64xf32>, vector<64x10xf32>, vector<1x10xf32> -> vector<1x10xf32>
    %117 = arith.addf %108, %116 : vector<1x10xf32>
    %c10 = arith.constant 10 : index
    %c0_58 = arith.constant 0 : index
    %c0_59 = arith.constant 0 : index
    %118 = vector.load %arg4[%c10, %c0_58, %c0_59] : memref<16x64x10xf32, #tpu.memory_space<vmem>>, vector<1x64x10xf32>
    %119 = vector.shape_cast %118 : vector<1x64x10xf32> to vector<64x10xf32>
    %120 = vector.extract_strided_slice %25 {offsets = [10, 0], sizes = [1, 128], strides = [1, 1]} : vector<16x128xf32> to vector<1x128xf32>
    %121 = vector.extract_strided_slice %120 {offsets = [0, 0], sizes = [1, 64], strides = [1, 1]} : vector<1x128xf32> to vector<1x64xf32>
    %cst_60 = arith.constant dense<0.000000e+00> : vector<1x10xf32>
    %122 = tpu.matmul %121, %119, %cst_60 {dimension_numbers = #tpu.dot_dimension_numbers<[1], [0], [0], [1], [0, 0, 1, 1], [], []>} : vector<1x64xf32>, vector<64x10xf32>, vector<1x10xf32> -> vector<1x10xf32>
    %123 = arith.addf %114, %122 : vector<1x10xf32>
    %124 = vector.extract_strided_slice %120 {offsets = [0, 64], sizes = [1, 64], strides = [1, 1]} : vector<1x128xf32> to vector<1x64xf32>
    %cst_61 = arith.constant dense<0.000000e+00> : vector<1x10xf32>
    %125 = tpu.matmul %124, %119, %cst_61 {dimension_numbers = #tpu.dot_dimension_numbers<[1], [0], [0], [1], [0, 0, 1, 1], [], []>} : vector<1x64xf32>, vector<64x10xf32>, vector<1x10xf32> -> vector<1x10xf32>
    %126 = arith.addf %117, %125 : vector<1x10xf32>
    %c11 = arith.constant 11 : index
    %c0_62 = arith.constant 0 : index
    %c0_63 = arith.constant 0 : index
    %127 = vector.load %arg4[%c11, %c0_62, %c0_63] : memref<16x64x10xf32, #tpu.memory_space<vmem>>, vector<1x64x10xf32>
    %128 = vector.shape_cast %127 : vector<1x64x10xf32> to vector<64x10xf32>
    %129 = vector.extract_strided_slice %25 {offsets = [11, 0], sizes = [1, 128], strides = [1, 1]} : vector<16x128xf32> to vector<1x128xf32>
    %130 = vector.extract_strided_slice %129 {offsets = [0, 0], sizes = [1, 64], strides = [1, 1]} : vector<1x128xf32> to vector<1x64xf32>
    %cst_64 = arith.constant dense<0.000000e+00> : vector<1x10xf32>
    %131 = tpu.matmul %130, %128, %cst_64 {dimension_numbers = #tpu.dot_dimension_numbers<[1], [0], [0], [1], [0, 0, 1, 1], [], []>} : vector<1x64xf32>, vector<64x10xf32>, vector<1x10xf32> -> vector<1x10xf32>
    %132 = arith.addf %123, %131 : vector<1x10xf32>
    %133 = vector.extract_strided_slice %129 {offsets = [0, 64], sizes = [1, 64], strides = [1, 1]} : vector<1x128xf32> to vector<1x64xf32>
    %cst_65 = arith.constant dense<0.000000e+00> : vector<1x10xf32>
    %134 = tpu.matmul %133, %128, %cst_65 {dimension_numbers = #tpu.dot_dimension_numbers<[1], [0], [0], [1], [0, 0, 1, 1], [], []>} : vector<1x64xf32>, vector<64x10xf32>, vector<1x10xf32> -> vector<1x10xf32>
    %135 = arith.addf %126, %134 : vector<1x10xf32>
    %c12 = arith.constant 12 : index
    %c0_66 = arith.constant 0 : index
    %c0_67 = arith.constant 0 : index
    %136 = vector.load %arg4[%c12, %c0_66, %c0_67] : memref<16x64x10xf32, #tpu.memory_space<vmem>>, vector<1x64x10xf32>
    %137 = vector.shape_cast %136 : vector<1x64x10xf32> to vector<64x10xf32>
    %138 = vector.extract_strided_slice %25 {offsets = [12, 0], sizes = [1, 128], strides = [1, 1]} : vector<16x128xf32> to vector<1x128xf32>
    %139 = vector.extract_strided_slice %138 {offsets = [0, 0], sizes = [1, 64], strides = [1, 1]} : vector<1x128xf32> to vector<1x64xf32>
    %cst_68 = arith.constant dense<0.000000e+00> : vector<1x10xf32>
    %140 = tpu.matmul %139, %137, %cst_68 {dimension_numbers = #tpu.dot_dimension_numbers<[1], [0], [0], [1], [0, 0, 1, 1], [], []>} : vector<1x64xf32>, vector<64x10xf32>, vector<1x10xf32> -> vector<1x10xf32>
    %141 = arith.addf %132, %140 : vector<1x10xf32>
    %142 = vector.extract_strided_slice %138 {offsets = [0, 64], sizes = [1, 64], strides = [1, 1]} : vector<1x128xf32> to vector<1x64xf32>
    %cst_69 = arith.constant dense<0.000000e+00> : vector<1x10xf32>
    %143 = tpu.matmul %142, %137, %cst_69 {dimension_numbers = #tpu.dot_dimension_numbers<[1], [0], [0], [1], [0, 0, 1, 1], [], []>} : vector<1x64xf32>, vector<64x10xf32>, vector<1x10xf32> -> vector<1x10xf32>
    %144 = arith.addf %135, %143 : vector<1x10xf32>
    %c13 = arith.constant 13 : index
    %c0_70 = arith.constant 0 : index
    %c0_71 = arith.constant 0 : index
    %145 = vector.load %arg4[%c13, %c0_70, %c0_71] : memref<16x64x10xf32, #tpu.memory_space<vmem>>, vector<1x64x10xf32>
    %146 = vector.shape_cast %145 : vector<1x64x10xf32> to vector<64x10xf32>
    %147 = vector.extract_strided_slice %25 {offsets = [13, 0], sizes = [1, 128], strides = [1, 1]} : vector<16x128xf32> to vector<1x128xf32>
    %148 = vector.extract_strided_slice %147 {offsets = [0, 0], sizes = [1, 64], strides = [1, 1]} : vector<1x128xf32> to vector<1x64xf32>
    %cst_72 = arith.constant dense<0.000000e+00> : vector<1x10xf32>
    %149 = tpu.matmul %148, %146, %cst_72 {dimension_numbers = #tpu.dot_dimension_numbers<[1], [0], [0], [1], [0, 0, 1, 1], [], []>} : vector<1x64xf32>, vector<64x10xf32>, vector<1x10xf32> -> vector<1x10xf32>
    %150 = arith.addf %141, %149 : vector<1x10xf32>
    %151 = vector.extract_strided_slice %147 {offsets = [0, 64], sizes = [1, 64], strides = [1, 1]} : vector<1x128xf32> to vector<1x64xf32>
    %cst_73 = arith.constant dense<0.000000e+00> : vector<1x10xf32>
    %152 = tpu.matmul %151, %146, %cst_73 {dimension_numbers = #tpu.dot_dimension_numbers<[1], [0], [0], [1], [0, 0, 1, 1], [], []>} : vector<1x64xf32>, vector<64x10xf32>, vector<1x10xf32> -> vector<1x10xf32>
    %153 = arith.addf %144, %152 : vector<1x10xf32>
    %c14 = arith.constant 14 : index
    %c0_74 = arith.constant 0 : index
    %c0_75 = arith.constant 0 : index
    %154 = vector.load %arg4[%c14, %c0_74, %c0_75] : memref<16x64x10xf32, #tpu.memory_space<vmem>>, vector<1x64x10xf32>
    %155 = vector.shape_cast %154 : vector<1x64x10xf32> to vector<64x10xf32>
    %156 = vector.extract_strided_slice %25 {offsets = [14, 0], sizes = [1, 128], strides = [1, 1]} : vector<16x128xf32> to vector<1x128xf32>
    %157 = vector.extract_strided_slice %156 {offsets = [0, 0], sizes = [1, 64], strides = [1, 1]} : vector<1x128xf32> to vector<1x64xf32>
    %cst_76 = arith.constant dense<0.000000e+00> : vector<1x10xf32>
    %158 = tpu.matmul %157, %155, %cst_76 {dimension_numbers = #tpu.dot_dimension_numbers<[1], [0], [0], [1], [0, 0, 1, 1], [], []>} : vector<1x64xf32>, vector<64x10xf32>, vector<1x10xf32> -> vector<1x10xf32>
    %159 = arith.addf %150, %158 : vector<1x10xf32>
    %160 = vector.extract_strided_slice %156 {offsets = [0, 64], sizes = [1, 64], strides = [1, 1]} : vector<1x128xf32> to vector<1x64xf32>
    %cst_77 = arith.constant dense<0.000000e+00> : vector<1x10xf32>
    %161 = tpu.matmul %160, %155, %cst_77 {dimension_numbers = #tpu.dot_dimension_numbers<[1], [0], [0], [1], [0, 0, 1, 1], [], []>} : vector<1x64xf32>, vector<64x10xf32>, vector<1x10xf32> -> vector<1x10xf32>
    %162 = arith.addf %153, %161 : vector<1x10xf32>
    %c15 = arith.constant 15 : index
    %c0_78 = arith.constant 0 : index
    %c0_79 = arith.constant 0 : index
    %163 = vector.load %arg4[%c15, %c0_78, %c0_79] : memref<16x64x10xf32, #tpu.memory_space<vmem>>, vector<1x64x10xf32>
    %164 = vector.shape_cast %163 : vector<1x64x10xf32> to vector<64x10xf32>
    %165 = vector.extract_strided_slice %25 {offsets = [15, 0], sizes = [1, 128], strides = [1, 1]} : vector<16x128xf32> to vector<1x128xf32>
    %166 = vector.extract_strided_slice %165 {offsets = [0, 0], sizes = [1, 64], strides = [1, 1]} : vector<1x128xf32> to vector<1x64xf32>
    %cst_80 = arith.constant dense<0.000000e+00> : vector<1x10xf32>
    %167 = tpu.matmul %166, %164, %cst_80 {dimension_numbers = #tpu.dot_dimension_numbers<[1], [0], [0], [1], [0, 0, 1, 1], [], []>} : vector<1x64xf32>, vector<64x10xf32>, vector<1x10xf32> -> vector<1x10xf32>
    %168 = arith.addf %159, %167 : vector<1x10xf32>
    %169 = vector.extract_strided_slice %165 {offsets = [0, 64], sizes = [1, 64], strides = [1, 1]} : vector<1x128xf32> to vector<1x64xf32>
    %cst_81 = arith.constant dense<0.000000e+00> : vector<1x10xf32>
    %170 = tpu.matmul %169, %164, %cst_81 {dimension_numbers = #tpu.dot_dimension_numbers<[1], [0], [0], [1], [0, 0, 1, 1], [], []>} : vector<1x64xf32>, vector<64x10xf32>, vector<1x10xf32> -> vector<1x10xf32>
    %171 = arith.addf %162, %170 : vector<1x10xf32>
    %172 = tpu.concatenate %168, %171 in 0 : vector<1x10xf32>, vector<1x10xf32> -> vector<2x10xf32>
    %c0_82 = arith.constant 0 : index
    %c0_83 = arith.constant 0 : index
    %173 = vector.load %arg6[%c0_82, %c0_83] : memref<2x10xf32, #tpu.memory_space<vmem>>, vector<2x10xf32>
    tpu.vector_store %arg6[%c0_82, %c0_83], %172 {strides = array<i32>} : memref<2x10xf32, #tpu.memory_space<vmem>>, vector<2x10xf32>,
    return
  }
}

</mosaic_0001>

<llo_original>
// kernel: forward.1
$region0: #{forward.1}
  #allocation0 [shape = 'u32[]', space=smem, size = 0x4, offset = 0x4, fixed_abs, tag = 'smem constant byte address 0x4 - core index']
  #allocation1 [shape = 'u32[144,128]{1,0:T(1,128)}', space=vmem, size = 0x12000, scoped, tag = 'internal scratch']
  %s0 = inlined_call_operand.vmem [shape: f32[32,128], index: 0, kind: input, shape index: {}]
  %s1 = inlined_call_operand.vmem [shape: f32[16,32], index: 1, kind: input, shape index: {}]
  %s2 = inlined_call_operand.vmem [shape: f32[16,1], index: 2, kind: input, shape index: {}]
  %s3 = inlined_call_operand.vmem [shape: f32[16,1], index: 3, kind: input, shape index: {}]
  %s4 = inlined_call_operand.vmem [shape: f32[16,64,10], index: 4, kind: input, shape index: {}]
  %s5 = inlined_call_operand.vmem [shape: f32[1,10], index: 5, kind: input, shape index: {}]
  %s6 = inlined_call_operand.hbm [shape: f32[2,10], index: 6, kind: output, shape index: {}]
  %s7 = sld [smem:[#allocation0]]
  $region34: #{forward.1} parent=0
    _
  %s9 = ssub.s32 1, %s7
  %s10 = scalar_select 0, %s9, %s7
  $region1: #{forward.1} parent=0
    #allocation2 [shape = 'u8[1024]{0}', space=vmem, size = 0x400, scoped, tag = 'output window, operand 0, single buffered']
    #allocation3 [shape = 's32[1]{0}', space=sflag, size = 0x4, scoped, tag = 'scoped memory for forward.1']
    %11 = vsyncpa [#allocation3], 0
    // Predicated region
    $region2: #{forward.1} parent=1 // pred_check
      _
    $region3: #{forward.1} parent=1 // pred_check_branch
      %13 = sbr.rel (0) target = $region5
    $region4: #{forward.1} parent=1 // pred_region
      _
    $region5: #{forward.1} parent=1 // pred_fallthru
      _
    // Predicated region
    $region6: #{forward.1} parent=1 // pred_check
      _
    $region7: #{forward.1} parent=1 // pred_check_branch
      %15 = sbr.rel (0) target = $region9
    $region8: #{forward.1} parent=1 // pred_region
      _
    $region9: #{forward.1} parent=1 // pred_fallthru
      _
    // Predicated region
    $region10: #{forward.1} parent=1 // pred_check
      _
    $region11: #{forward.1} parent=1 // pred_check_branch
      %17 = sbr.rel (0) target = $region13
    $region12: #{forward.1} parent=1 // pred_region
      _
    $region13: #{forward.1} parent=1 // pred_fallthru
      _
    // Predicated region
    $region14: #{forward.1} parent=1 // pred_check
      _
    $region15: #{forward.1} parent=1 // pred_check_branch
      %19 = sbr.rel (0) target = $region17
    $region16: #{forward.1} parent=1 // pred_region
      _
    $region17: #{forward.1} parent=1 // pred_fallthru
      _
    // Predicated region
    $region18: #{forward.1} parent=1 // pred_check
      _
    $region19: #{forward.1} parent=1 // pred_check_branch
      %21 = sbr.rel (0) target = $region21
    $region20: #{forward.1} parent=1 // pred_region
      _
    $region21: #{forward.1} parent=1 // pred_fallthru
      _
    // Predicated region
    $region22: #{forward.1} parent=1 // pred_check
      _
    $region23: #{forward.1} parent=1 // pred_check_branch
      %23 = sbr.rel (0) target = $region25
    $region24: #{forward.1} parent=1 // pred_region
      _
    $region25: #{forward.1} parent=1 // pred_fallthru
      _
    %v24 = vld [vmem:[%s1] sm:$0xff]
    %v25 = vld [vmem:[%s1 + $0x8] sm:$0xff]
    %v26 = vld [vmem:[%s0] sm:$0xff]
    %v27 = vld [vmem:[%s0 + $0x8] sm:$0xff]
    %v28 = vld [vmem:[%s0 + $0x10] sm:$0xff]
    %v29 = vld [vmem:[%s0 + $0x18] sm:$0xff]
    %vm30 = vcmask 261120
    %v32 = vsel %vm30, %v24, 0
    %v35 = vsel %vm30, %v25, 0
    %37 = vmatprep.subr.mxu0 0.0
    %38 = vmatpush1.msra.mxu0 %v26
    %39 = vmatprep.subr.mxu0 0.0
    %40 = vmatpush1.msra.mxu0 %v27
    %41 = vmatprep.subr.mxu0 0.0
    %42 = vmatpush1.msra.mxu0 %v28
    %43 = vmatprep.subr.mxu0 0.0
    %44 = vmatpush1.msra.mxu0 %v29
    %45 = vmatprep.subr.mxu0 0.0
    %46 = vmatpush1.msra.mxu0 0.0
    %47 = vmatprep.subr.mxu0 0.0
    %48 = vmatpush1.msra.mxu0 0.0
    %49 = vmatprep.subr.mxu0 0.0
    %50 = vmatpush1.msra.mxu0 0.0
    %51 = vmatprep.subr.mxu0 0.0
    %52 = vmatpush1.msra.mxu0 0.0
    %53 = vmatprep.subr.mxu0 0.0
    %54 = vmatpush1.msra.mxu0 0.0
    %55 = vmatprep.subr.mxu0 0.0
    %56 = vmatpush1.msra.mxu0 0.0
    %57 = vmatprep.subr.mxu0 0.0
    %58 = vmatpush1.msra.mxu0 0.0
    %59 = vmatprep.subr.mxu0 0.0
    %60 = vmatpush1.msra.mxu0 0.0
    %61 = vmatprep.subr.mxu0 0.0
    %62 = vmatpush1.msra.mxu0 0.0
    %63 = vmatprep.subr.mxu0 0.0
    %64 = vmatpush1.msra.mxu0 0.0
    %65 = vmatprep.subr.mxu0 0.0
    %66 = vmatpush1.msra.mxu0 0.0
    %67 = vmatprep.subr.mxu0 0.0
    %68 = vmatpush1.msra.mxu0 0.0
    %69 = vmatprep.subr.mxu0 0.0
    %70 = vmatpush1.msra.mxu0 0.0
    %71 = vmatprep.subr.mxu0 0.0
    %72 = vmatpush1.msra.mxu0 0.0
    %73 = vmatprep.subr.mxu0 0.0
    %74 = vmatpush1.msra.mxu0 0.0
    %75 = vmatprep.subr.mxu0 0.0
    %76 = vmatpush1.msra.mxu0 0.0
    %77 = vmatprep.subr.mxu0 0.0
    %78 = vmatpush1.msra.mxu0 0.0
    %79 = vmatprep.subr.mxu0 0.0
    %80 = vmatpush1.msra.mxu0 0.0
    %81 = vmatprep.subr.mxu0 0.0
    %82 = vmatpush1.msra.mxu0 0.0
    %83 = vmatprep.subr.mxu0 0.0
    %84 = vmatpush1.msra.mxu0 0.0
    %85 = vmatprep.subr.mxu0 0.0
    %86 = vmatpush1.msra.mxu0 0.0
    %87 = vmatprep.subr.mxu0 0.0
    %88 = vmatpush1.msra.mxu0 0.0
    %89 = vmatprep.subr.mxu0 0.0
    %90 = vmatpush1.msra.mxu0 0.0
    %91 = vmatprep.subr.mxu0 0.0
    %92 = vmatpush1.msra.mxu0 0.0
    %93 = vmatprep.subr.mxu0 0.0
    %94 = vmatpush1.msra.mxu0 0.0
    %95 = vmatprep.subr.mxu0 0.0
    %96 = vmatpush1.msra.mxu0 0.0
    %97 = vmatprep.subr.mxu0 0.0
    %98 = vmatpush1.msra.mxu0 0.0
    %99 = vmatprep.subr.mxu0 0.0
    %100 = vmatpush1.msra.mxu0 0.0
    %101 = vmatprep.mubr.f32.mxu0 0.0
    %102 = vmatmul.mubr.f32.gmra.mrb[0].mxu0 %v32
    %v103 = vpop.f32.mrb[0].mxu0
    %v104 = vadd.f32 0.0, %v103
    %v105 = vpop.f32.mrb[0].mxu0
    %106 = vmatprep.mubr.f32.mxu0 0.0
    %107 = vmatmul.mubr.f32.gmra.mrb[0].mxu0 %v35
    %v108 = vpop.f32.mrb[0].mxu0
    %v109 = vadd.f32 0.0, %v108
    %v110 = vpop.f32.mrb[0].mxu0
    %111 = vdwg.mxu0
    %112 = vadd.xlane.f32.xlu0 %v104
    %v113 = vpop.xlane.xlu0 %112
    %114 = vadd.xlane.f32.xlu0 %v109
    %v115 = vpop.xlane.xlu0 %114
    %v116 = vmul.f32 %v113, 0.0078125
    %v117 = vmul.f32 %v115, 0.0078125
    %v118 = vsub.f32 %v104, %v116
    %v119 = vsub.f32 %v109, %v117
    %v120 = vmul.f32 %v118, %v118
    %v121 = vmul.f32 %v119, %v119
    %122 = vadd.xlane.f32.xlu0 %v120
    %v123 = vpop.xlane.xlu0 %122
    %124 = vadd.xlane.f32.xlu0 %v121
    %v125 = vpop.xlane.xlu0 %124
    %v126 = vmul.f32 %v123, 0.0078125
    %v127 = vmul.f32 %v125, 0.0078125
    %v128 = vld [vmem:[%s2] sm:$0xff]
    %v129 = vld [vmem:[%s2 + $0x8] sm:$0xff]
    %v130 = vadd.f32 %v126, 1e-05
    %v131 = vadd.f32 %v127, 1e-05
    %v132 = vrsqrt.pop %v130
    %v133 = vrsqrt.pop %v131
    %v134 = vmul.f32 %v128, %v132
    %v135 = vmul.f32 %v129, %v133
    %137 = vset.pattern.permute.xlu0 0
    %138 = vperm.xlu0 %137, %v134
    %v139 = vpop.permute.xlu0 %138
    %142 = vset.pattern.permute.xlu0 0
    %143 = vperm.xlu0 %142, %v135
    %v144 = vpop.permute.xlu0 %143
    %v146 = vmul.f32 %v118, %v139
    %v147 = vmul.f32 %v119, %v144
    %v148 = vld [vmem:[%s3] sm:$0xff]
    %v149 = vld [vmem:[%s3 + $0x8] sm:$0xff]
    %151 = vset.pattern.permute.xlu0 0
    %152 = vperm.xlu0 %151, %v148
    %v153 = vpop.permute.xlu0 %152
    %156 = vset.pattern.permute.xlu0 0
    %157 = vperm.xlu0 %156, %v149
    %v158 = vpop.permute.xlu0 %157
    %v160 = vadd.f32 %v146, %v153
    %v161 = vadd.f32 %v147, %v158
    %v162 = vmax.f32 %v160, 0.0
    %v163 = vmax.f32 %v161, 0.0
    %v164 = vld [vmem:[%s5] sm:$0x1]
    %v165 = vld [vmem:[%s4] sm:$0xff]
    %v166 = vld [vmem:[%s4 + $0x8] sm:$0xff]
    %v167 = vld [vmem:[%s4 + $0x10] sm:$0xff]
    %v168 = vld [vmem:[%s4 + $0x18] sm:$0xff]
    %v169 = vld [vmem:[%s4 + $0x20] sm:$0xff]
    %v170 = vld [vmem:[%s4 + $0x28] sm:$0xff]
    %v171 = vld [vmem:[%s4 + $0x30] sm:$0xff]
    %v172 = vld [vmem:[%s4 + $0x38] sm:$0xff]
    %vm173 = vcmask 523264
    %v175 = vsel %vm173, %v162, 0
    %177 = vmatprep.subr.mxu0 0.0
    %178 = vmatpush1.msra.mxu0 %v165
    %179 = vmatprep.subr.mxu0 0.0
    %180 = vmatpush1.msra.mxu0 %v166
    %181 = vmatprep.subr.mxu0 0.0
    %182 = vmatpush1.msra.mxu0 %v167
    %183 = vmatprep.subr.mxu0 0.0
    %184 = vmatpush1.msra.mxu0 %v168
    %185 = vmatprep.subr.mxu0 0.0
    %186 = vmatpush1.msra.mxu0 %v169
    %187 = vmatprep.subr.mxu0 0.0
    %188 = vmatpush1.msra.mxu0 %v170
    %189 = vmatprep.subr.mxu0 0.0
    %190 = vmatpush1.msra.mxu0 %v171
    %191 = vmatprep.subr.mxu0 0.0
    %192 = vmatpush1.msra.mxu0 %v172
    %193 = vmatprep.subr.mxu0 0.0
    %194 = vmatpush1.msra.mxu0 0.0
    %195 = vmatprep.subr.mxu0 0.0
    %196 = vmatpush1.msra.mxu0 0.0
    %197 = vmatprep.subr.mxu0 0.0
    %198 = vmatpush1.msra.mxu0 0.0
    %199 = vmatprep.subr.mxu0 0.0
    %200 = vmatpush1.msra.mxu0 0.0
    %201 = vmatprep.subr.mxu0 0.0
    %202 = vmatpush1.msra.mxu0 0.0
    %203 = vmatprep.subr.mxu0 0.0
    %204 = vmatpush1.msra.mxu0 0.0
    %205 = vmatprep.subr.mxu0 0.0
    %206 = vmatpush1.msra.mxu0 0.0
    %207 = vmatprep.subr.mxu0 0.0
    %208 = vmatpush1.msra.mxu0 0.0
    %209 = vmatprep.subr.mxu0 0.0
    %210 = vmatpush1.msra.mxu0 0.0
    %211 = vmatprep.subr.mxu0 0.0
    %212 = vmatpush1.msra.mxu0 0.0
    %213 = vmatprep.subr.mxu0 0.0
    %214 = vmatpush1.msra.mxu0 0.0
    %215 = vmatprep.subr.mxu0 0.0
    %216 = vmatpush1.msra.mxu0 0.0
    %217 = vmatprep.subr.mxu0 0.0
    %218 = vmatpush1.msra.mxu0 0.0
    %219 = vmatprep.subr.mxu0 0.0
    %220 = vmatpush1.msra.mxu0 0.0
    %221 = vmatprep.subr.mxu0 0.0
    %222 = vmatpush1.msra.mxu0 0.0
    %223 = vmatprep.subr.mxu0 0.0
    %224 = vmatpush1.msra.mxu0 0.0
    %225 = vmatprep.subr.mxu0 0.0
    %226 = vmatpush1.msra.mxu0 0.0
    %227 = vmatprep.subr.mxu0 0.0
    %228 = vmatpush1.msra.mxu0 0.0
    %229 = vmatprep.subr.mxu0 0.0
    %230 = vmatpush1.msra.mxu0 0.0
    %231 = vmatprep.subr.mxu0 0.0
    %232 = vmatpush1.msra.mxu0 0.0
    %233 = vmatprep.subr.mxu0 0.0
    %234 = vmatpush1.msra.mxu0 0.0
    %235 = vmatprep.subr.mxu0 0.0
    %236 = vmatpush1.msra.mxu0 0.0
    %237 = vmatprep.subr.mxu0 0.0
    %238 = vmatpush1.msra.mxu0 0.0
    %239 = vmatprep.subr.mxu0 0.0
    %240 = vmatpush1.msra.mxu0 0.0
    %241 = vmatprep.mubr.f32.mxu0 0.0
    %242 = vmatmul.mubr.f32.gmra.mrb[0].mxu0 %v175
    %v243 = vpop.f32.mrb[0].mxu0
    %v244 = vadd.f32 0.0, %v243
    %v245 = vpop.f32.mrb[0].mxu0
    %246 = vdwg.mxu0
    %v247 = vadd.f32 %v164, %v244
    %248 = vrot.lane.b32.xlu0 %v162, 64
    %v249 = vpop.permute.xlu0 %248
    %v250 = vsel %vm173, %v249, 0
    %252 = vmatprep.subr.mxu0 0.0
    %253 = vmatpush1.msra.mxu0 %v165
    %254 = vmatprep.subr.mxu0 0.0
    %255 = vmatpush1.msra.mxu0 %v166
    %256 = vmatprep.subr.mxu0 0.0
    %257 = vmatpush1.msra.mxu0 %v167
    %258 = vmatprep.subr.mxu0 0.0
    %259 = vmatpush1.msra.mxu0 %v168
    %260 = vmatprep.subr.mxu0 0.0
    %261 = vmatpush1.msra.mxu0 %v169
    %262 = vmatprep.subr.mxu0 0.0
    %263 = vmatpush1.msra.mxu0 %v170
    %264 = vmatprep.subr.mxu0 0.0
    %265 = vmatpush1.msra.mxu0 %v171
    %266 = vmatprep.subr.mxu0 0.0
    %267 = vmatpush1.msra.mxu0 %v172
    %268 = vmatprep.subr.mxu0 0.0
    %269 = vmatpush1.msra.mxu0 0.0
    %270 = vmatprep.subr.mxu0 0.0
    %271 = vmatpush1.msra.mxu0 0.0
    %272 = vmatprep.subr.mxu0 0.0
    %273 = vmatpush1.msra.mxu0 0.0
    %274 = vmatprep.subr.mxu0 0.0
    %275 = vmatpush1.msra.mxu0 0.0
    %276 = vmatprep.subr.mxu0 0.0
    %277 = vmatpush1.msra.mxu0 0.0
    %278 = vmatprep.subr.mxu0 0.0
    %279 = vmatpush1.msra.mxu0 0.0
    %280 = vmatprep.subr.mxu0 0.0
    %281 = vmatpush1.msra.mxu0 0.0
    %282 = vmatprep.subr.mxu0 0.0
    %283 = vmatpush1.msra.mxu0 0.0
    %284 = vmatprep.subr.mxu0 0.0
    %285 = vmatpush1.msra.mxu0 0.0
    %286 = vmatprep.subr.mxu0 0.0
    %287 = vmatpush1.msra.mxu0 0.0
    %288 = vmatprep.subr.mxu0 0.0
    %289 = vmatpush1.msra.mxu0 0.0
    %290 = vmatprep.subr.mxu0 0.0
    %291 = vmatpush1.msra.mxu0 0.0
    %292 = vmatprep.subr.mxu0 0.0
    %293 = vmatpush1.msra.mxu0 0.0
    %294 = vmatprep.subr.mxu0 0.0
    %295 = vmatpush1.msra.mxu0 0.0
    %296 = vmatprep.subr.mxu0 0.0
    %297 = vmatpush1.msra.mxu0 0.0
    %298 = vmatprep.subr.mxu0 0.0
    %299 = vmatpush1.msra.mxu0 0.0
    %300 = vmatprep.subr.mxu0 0.0
    %301 = vmatpush1.msra.mxu0 0.0
    %302 = vmatprep.subr.mxu0 0.0
    %303 = vmatpush1.msra.mxu0 0.0
    %304 = vmatprep.subr.mxu0 0.0
    %305 = vmatpush1.msra.mxu0 0.0
    %306 = vmatprep.subr.mxu0 0.0
    %307 = vmatpush1.msra.mxu0 0.0
    %308 = vmatprep.subr.mxu0 0.0
    %309 = vmatpush1.msra.mxu0 0.0
    %310 = vmatprep.subr.mxu0 0.0
    %311 = vmatpush1.msra.mxu0 0.0
    %312 = vmatprep.subr.mxu0 0.0
    %313 = vmatpush1.msra.mxu0 0.0
    %314 = vmatprep.subr.mxu0 0.0
    %315 = vmatpush1.msra.mxu0 0.0
    %316 = vmatprep.mubr.f32.mxu0 0.0
    %317 = vmatmul.mubr.f32.gmra.mrb[0].mxu0 %v250
    %v318 = vpop.f32.mrb[0].mxu0
    %v319 = vadd.f32 0.0, %v318
    %v320 = vpop.f32.mrb[0].mxu0
    %321 = vdwg.mxu0
    %v322 = vadd.f32 %v164, %v319
    %s323 = scalar_lea.vmem %s4, 64
    %v324 = vld [vmem:[%s323] sm:$0xff]
    %v325 = vld [vmem:[%s323 + $0x8] sm:$0xff]
    %v326 = vld [vmem:[%s323 + $0x10] sm:$0xff]
    %v327 = vld [vmem:[%s323 + $0x18] sm:$0xff]
    %v328 = vld [vmem:[%s323 + $0x20] sm:$0xff]
    %v329 = vld [vmem:[%s323 + $0x28] sm:$0xff]
    %v330 = vld [vmem:[%s323 + $0x30] sm:$0xff]
    %v331 = vld [vmem:[%s323 + $0x38] sm:$0xff]
    %v332 = vrot.slane %v162, 1
    %v333 = vsel %vm173, %v332, 0
    %335 = vmatprep.subr.mxu0 0.0
    %336 = vmatpush1.msra.mxu0 %v324
    %337 = vmatprep.subr.mxu0 0.0
    %338 = vmatpush1.msra.mxu0 %v325
    %339 = vmatprep.subr.mxu0 0.0
    %340 = vmatpush1.msra.mxu0 %v326
    %341 = vmatprep.subr.mxu0 0.0
    %342 = vmatpush1.msra.mxu0 %v327
    %343 = vmatprep.subr.mxu0 0.0
    %344 = vmatpush1.msra.mxu0 %v328
    %345 = vmatprep.subr.mxu0 0.0
    %346 = vmatpush1.msra.mxu0 %v329
    %347 = vmatprep.subr.mxu0 0.0
    %348 = vmatpush1.msra.mxu0 %v330
    %349 = vmatprep.subr.mxu0 0.0
    %350 = vmatpush1.msra.mxu0 %v331
    %351 = vmatprep.subr.mxu0 0.0
    %352 = vmatpush1.msra.mxu0 0.0
    %353 = vmatprep.subr.mxu0 0.0
    %354 = vmatpush1.msra.mxu0 0.0
    %355 = vmatprep.subr.mxu0 0.0
    %356 = vmatpush1.msra.mxu0 0.0
    %357 = vmatprep.subr.mxu0 0.0
    %358 = vmatpush1.msra.mxu0 0.0
    %359 = vmatprep.subr.mxu0 0.0
    %360 = vmatpush1.msra.mxu0 0.0
    %361 = vmatprep.subr.mxu0 0.0
    %362 = vmatpush1.msra.mxu0 0.0
    %363 = vmatprep.subr.mxu0 0.0
    %364 = vmatpush1.msra.mxu0 0.0
    %365 = vmatprep.subr.mxu0 0.0
    %366 = vmatpush1.msra.mxu0 0.0
    %367 = vmatprep.subr.mxu0 0.0
    %368 = vmatpush1.msra.mxu0 0.0
    %369 = vmatprep.subr.mxu0 0.0
    %370 = vmatpush1.msra.mxu0 0.0
    %371 = vmatprep.subr.mxu0 0.0
    %372 = vmatpush1.msra.mxu0 0.0
    %373 = vmatprep.subr.mxu0 0.0
    %374 = vmatpush1.msra.mxu0 0.0
    %375 = vmatprep.subr.mxu0 0.0
    %376 = vmatpush1.msra.mxu0 0.0
    %377 = vmatprep.subr.mxu0 0.0
    %378 = vmatpush1.msra.mxu0 0.0
    %379 = vmatprep.subr.mxu0 0.0
    %380 = vmatpush1.msra.mxu0 0.0
    %381 = vmatprep.subr.mxu0 0.0
    %382 = vmatpush1.msra.mxu0 0.0
    %383 = vmatprep.subr.mxu0 0.0
    %384 = vmatpush1.msra.mxu0 0.0
    %385 = vmatprep.subr.mxu0 0.0
    %386 = vmatpush1.msra.mxu0 0.0
    %387 = vmatprep.subr.mxu0 0.0
    %388 = vmatpush1.msra.mxu0 0.0
    %389 = vmatprep.subr.mxu0 0.0
    %390 = vmatpush1.msra.mxu0 0.0
    %391 = vmatprep.subr.mxu0 0.0
    %392 = vmatpush1.msra.mxu0 0.0
    %393 = vmatprep.subr.mxu0 0.0
    %394 = vmatpush1.msra.mxu0 0.0
    %395 = vmatprep.subr.mxu0 0.0
    %396 = vmatpush1.msra.mxu0 0.0
    %397 = vmatprep.subr.mxu0 0.0
    %398 = vmatpush1.msra.mxu0 0.0
    %399 = vmatprep.mubr.f32.mxu0 0.0
    %400 = vmatmul.mubr.f32.gmra.mrb[0].mxu0 %v333
    %v401 = vpop.f32.mrb[0].mxu0
    %v402 = vadd.f32 0.0, %v401
    %v403 = vpop.f32.mrb[0].mxu0
    %404 = vdwg.mxu0
    %v405 = vadd.f32 %v247, %v402
    %406 = vrot.lane.b32.xlu0 %v332, 64
    %v407 = vpop.permute.xlu0 %406
    %v408 = vsel %vm173, %v407, 0
    %410 = vmatprep.subr.mxu0 0.0
    %411 = vmatpush1.msra.mxu0 %v324
    %412 = vmatprep.subr.mxu0 0.0
    %413 = vmatpush1.msra.mxu0 %v325
    %414 = vmatprep.subr.mxu0 0.0
    %415 = vmatpush1.msra.mxu0 %v326
    %416 = vmatprep.subr.mxu0 0.0
    %417 = vmatpush1.msra.mxu0 %v327
    %418 = vmatprep.subr.mxu0 0.0
    %419 = vmatpush1.msra.mxu0 %v328
    %420 = vmatprep.subr.mxu0 0.0
    %421 = vmatpush1.msra.mxu0 %v329
    %422 = vmatprep.subr.mxu0 0.0
    %423 = vmatpush1.msra.mxu0 %v330
    %424 = vmatprep.subr.mxu0 0.0
    %425 = vmatpush1.msra.mxu0 %v331
    %426 = vmatprep.subr.mxu0 0.0
    %427 = vmatpush1.msra.mxu0 0.0
    %428 = vmatprep.subr.mxu0 0.0
    %429 = vmatpush1.msra.mxu0 0.0
    %430 = vmatprep.subr.mxu0 0.0
    %431 = vmatpush1.msra.mxu0 0.0
    %432 = vmatprep.subr.mxu0 0.0
    %433 = vmatpush1.msra.mxu0 0.0
    %434 = vmatprep.subr.mxu0 0.0
    %435 = vmatpush1.msra.mxu0 0.0
    %436 = vmatprep.subr.mxu0 0.0
    %437 = vmatpush1.msra.mxu0 0.0
    %438 = vmatprep.subr.mxu0 0.0
    %439 = vmatpush1.msra.mxu0 0.0
    %440 = vmatprep.subr.mxu0 0.0
    %441 = vmatpush1.msra.mxu0 0.0
    %442 = vmatprep.subr.mxu0 0.0
    %443 = vmatpush1.msra.mxu0 0.0
    %444 = vmatprep.subr.mxu0 0.0
    %445 = vmatpush1.msra.mxu0 0.0
    %446 = vmatprep.subr.mxu0 0.0
    %447 = vmatpush1.msra.mxu0 0.0
    %448 = vmatprep.subr.mxu0 0.0
    %449 = vmatpush1.msra.mxu0 0.0
    %450 = vmatprep.subr.mxu0 0.0
    %451 = vmatpush1.msra.mxu0 0.0
    %452 = vmatprep.subr.mxu0 0.0
    %453 = vmatpush1.msra.mxu0 0.0
    %454 = vmatprep.subr.mxu0 0.0
    %455 = vmatpush1.msra.mxu0 0.0
    %456 = vmatprep.subr.mxu0 0.0
    %457 = vmatpush1.msra.mxu0 0.0
    %458 = vmatprep.subr.mxu0 0.0
    %459 = vmatpush1.msra.mxu0 0.0
    %460 = vmatprep.subr.mxu0 0.0
    %461 = vmatpush1.msra.mxu0 0.0
    %462 = vmatprep.subr.mxu0 0.0
    %463 = vmatpush1.msra.mxu0 0.0
    %464 = vmatprep.subr.mxu0 0.0
    %465 = vmatpush1.msra.mxu0 0.0
    %466 = vmatprep.subr.mxu0 0.0
    %467 = vmatpush1.msra.mxu0 0.0
    %468 = vmatprep.subr.mxu0 0.0
    %469 = vmatpush1.msra.mxu0 0.0
    %470 = vmatprep.subr.mxu0 0.0
    %471 = vmatpush1.msra.mxu0 0.0
    %472 = vmatprep.subr.mxu0 0.0
    %473 = vmatpush1.msra.mxu0 0.0
    %474 = vmatprep.mubr.f32.mxu0 0.0
    %475 = vmatmul.mubr.f32.gmra.mrb[0].mxu0 %v408
    %v476 = vpop.f32.mrb[0].mxu0
    %v477 = vadd.f32 0.0, %v476
    %v478 = vpop.f32.mrb[0].mxu0
    %479 = vdwg.mxu0
    %v480 = vadd.f32 %v322, %v477
    %s481 = scalar_lea.vmem %s4, 128
    %v482 = vld [vmem:[%s481] sm:$0xff]
    %v483 = vld [vmem:[%s481 + $0x8] sm:$0xff]
    %v484 = vld [vmem:[%s481 + $0x10] sm:$0xff]
    %v485 = vld [vmem:[%s481 + $0x18] sm:$0xff]
    %v486 = vld [vmem:[%s481 + $0x20] sm:$0xff]
    %v487 = vld [vmem:[%s481 + $0x28] sm:$0xff]
    %v488 = vld [vmem:[%s481 + $0x30] sm:$0xff]
    %v489 = vld [vmem:[%s481 + $0x38] sm:$0xff]
    %v490 = vrot.slane %v162, 2
    %v491 = vsel %vm173, %v490, 0
    %493 = vmatprep.subr.mxu0 0.0
    %494 = vmatpush1.msra.mxu0 %v482
    %495 = vmatprep.subr.mxu0 0.0
    %496 = vmatpush1.msra.mxu0 %v483
    %497 = vmatprep.subr.mxu0 0.0
    %498 = vmatpush1.msra.mxu0 %v484
    %499 = vmatprep.subr.mxu0 0.0
    %500 = vmatpush1.msra.mxu0 %v485
    %501 = vmatprep.subr.mxu0 0.0
    %502 = vmatpush1.msra.mxu0 %v486
    %503 = vmatprep.subr.mxu0 0.0
    %504 = vmatpush1.msra.mxu0 %v487
    %505 = vmatprep.subr.mxu0 0.0
    %506 = vmatpush1.msra.mxu0 %v488
    %507 = vmatprep.subr.mxu0 0.0
    %508 = vmatpush1.msra.mxu0 %v489
    %509 = vmatprep.subr.mxu0 0.0
    %510 = vmatpush1.msra.mxu0 0.0
    %511 = vmatprep.subr.mxu0 0.0
    %512 = vmatpush1.msra.mxu0 0.0
    %513 = vmatprep.subr.mxu0 0.0
    %514 = vmatpush1.msra.mxu0 0.0
    %515 = vmatprep.subr.mxu0 0.0
    %516 = vmatpush1.msra.mxu0 0.0
    %517 = vmatprep.subr.mxu0 0.0
    %518 = vmatpush1.msra.mxu0 0.0
    %519 = vmatprep.subr.mxu0 0.0
    %520 = vmatpush1.msra.mxu0 0.0
    %521 = vmatprep.subr.mxu0 0.0
    %522 = vmatpush1.msra.mxu0 0.0
    %523 = vmatprep.subr.mxu0 0.0
    %524 = vmatpush1.msra.mxu0 0.0
    %525 = vmatprep.subr.mxu0 0.0
    %526 = vmatpush1.msra.mxu0 0.0
    %527 = vmatprep.subr.mxu0 0.0
    %528 = vmatpush1.msra.mxu0 0.0
    %529 = vmatprep.subr.mxu0 0.0
    %530 = vmatpush1.msra.mxu0 0.0
    %531 = vmatprep.subr.mxu0 0.0
    %532 = vmatpush1.msra.mxu0 0.0
    %533 = vmatprep.subr.mxu0 0.0
    %534 = vmatpush1.msra.mxu0 0.0
    %535 = vmatprep.subr.mxu0 0.0
    %536 = vmatpush1.msra.mxu0 0.0
    %537 = vmatprep.subr.mxu0 0.0
    %538 = vmatpush1.msra.mxu0 0.0
    %539 = vmatprep.subr.mxu0 0.0
    %540 = vmatpush1.msra.mxu0 0.0
    %541 = vmatprep.subr.mxu0 0.0
    %542 = vmatpush1.msra.mxu0 0.0
    %543 = vmatprep.subr.mxu0 0.0
    %544 = vmatpush1.msra.mxu0 0.0
    %545 = vmatprep.subr.mxu0 0.0
    %546 = vmatpush1.msra.mxu0 0.0
    %547 = vmatprep.subr.mxu0 0.0
    %548 = vmatpush1.msra.mxu0 0.0
    %549 = vmatprep.subr.mxu0 0.0
    %550 = vmatpush1.msra.mxu0 0.0
    %551 = vmatprep.subr.mxu0 0.0
    %552 = vmatpush1.msra.mxu0 0.0
    %553 = vmatprep.subr.mxu0 0.0
    %554 = vmatpush1.msra.mxu0 0.0
    %555 = vmatprep.subr.mxu0 0.0
    %556 = vmatpush1.msra.mxu0 0.0
    %557 = vmatprep.mubr.f32.mxu0 0.0
    %558 = vmatmul.mubr.f32.gmra.mrb[0].mxu0 %v491
    %v559 = vpop.f32.mrb[0].mxu0
    %v560 = vadd.f32 0.0, %v559
    %v561 = vpop.f32.mrb[0].mxu0
    %562 = vdwg.mxu0
    %v563 = vadd.f32 %v405, %v560
    %564 = vrot.lane.b32.xlu0 %v490, 64
    %v565 = vpop.permute.xlu0 %564
    %v566 = vsel %vm173, %v565, 0
    %568 = vmatprep.subr.mxu0 0.0
    %569 = vmatpush1.msra.mxu0 %v482
    %570 = vmatprep.subr.mxu0 0.0
    %571 = vmatpush1.msra.mxu0 %v483
    %572 = vmatprep.subr.mxu0 0.0
    %573 = vmatpush1.msra.mxu0 %v484
    %574 = vmatprep.subr.mxu0 0.0
    %575 = vmatpush1.msra.mxu0 %v485
    %576 = vmatprep.subr.mxu0 0.0
    %577 = vmatpush1.msra.mxu0 %v486
    %578 = vmatprep.subr.mxu0 0.0
    %579 = vmatpush1.msra.mxu0 %v487
    %580 = vmatprep.subr.mxu0 0.0
    %581 = vmatpush1.msra.mxu0 %v488
    %582 = vmatprep.subr.mxu0 0.0
    %583 = vmatpush1.msra.mxu0 %v489
    %584 = vmatprep.subr.mxu0 0.0
    %585 = vmatpush1.msra.mxu0 0.0
    %586 = vmatprep.subr.mxu0 0.0
    %587 = vmatpush1.msra.mxu0 0.0
    %588 = vmatprep.subr.mxu0 0.0
    %589 = vmatpush1.msra.mxu0 0.0
    %590 = vmatprep.subr.mxu0 0.0
    %591 = vmatpush1.msra.mxu0 0.0
    %592 = vmatprep.subr.mxu0 0.0
    %593 = vmatpush1.msra.mxu0 0.0
    %594 = vmatprep.subr.mxu0 0.0
    %595 = vmatpush1.msra.mxu0 0.0
    %596 = vmatprep.subr.mxu0 0.0
    %597 = vmatpush1.msra.mxu0 0.0
    %598 = vmatprep.subr.mxu0 0.0
    %599 = vmatpush1.msra.mxu0 0.0
    %600 = vmatprep.subr.mxu0 0.0
    %601 = vmatpush1.msra.mxu0 0.0
    %602 = vmatprep.subr.mxu0 0.0
    %603 = vmatpush1.msra.mxu0 0.0
    %604 = vmatprep.subr.mxu0 0.0
    %605 = vmatpush1.msra.mxu0 0.0
    %606 = vmatprep.subr.mxu0 0.0
    %607 = vmatpush1.msra.mxu0 0.0
    %608 = vmatprep.subr.mxu0 0.0
    %609 = vmatpush1.msra.mxu0 0.0
    %610 = vmatprep.subr.mxu0 0.0
    %611 = vmatpush1.msra.mxu0 0.0
    %612 = vmatprep.subr.mxu0 0.0
    %613 = vmatpush1.msra.mxu0 0.0
    %614 = vmatprep.subr.mxu0 0.0
    %615 = vmatpush1.msra.mxu0 0.0
    %616 = vmatprep.subr.mxu0 0.0
    %617 = vmatpush1.msra.mxu0 0.0
    %618 = vmatprep.subr.mxu0 0.0
    %619 = vmatpush1.msra.mxu0 0.0
    %620 = vmatprep.subr.mxu0 0.0
    %621 = vmatpush1.msra.mxu0 0.0
    %622 = vmatprep.subr.mxu0 0.0
    %623 = vmatpush1.msra.mxu0 0.0
    %624 = vmatprep.subr.mxu0 0.0
    %625 = vmatpush1.msra.mxu0 0.0
    %626 = vmatprep.subr.mxu0 0.0
    %627 = vmatpush1.msra.mxu0 0.0
    %628 = vmatprep.subr.mxu0 0.0
    %629 = vmatpush1.msra.mxu0 0.0
    %630 = vmatprep.subr.mxu0 0.0
    %631 = vmatpush1.msra.mxu0 0.0
    %632 = vmatprep.mubr.f32.mxu0 0.0
    %633 = vmatmul.mubr.f32.gmra.mrb[0].mxu0 %v566
    %v634 = vpop.f32.mrb[0].mxu0
    %v635 = vadd.f32 0.0, %v634
    %v636 = vpop.f32.mrb[0].mxu0
    %637 = vdwg.mxu0
    %v638 = vadd.f32 %v480, %v635
    %s639 = scalar_lea.vmem %s4, 192
    %v640 = vld [vmem:[%s639] sm:$0xff]
    %v641 = vld [vmem:[%s639 + $0x8] sm:$0xff]
    %v642 = vld [vmem:[%s639 + $0x10] sm:$0xff]
    %v643 = vld [vmem:[%s639 + $0x18] sm:$0xff]
    %v644 = vld [vmem:[%s639 + $0x20] sm:$0xff]
    %v645 = vld [vmem:[%s639 + $0x28] sm:$0xff]
    %v646 = vld [vmem:[%s639 + $0x30] sm:$0xff]
    %v647 = vld [vmem:[%s639 + $0x38] sm:$0xff]
    %v648 = vrot.slane %v162, 3
    %v649 = vsel %vm173, %v648, 0
    %651 = vmatprep.subr.mxu0 0.0
    %652 = vmatpush1.msra.mxu0 %v640
    %653 = vmatprep.subr.mxu0 0.0
    %654 = vmatpush1.msra.mxu0 %v641
    %655 = vmatprep.subr.mxu0 0.0
    %656 = vmatpush1.msra.mxu0 %v642
    %657 = vmatprep.subr.mxu0 0.0
    %658 = vmatpush1.msra.mxu0 %v643
    %659 = vmatprep.subr.mxu0 0.0
    %660 = vmatpush1.msra.mxu0 %v644
    %661 = vmatprep.subr.mxu0 0.0
    %662 = vmatpush1.msra.mxu0 %v645
    %663 = vmatprep.subr.mxu0 0.0
    %664 = vmatpush1.msra.mxu0 %v646
    %665 = vmatprep.subr.mxu0 0.0
    %666 = vmatpush1.msra.mxu0 %v647
    %667 = vmatprep.subr.mxu0 0.0
    %668 = vmatpush1.msra.mxu0 0.0
    %669 = vmatprep.subr.mxu0 0.0
    %670 = vmatpush1.msra.mxu0 0.0
    %671 = vmatprep.subr.mxu0 0.0
    %672 = vmatpush1.msra.mxu0 0.0
    %673 = vmatprep.subr.mxu0 0.0
    %674 = vmatpush1.msra.mxu0 0.0
    %675 = vmatprep.subr.mxu0 0.0
    %676 = vmatpush1.msra.mxu0 0.0
    %677 = vmatprep.subr.mxu0 0.0
    %678 = vmatpush1.msra.mxu0 0.0
    %679 = vmatprep.subr.mxu0 0.0
    %680 = vmatpush1.msra.mxu0 0.0
    %681 = vmatprep.subr.mxu0 0.0
    %682 = vmatpush1.msra.mxu0 0.0
    %683 = vmatprep.subr.mxu0 0.0
    %684 = vmatpush1.msra.mxu0 0.0
    %685 = vmatprep.subr.mxu0 0.0
    %686 = vmatpush1.msra.mxu0 0.0
    %687 = vmatprep.subr.mxu0 0.0
    %688 = vmatpush1.msra.mxu0 0.0
    %689 = vmatprep.subr.mxu0 0.0
    %690 = vmatpush1.msra.mxu0 0.0
    %691 = vmatprep.subr.mxu0 0.0
    %692 = vmatpush1.msra.mxu0 0.0
    %693 = vmatprep.subr.mxu0 0.0
    %694 = vmatpush1.msra.mxu0 0.0
    %695 = vmatprep.subr.mxu0 0.0
    %696 = vmatpush1.msra.mxu0 0.0
    %697 = vmatprep.subr.mxu0 0.0
    %698 = vmatpush1.msra.mxu0 0.0
    %699 = vmatprep.subr.mxu0 0.0
    %700 = vmatpush1.msra.mxu0 0.0
    %701 = vmatprep.subr.mxu0 0.0
    %702 = vmatpush1.msra.mxu0 0.0
    %703 = vmatprep.subr.mxu0 0.0
    %704 = vmatpush1.msra.mxu0 0.0
    %705 = vmatprep.subr.mxu0 0.0
    %706 = vmatpush1.msra.mxu0 0.0
    %707 = vmatprep.subr.mxu0 0.0
    %708 = vmatpush1.msra.mxu0 0.0
    %709 = vmatprep.subr.mxu0 0.0
    %710 = vmatpush1.msra.mxu0 0.0
    %711 = vmatprep.subr.mxu0 0.0
    %712 = vmatpush1.msra.mxu0 0.0
    %713 = vmatprep.subr.mxu0 0.0
    %714 = vmatpush1.msra.mxu0 0.0
    %715 = vmatprep.mubr.f32.mxu0 0.0
    %716 = vmatmul.mubr.f32.gmra.mrb[0].mxu0 %v649
    %v717 = vpop.f32.mrb[0].mxu0
    %v718 = vadd.f32 0.0, %v717
    %v719 = vpop.f32.mrb[0].mxu0
    %720 = vdwg.mxu0
    %v721 = vadd.f32 %v563, %v718
    %722 = vrot.lane.b32.xlu0 %v648, 64
    %v723 = vpop.permute.xlu0 %722
    %v724 = vsel %vm173, %v723, 0
    %726 = vmatprep.subr.mxu0 0.0
    %727 = vmatpush1.msra.mxu0 %v640
    %728 = vmatprep.subr.mxu0 0.0
    %729 = vmatpush1.msra.mxu0 %v641
    %730 = vmatprep.subr.mxu0 0.0
    %731 = vmatpush1.msra.mxu0 %v642
    %732 = vmatprep.subr.mxu0 0.0
    %733 = vmatpush1.msra.mxu0 %v643
    %734 = vmatprep.subr.mxu0 0.0
    %735 = vmatpush1.msra.mxu0 %v644
    %736 = vmatprep.subr.mxu0 0.0
    %737 = vmatpush1.msra.mxu0 %v645
    %738 = vmatprep.subr.mxu0 0.0
    %739 = vmatpush1.msra.mxu0 %v646
    %740 = vmatprep.subr.mxu0 0.0
    %741 = vmatpush1.msra.mxu0 %v647
    %742 = vmatprep.subr.mxu0 0.0
    %743 = vmatpush1.msra.mxu0 0.0
    %744 = vmatprep.subr.mxu0 0.0
    %745 = vmatpush1.msra.mxu0 0.0
    %746 = vmatprep.subr.mxu0 0.0
    %747 = vmatpush1.msra.mxu0 0.0
    %748 = vmatprep.subr.mxu0 0.0
    %749 = vmatpush1.msra.mxu0 0.0
    %750 = vmatprep.subr.mxu0 0.0
    %751 = vmatpush1.msra.mxu0 0.0
    %752 = vmatprep.subr.mxu0 0.0
    %753 = vmatpush1.msra.mxu0 0.0
    %754 = vmatprep.subr.mxu0 0.0
    %755 = vmatpush1.msra.mxu0 0.0
    %756 = vmatprep.subr.mxu0 0.0
    %757 = vmatpush1.msra.mxu0 0.0
    %758 = vmatprep.subr.mxu0 0.0
    %759 = vmatpush1.msra.mxu0 0.0
    %760 = vmatprep.subr.mxu0 0.0
    %761 = vmatpush1.msra.mxu0 0.0
    %762 = vmatprep.subr.mxu0 0.0
    %763 = vmatpush1.msra.mxu0 0.0
    %764 = vmatprep.subr.mxu0 0.0
    %765 = vmatpush1.msra.mxu0 0.0
    %766 = vmatprep.subr.mxu0 0.0
    %767 = vmatpush1.msra.mxu0 0.0
    %768 = vmatprep.subr.mxu0 0.0
    %769 = vmatpush1.msra.mxu0 0.0
    %770 = vmatprep.subr.mxu0 0.0
    %771 = vmatpush1.msra.mxu0 0.0
    %772 = vmatprep.subr.mxu0 0.0
    %773 = vmatpush1.msra.mxu0 0.0
    %774 = vmatprep.subr.mxu0 0.0
    %775 = vmatpush1.msra.mxu0 0.0
    %776 = vmatprep.subr.mxu0 0.0
    %777 = vmatpush1.msra.mxu0 0.0
    %778 = vmatprep.subr.mxu0 0.0
    %779 = vmatpush1.msra.mxu0 0.0
    %780 = vmatprep.subr.mxu0 0.0
    %781 = vmatpush1.msra.mxu0 0.0
    %782 = vmatprep.subr.mxu0 0.0
    %783 = vmatpush1.msra.mxu0 0.0
    %784 = vmatprep.subr.mxu0 0.0
    %785 = vmatpush1.msra.mxu0 0.0
    %786 = vmatprep.subr.mxu0 0.0
    %787 = vmatpush1.msra.mxu0 0.0
    %788 = vmatprep.subr.mxu0 0.0
    %789 = vmatpush1.msra.mxu0 0.0
    %790 = vmatprep.mubr.f32.mxu0 0.0
    %791 = vmatmul.mubr.f32.gmra.mrb[0].mxu0 %v724
    %v792 = vpop.f32.mrb[0].mxu0
    %v793 = vadd.f32 0.0, %v792
    %v794 = vpop.f32.mrb[0].mxu0
    %795 = vdwg.mxu0
    %v796 = vadd.f32 %v638, %v793
    %s797 = scalar_lea.vmem %s4, 256
    %v798 = vld [vmem:[%s797] sm:$0xff]
    %v799 = vld [vmem:[%s797 + $0x8] sm:$0xff]
    %v800 = vld [vmem:[%s797 + $0x10] sm:$0xff]
    %v801 = vld [vmem:[%s797 + $0x18] sm:$0xff]
    %v802 = vld [vmem:[%s797 + $0x20] sm:$0xff]
    %v803 = vld [vmem:[%s797 + $0x28] sm:$0xff]
    %v804 = vld [vmem:[%s797 + $0x30] sm:$0xff]
    %v805 = vld [vmem:[%s797 + $0x38] sm:$0xff]
    %v806 = vrot.slane %v162, 4
    %v807 = vsel %vm173, %v806, 0
    %809 = vmatprep.subr.mxu0 0.0
    %810 = vmatpush1.msra.mxu0 %v798
    %811 = vmatprep.subr.mxu0 0.0
    %812 = vmatpush1.msra.mxu0 %v799
    %813 = vmatprep.subr.mxu0 0.0
    %814 = vmatpush1.msra.mxu0 %v800
    %815 = vmatprep.subr.mxu0 0.0
    %816 = vmatpush1.msra.mxu0 %v801
    %817 = vmatprep.subr.mxu0 0.0
    %818 = vmatpush1.msra.mxu0 %v802
    %819 = vmatprep.subr.mxu0 0.0
    %820 = vmatpush1.msra.mxu0 %v803
    %821 = vmatprep.subr.mxu0 0.0
    %822 = vmatpush1.msra.mxu0 %v804
    %823 = vmatprep.subr.mxu0 0.0
    %824 = vmatpush1.msra.mxu0 %v805
    %825 = vmatprep.subr.mxu0 0.0
    %826 = vmatpush1.msra.mxu0 0.0
    %827 = vmatprep.subr.mxu0 0.0
    %828 = vmatpush1.msra.mxu0 0.0
    %829 = vmatprep.subr.mxu0 0.0
    %830 = vmatpush1.msra.mxu0 0.0
    %831 = vmatprep.subr.mxu0 0.0
    %832 = vmatpush1.msra.mxu0 0.0
    %833 = vmatprep.subr.mxu0 0.0
    %834 = vmatpush1.msra.mxu0 0.0
    %835 = vmatprep.subr.mxu0 0.0
    %836 = vmatpush1.msra.mxu0 0.0
    %837 = vmatprep.subr.mxu0 0.0
    %838 = vmatpush1.msra.mxu0 0.0
    %839 = vmatprep.subr.mxu0 0.0
    %840 = vmatpush1.msra.mxu0 0.0
    %841 = vmatprep.subr.mxu0 0.0
    %842 = vmatpush1.msra.mxu0 0.0
    %843 = vmatprep.subr.mxu0 0.0
    %844 = vmatpush1.msra.mxu0 0.0
    %845 = vmatprep.subr.mxu0 0.0
    %846 = vmatpush1.msra.mxu0 0.0
    %847 = vmatprep.subr.mxu0 0.0
    %848 = vmatpush1.msra.mxu0 0.0
    %849 = vmatprep.subr.mxu0 0.0
    %850 = vmatpush1.msra.mxu0 0.0
    %851 = vmatprep.subr.mxu0 0.0
    %852 = vmatpush1.msra.mxu0 0.0
    %853 = vmatprep.subr.mxu0 0.0
    %854 = vmatpush1.msra.mxu0 0.0
    %855 = vmatprep.subr.mxu0 0.0
    %856 = vmatpush1.msra.mxu0 0.0
    %857 = vmatprep.subr.mxu0 0.0
    %858 = vmatpush1.msra.mxu0 0.0
    %859 = vmatprep.subr.mxu0 0.0
    %860 = vmatpush1.msra.mxu0 0.0
    %861 = vmatprep.subr.mxu0 0.0
    %862 = vmatpush1.msra.mxu0 0.0
    %863 = vmatprep.subr.mxu0 0.0
    %864 = vmatpush1.msra.mxu0 0.0
    %865 = vmatprep.subr.mxu0 0.0
    %866 = vmatpush1.msra.mxu0 0.0
    %867 = vmatprep.subr.mxu0 0.0
    %868 = vmatpush1.msra.mxu0 0.0
    %869 = vmatprep.subr.mxu0 0.0
    %870 = vmatpush1.msra.mxu0 0.0
    %871 = vmatprep.subr.mxu0 0.0
    %872 = vmatpush1.msra.mxu0 0.0
    %873 = vmatprep.mubr.f32.mxu0 0.0
    %874 = vmatmul.mubr.f32.gmra.mrb[0].mxu0 %v807
    %v875 = vpop.f32.mrb[0].mxu0
    %v876 = vadd.f32 0.0, %v875
    %v877 = vpop.f32.mrb[0].mxu0
    %878 = vdwg.mxu0
    %v879 = vadd.f32 %v721, %v876
    %880 = vrot.lane.b32.xlu0 %v806, 64
    %v881 = vpop.permute.xlu0 %880
    %v882 = vsel %vm173, %v881, 0
    %884 = vmatprep.subr.mxu0 0.0
    %885 = vmatpush1.msra.mxu0 %v798
    %886 = vmatprep.subr.mxu0 0.0
    %887 = vmatpush1.msra.mxu0 %v799
    %888 = vmatprep.subr.mxu0 0.0
    %889 = vmatpush1.msra.mxu0 %v800
    %890 = vmatprep.subr.mxu0 0.0
    %891 = vmatpush1.msra.mxu0 %v801
    %892 = vmatprep.subr.mxu0 0.0
    %893 = vmatpush1.msra.mxu0 %v802
    %894 = vmatprep.subr.mxu0 0.0
    %895 = vmatpush1.msra.mxu0 %v803
    %896 = vmatprep.subr.mxu0 0.0
    %897 = vmatpush1.msra.mxu0 %v804
    %898 = vmatprep.subr.mxu0 0.0
    %899 = vmatpush1.msra.mxu0 %v805
    %900 = vmatprep.subr.mxu0 0.0
    %901 = vmatpush1.msra.mxu0 0.0
    %902 = vmatprep.subr.mxu0 0.0
    %903 = vmatpush1.msra.mxu0 0.0
    %904 = vmatprep.subr.mxu0 0.0
    %905 = vmatpush1.msra.mxu0 0.0
    %906 = vmatprep.subr.mxu0 0.0
    %907 = vmatpush1.msra.mxu0 0.0
    %908 = vmatprep.subr.mxu0 0.0
    %909 = vmatpush1.msra.mxu0 0.0
    %910 = vmatprep.subr.mxu0 0.0
    %911 = vmatpush1.msra.mxu0 0.0
    %912 = vmatprep.subr.mxu0 0.0
    %913 = vmatpush1.msra.mxu0 0.0
    %914 = vmatprep.subr.mxu0 0.0
    %915 = vmatpush1.msra.mxu0 0.0
    %916 = vmatprep.subr.mxu0 0.0
    %917 = vmatpush1.msra.mxu0 0.0
    %918 = vmatprep.subr.mxu0 0.0
    %919 = vmatpush1.msra.mxu0 0.0
    %920 = vmatprep.subr.mxu0 0.0
    %921 = vmatpush1.msra.mxu0 0.0
    %922 = vmatprep.subr.mxu0 0.0
    %923 = vmatpush1.msra.mxu0 0.0
    %924 = vmatprep.subr.mxu0 0.0
    %925 = vmatpush1.msra.mxu0 0.0
    %926 = vmatprep.subr.mxu0 0.0
    %927 = vmatpush1.msra.mxu0 0.0
    %928 = vmatprep.subr.mxu0 0.0
    %929 = vmatpush1.msra.mxu0 0.0
    %930 = vmatprep.subr.mxu0 0.0
    %931 = vmatpush1.msra.mxu0 0.0
    %932 = vmatprep.subr.mxu0 0.0
    %933 = vmatpush1.msra.mxu0 0.0
    %934 = vmatprep.subr.mxu0 0.0
    %935 = vmatpush1.msra.mxu0 0.0
    %936 = vmatprep.subr.mxu0 0.0
    %937 = vmatpush1.msra.mxu0 0.0
    %938 = vmatprep.subr.mxu0 0.0
    %939 = vmatpush1.msra.mxu0 0.0
    %940 = vmatprep.subr.mxu0 0.0
    %941 = vmatpush1.msra.mxu0 0.0
    %942 = vmatprep.subr.mxu0 0.0
    %943 = vmatpush1.msra.mxu0 0.0
    %944 = vmatprep.subr.mxu0 0.0
    %945 = vmatpush1.msra.mxu0 0.0
    %946 = vmatprep.subr.mxu0 0.0
    %947 = vmatpush1.msra.mxu0 0.0
    %948 = vmatprep.mubr.f32.mxu0 0.0
    %949 = vmatmul.mubr.f32.gmra.mrb[0].mxu0 %v882
    %v950 = vpop.f32.mrb[0].mxu0
    %v951 = vadd.f32 0.0, %v950
    %v952 = vpop.f32.mrb[0].mxu0
    %953 = vdwg.mxu0
    %v954 = vadd.f32 %v796, %v951
    %s955 = scalar_lea.vmem %s4, 320
    %v956 = vld [vmem:[%s955] sm:$0xff]
    %v957 = vld [vmem:[%s955 + $0x8] sm:$0xff]
    %v958 = vld [vmem:[%s955 + $0x10] sm:$0xff]
    %v959 = vld [vmem:[%s955 + $0x18] sm:$0xff]
    %v960 = vld [vmem:[%s955 + $0x20] sm:$0xff]
    %v961 = vld [vmem:[%s955 + $0x28] sm:$0xff]
    %v962 = vld [vmem:[%s955 + $0x30] sm:$0xff]
    %v963 = vld [vmem:[%s955 + $0x38] sm:$0xff]
    %v964 = vrot.slane %v162, 5
    %v965 = vsel %vm173, %v964, 0
    %967 = vmatprep.subr.mxu0 0.0
    %968 = vmatpush1.msra.mxu0 %v956
    %969 = vmatprep.subr.mxu0 0.0
    %970 = vmatpush1.msra.mxu0 %v957
    %971 = vmatprep.subr.mxu0 0.0
    %972 = vmatpush1.msra.mxu0 %v958
    %973 = vmatprep.subr.mxu0 0.0
    %974 = vmatpush1.msra.mxu0 %v959
    %975 = vmatprep.subr.mxu0 0.0
    %976 = vmatpush1.msra.mxu0 %v960
    %977 = vmatprep.subr.mxu0 0.0
    %978 = vmatpush1.msra.mxu0 %v961
    %979 = vmatprep.subr.mxu0 0.0
    %980 = vmatpush1.msra.mxu0 %v962
    %981 = vmatprep.subr.mxu0 0.0
    %982 = vmatpush1.msra.mxu0 %v963
    %983 = vmatprep.subr.mxu0 0.0
    %984 = vmatpush1.msra.mxu0 0.0
    %985 = vmatprep.subr.mxu0 0.0
    %986 = vmatpush1.msra.mxu0 0.0
    %987 = vmatprep.subr.mxu0 0.0
    %988 = vmatpush1.msra.mxu0 0.0
    %989 = vmatprep.subr.mxu0 0.0
    %990 = vmatpush1.msra.mxu0 0.0
    %991 = vmatprep.subr.mxu0 0.0
    %992 = vmatpush1.msra.mxu0 0.0
    %993 = vmatprep.subr.mxu0 0.0
    %994 = vmatpush1.msra.mxu0 0.0
    %995 = vmatprep.subr.mxu0 0.0
    %996 = vmatpush1.msra.mxu0 0.0
    %997 = vmatprep.subr.mxu0 0.0
    %998 = vmatpush1.msra.mxu0 0.0
    %999 = vmatprep.subr.mxu0 0.0
    %1000 = vmatpush1.msra.mxu0 0.0
    %1001 = vmatprep.subr.mxu0 0.0
    %1002 = vmatpush1.msra.mxu0 0.0
    %1003 = vmatprep.subr.mxu0 0.0
    %1004 = vmatpush1.msra.mxu0 0.0
    %1005 = vmatprep.subr.mxu0 0.0
    %1006 = vmatpush1.msra.mxu0 0.0
    %1007 = vmatprep.subr.mxu0 0.0
    %1008 = vmatpush1.msra.mxu0 0.0
    %1009 = vmatprep.subr.mxu0 0.0
    %1010 = vmatpush1.msra.mxu0 0.0
    %1011 = vmatprep.subr.mxu0 0.0
    %1012 = vmatpush1.msra.mxu0 0.0
    %1013 = vmatprep.subr.mxu0 0.0
    %1014 = vmatpush1.msra.mxu0 0.0
    %1015 = vmatprep.subr.mxu0 0.0
    %1016 = vmatpush1.msra.mxu0 0.0
    %1017 = vmatprep.subr.mxu0 0.0
    %1018 = vmatpush1.msra.mxu0 0.0
    %1019 = vmatprep.subr.mxu0 0.0
    %1020 = vmatpush1.msra.mxu0 0.0
    %1021 = vmatprep.subr.mxu0 0.0
    %1022 = vmatpush1.msra.mxu0 0.0
    %1023 = vmatprep.subr.mxu0 0.0
    %1024 = vmatpush1.msra.mxu0 0.0
    %1025 = vmatprep.subr.mxu0 0.0
    %1026 = vmatpush1.msra.mxu0 0.0
    %1027 = vmatprep.subr.mxu0 0.0
    %1028 = vmatpush1.msra.mxu0 0.0
    %1029 = vmatprep.subr.mxu0 0.0
    %1030 = vmatpush1.msra.mxu0 0.0
    %1031 = vmatprep.mubr.f32.mxu0 0.0
    %1032 = vmatmul.mubr.f32.gmra.mrb[0].mxu0 %v965
    %v1033 = vpop.f32.mrb[0].mxu0
    %v1034 = vadd.f32 0.0, %v1033
    %v1035 = vpop.f32.mrb[0].mxu0
    %1036 = vdwg.mxu0
    %v1037 = vadd.f32 %v879, %v1034
    %1038 = vrot.lane.b32.xlu0 %v964, 64
    %v1039 = vpop.permute.xlu0 %1038
    %v1040 = vsel %vm173, %v1039, 0
    %1042 = vmatprep.subr.mxu0 0.0
    %1043 = vmatpush1.msra.mxu0 %v956
    %1044 = vmatprep.subr.mxu0 0.0
    %1045 = vmatpush1.msra.mxu0 %v957
    %1046 = vmatprep.subr.mxu0 0.0
    %1047 = vmatpush1.msra.mxu0 %v958
    %1048 = vmatprep.subr.mxu0 0.0
    %1049 = vmatpush1.msra.mxu0 %v959
    %1050 = vmatprep.subr.mxu0 0.0
    %1051 = vmatpush1.msra.mxu0 %v960
    %1052 = vmatprep.subr.mxu0 0.0
    %1053 = vmatpush1.msra.mxu0 %v961
    %1054 = vmatprep.subr.mxu0 0.0
    %1055 = vmatpush1.msra.mxu0 %v962
    %1056 = vmatprep.subr.mxu0 0.0
    %1057 = vmatpush1.msra.mxu0 %v963
    %1058 = vmatprep.subr.mxu0 0.0
    %1059 = vmatpush1.msra.mxu0 0.0
    %1060 = vmatprep.subr.mxu0 0.0
    %1061 = vmatpush1.msra.mxu0 0.0
    %1062 = vmatprep.subr.mxu0 0.0
    %1063 = vmatpush1.msra.mxu0 0.0
    %1064 = vmatprep.subr.mxu0 0.0
    %1065 = vmatpush1.msra.mxu0 0.0
    %1066 = vmatprep.subr.mxu0 0.0
    %1067 = vmatpush1.msra.mxu0 0.0
    %1068 = vmatprep.subr.mxu0 0.0
    %1069 = vmatpush1.msra.mxu0 0.0
    %1070 = vmatprep.subr.mxu0 0.0
    %1071 = vmatpush1.msra.mxu0 0.0
    %1072 = vmatprep.subr.mxu0 0.0
    %1073 = vmatpush1.msra.mxu0 0.0
    %1074 = vmatprep.subr.mxu0 0.0
    %1075 = vmatpush1.msra.mxu0 0.0
    %1076 = vmatprep.subr.mxu0 0.0
    %1077 = vmatpush1.msra.mxu0 0.0
    %1078 = vmatprep.subr.mxu0 0.0
    %1079 = vmatpush1.msra.mxu0 0.0
    %1080 = vmatprep.subr.mxu0 0.0
    %1081 = vmatpush1.msra.mxu0 0.0
    %1082 = vmatprep.subr.mxu0 0.0
    %1083 = vmatpush1.msra.mxu0 0.0
    %1084 = vmatprep.subr.mxu0 0.0
    %1085 = vmatpush1.msra.mxu0 0.0
    %1086 = vmatprep.subr.mxu0 0.0
    %1087 = vmatpush1.msra.mxu0 0.0
    %1088 = vmatprep.subr.mxu0 0.0
    %1089 = vmatpush1.msra.mxu0 0.0
    %1090 = vmatprep.subr.mxu0 0.0
    %1091 = vmatpush1.msra.mxu0 0.0
    %1092 = vmatprep.subr.mxu0 0.0
    %1093 = vmatpush1.msra.mxu0 0.0
    %1094 = vmatprep.subr.mxu0 0.0
    %1095 = vmatpush1.msra.mxu0 0.0
    %1096 = vmatprep.subr.mxu0 0.0
    %1097 = vmatpush1.msra.mxu0 0.0
    %1098 = vmatprep.subr.mxu0 0.0
    %1099 = vmatpush1.msra.mxu0 0.0
    %1100 = vmatprep.subr.mxu0 0.0
    %1101 = vmatpush1.msra.mxu0 0.0
    %1102 = vmatprep.subr.mxu0 0.0
    %1103 = vmatpush1.msra.mxu0 0.0
    %1104 = vmatprep.subr.mxu0 0.0
    %1105 = vmatpush1.msra.mxu0 0.0
    %1106 = vmatprep.mubr.f32.mxu0 0.0
    %1107 = vmatmul.mubr.f32.gmra.mrb[0].mxu0 %v1040
    %v1108 = vpop.f32.mrb[0].mxu0
    %v1109 = vadd.f32 0.0, %v1108
    %v1110 = vpop.f32.mrb[0].mxu0
    %1111 = vdwg.mxu0
    %v1112 = vadd.f32 %v954, %v1109
    %s1113 = scalar_lea.vmem %s4, 384
    %v1114 = vld [vmem:[%s1113] sm:$0xff]
    %v1115 = vld [vmem:[%s1113 + $0x8] sm:$0xff]
    %v1116 = vld [vmem:[%s1113 + $0x10] sm:$0xff]
    %v1117 = vld [vmem:[%s1113 + $0x18] sm:$0xff]
    %v1118 = vld [vmem:[%s1113 + $0x20] sm:$0xff]
    %v1119 = vld [vmem:[%s1113 + $0x28] sm:$0xff]
    %v1120 = vld [vmem:[%s1113 + $0x30] sm:$0xff]
    %v1121 = vld [vmem:[%s1113 + $0x38] sm:$0xff]
    %v1122 = vrot.slane %v162, 6
    %v1123 = vsel %vm173, %v1122, 0
    %1125 = vmatprep.subr.mxu0 0.0
    %1126 = vmatpush1.msra.mxu0 %v1114
    %1127 = vmatprep.subr.mxu0 0.0
    %1128 = vmatpush1.msra.mxu0 %v1115
    %1129 = vmatprep.subr.mxu0 0.0
    %1130 = vmatpush1.msra.mxu0 %v1116
    %1131 = vmatprep.subr.mxu0 0.0
    %1132 = vmatpush1.msra.mxu0 %v1117
    %1133 = vmatprep.subr.mxu0 0.0
    %1134 = vmatpush1.msra.mxu0 %v1118
    %1135 = vmatprep.subr.mxu0 0.0
    %1136 = vmatpush1.msra.mxu0 %v1119
    %1137 = vmatprep.subr.mxu0 0.0
    %1138 = vmatpush1.msra.mxu0 %v1120
    %1139 = vmatprep.subr.mxu0 0.0
    %1140 = vmatpush1.msra.mxu0 %v1121
    %1141 = vmatprep.subr.mxu0 0.0
    %1142 = vmatpush1.msra.mxu0 0.0
    %1143 = vmatprep.subr.mxu0 0.0
    %1144 = vmatpush1.msra.mxu0 0.0
    %1145 = vmatprep.subr.mxu0 0.0
    %1146 = vmatpush1.msra.mxu0 0.0
    %1147 = vmatprep.subr.mxu0 0.0
    %1148 = vmatpush1.msra.mxu0 0.0
    %1149 = vmatprep.subr.mxu0 0.0
    %1150 = vmatpush1.msra.mxu0 0.0
    %1151 = vmatprep.subr.mxu0 0.0
    %1152 = vmatpush1.msra.mxu0 0.0
    %1153 = vmatprep.subr.mxu0 0.0
    %1154 = vmatpush1.msra.mxu0 0.0
    %1155 = vmatprep.subr.mxu0 0.0
    %1156 = vmatpush1.msra.mxu0 0.0
    %1157 = vmatprep.subr.mxu0 0.0
    %1158 = vmatpush1.msra.mxu0 0.0
    %1159 = vmatprep.subr.mxu0 0.0
    %1160 = vmatpush1.msra.mxu0 0.0
    %1161 = vmatprep.subr.mxu0 0.0
    %1162 = vmatpush1.msra.mxu0 0.0
    %1163 = vmatprep.subr.mxu0 0.0
    %1164 = vmatpush1.msra.mxu0 0.0
    %1165 = vmatprep.subr.mxu0 0.0
    %1166 = vmatpush1.msra.mxu0 0.0
    %1167 = vmatprep.subr.mxu0 0.0
    %1168 = vmatpush1.msra.mxu0 0.0
    %1169 = vmatprep.subr.mxu0 0.0
    %1170 = vmatpush1.msra.mxu0 0.0
    %1171 = vmatprep.subr.mxu0 0.0
    %1172 = vmatpush1.msra.mxu0 0.0
    %1173 = vmatprep.subr.mxu0 0.0
    %1174 = vmatpush1.msra.mxu0 0.0
    %1175 = vmatprep.subr.mxu0 0.0
    %1176 = vmatpush1.msra.mxu0 0.0
    %1177 = vmatprep.subr.mxu0 0.0
    %1178 = vmatpush1.msra.mxu0 0.0
    %1179 = vmatprep.subr.mxu0 0.0
    %1180 = vmatpush1.msra.mxu0 0.0
    %1181 = vmatprep.subr.mxu0 0.0
    %1182 = vmatpush1.msra.mxu0 0.0
    %1183 = vmatprep.subr.mxu0 0.0
    %1184 = vmatpush1.msra.mxu0 0.0
    %1185 = vmatprep.subr.mxu0 0.0
    %1186 = vmatpush1.msra.mxu0 0.0
    %1187 = vmatprep.subr.mxu0 0.0
    %1188 = vmatpush1.msra.mxu0 0.0
    %1189 = vmatprep.mubr.f32.mxu0 0.0
    %1190 = vmatmul.mubr.f32.gmra.mrb[0].mxu0 %v1123
    %v1191 = vpop.f32.mrb[0].mxu0
    %v1192 = vadd.f32 0.0, %v1191
    %v1193 = vpop.f32.mrb[0].mxu0
    %1194 = vdwg.mxu0
    %v1195 = vadd.f32 %v1037, %v1192
    %1196 = vrot.lane.b32.xlu0 %v1122, 64
    %v1197 = vpop.permute.xlu0 %1196
    %v1198 = vsel %vm173, %v1197, 0
    %1200 = vmatprep.subr.mxu0 0.0
    %1201 = vmatpush1.msra.mxu0 %v1114
    %1202 = vmatprep.subr.mxu0 0.0
    %1203 = vmatpush1.msra.mxu0 %v1115
    %1204 = vmatprep.subr.mxu0 0.0
    %1205 = vmatpush1.msra.mxu0 %v1116
    %1206 = vmatprep.subr.mxu0 0.0
    %1207 = vmatpush1.msra.mxu0 %v1117
    %1208 = vmatprep.subr.mxu0 0.0
    %1209 = vmatpush1.msra.mxu0 %v1118
    %1210 = vmatprep.subr.mxu0 0.0
    %1211 = vmatpush1.msra.mxu0 %v1119
    %1212 = vmatprep.subr.mxu0 0.0
    %1213 = vmatpush1.msra.mxu0 %v1120
    %1214 = vmatprep.subr.mxu0 0.0
    %1215 = vmatpush1.msra.mxu0 %v1121
    %1216 = vmatprep.subr.mxu0 0.0
    %1217 = vmatpush1.msra.mxu0 0.0
    %1218 = vmatprep.subr.mxu0 0.0
    %1219 = vmatpush1.msra.mxu0 0.0
    %1220 = vmatprep.subr.mxu0 0.0
    %1221 = vmatpush1.msra.mxu0 0.0
    %1222 = vmatprep.subr.mxu0 0.0
    %1223 = vmatpush1.msra.mxu0 0.0
    %1224 = vmatprep.subr.mxu0 0.0
    %1225 = vmatpush1.msra.mxu0 0.0
    %1226 = vmatprep.subr.mxu0 0.0
    %1227 = vmatpush1.msra.mxu0 0.0
    %1228 = vmatprep.subr.mxu0 0.0
    %1229 = vmatpush1.msra.mxu0 0.0
    %1230 = vmatprep.subr.mxu0 0.0
    %1231 = vmatpush1.msra.mxu0 0.0
    %1232 = vmatprep.subr.mxu0 0.0
    %1233 = vmatpush1.msra.mxu0 0.0
    %1234 = vmatprep.subr.mxu0 0.0
    %1235 = vmatpush1.msra.mxu0 0.0
    %1236 = vmatprep.subr.mxu0 0.0
    %1237 = vmatpush1.msra.mxu0 0.0
    %1238 = vmatprep.subr.mxu0 0.0
    %1239 = vmatpush1.msra.mxu0 0.0
    %1240 = vmatprep.subr.mxu0 0.0
    %1241 = vmatpush1.msra.mxu0 0.0
    %1242 = vmatprep.subr.mxu0 0.0
    %1243 = vmatpush1.msra.mxu0 0.0
    %1244 = vmatprep.subr.mxu0 0.0
    %1245 = vmatpush1.msra.mxu0 0.0
    %1246 = vmatprep.subr.mxu0 0.0
    %1247 = vmatpush1.msra.mxu0 0.0
    %1248 = vmatprep.subr.mxu0 0.0
    %1249 = vmatpush1.msra.mxu0 0.0
    %1250 = vmatprep.subr.mxu0 0.0
    %1251 = vmatpush1.msra.mxu0 0.0
    %1252 = vmatprep.subr.mxu0 0.0
    %1253 = vmatpush1.msra.mxu0 0.0
    %1254 = vmatprep.subr.mxu0 0.0
    %1255 = vmatpush1.msra.mxu0 0.0
    %1256 = vmatprep.subr.mxu0 0.0
    %1257 = vmatpush1.msra.mxu0 0.0
    %1258 = vmatprep.subr.mxu0 0.0
    %1259 = vmatpush1.msra.mxu0 0.0
    %1260 = vmatprep.subr.mxu0 0.0
    %1261 = vmatpush1.msra.mxu0 0.0
    %1262 = vmatprep.subr.mxu0 0.0
    %1263 = vmatpush1.msra.mxu0 0.0
    %1264 = vmatprep.mubr.f32.mxu0 0.0
    %1265 = vmatmul.mubr.f32.gmra.mrb[0].mxu0 %v1198
    %v1266 = vpop.f32.mrb[0].mxu0
    %v1267 = vadd.f32 0.0, %v1266
    %v1268 = vpop.f32.mrb[0].mxu0
    %1269 = vdwg.mxu0
    %v1270 = vadd.f32 %v1112, %v1267
    %s1271 = scalar_lea.vmem %s4, 448
    %v1272 = vld [vmem:[%s1271] sm:$0xff]
    %v1273 = vld [vmem:[%s1271 + $0x8] sm:$0xff]
    %v1274 = vld [vmem:[%s1271 + $0x10] sm:$0xff]
    %v1275 = vld [vmem:[%s1271 + $0x18] sm:$0xff]
    %v1276 = vld [vmem:[%s1271 + $0x20] sm:$0xff]
    %v1277 = vld [vmem:[%s1271 + $0x28] sm:$0xff]
    %v1278 = vld [vmem:[%s1271 + $0x30] sm:$0xff]
    %v1279 = vld [vmem:[%s1271 + $0x38] sm:$0xff]
    %v1280 = vrot.slane %v162, 7
    %v1281 = vsel %vm173, %v1280, 0
    %1283 = vmatprep.subr.mxu0 0.0
    %1284 = vmatpush1.msra.mxu0 %v1272
    %1285 = vmatprep.subr.mxu0 0.0
    %1286 = vmatpush1.msra.mxu0 %v1273
    %1287 = vmatprep.subr.mxu0 0.0
    %1288 = vmatpush1.msra.mxu0 %v1274
    %1289 = vmatprep.subr.mxu0 0.0
    %1290 = vmatpush1.msra.mxu0 %v1275
    %1291 = vmatprep.subr.mxu0 0.0
    %1292 = vmatpush1.msra.mxu0 %v1276
    %1293 = vmatprep.subr.mxu0 0.0
    %1294 = vmatpush1.msra.mxu0 %v1277
    %1295 = vmatprep.subr.mxu0 0.0
    %1296 = vmatpush1.msra.mxu0 %v1278
    %1297 = vmatprep.subr.mxu0 0.0
    %1298 = vmatpush1.msra.mxu0 %v1279
    %1299 = vmatprep.subr.mxu0 0.0
    %1300 = vmatpush1.msra.mxu0 0.0
    %1301 = vmatprep.subr.mxu0 0.0
    %1302 = vmatpush1.msra.mxu0 0.0
    %1303 = vmatprep.subr.mxu0 0.0
    %1304 = vmatpush1.msra.mxu0 0.0
    %1305 = vmatprep.subr.mxu0 0.0
    %1306 = vmatpush1.msra.mxu0 0.0
    %1307 = vmatprep.subr.mxu0 0.0
    %1308 = vmatpush1.msra.mxu0 0.0
    %1309 = vmatprep.subr.mxu0 0.0
    %1310 = vmatpush1.msra.mxu0 0.0
    %1311 = vmatprep.subr.mxu0 0.0
    %1312 = vmatpush1.msra.mxu0 0.0
    %1313 = vmatprep.subr.mxu0 0.0
    %1314 = vmatpush1.msra.mxu0 0.0
    %1315 = vmatprep.subr.mxu0 0.0
    %1316 = vmatpush1.msra.mxu0 0.0
    %1317 = vmatprep.subr.mxu0 0.0
    %1318 = vmatpush1.msra.mxu0 0.0
    %1319 = vmatprep.subr.mxu0 0.0
    %1320 = vmatpush1.msra.mxu0 0.0
    %1321 = vmatprep.subr.mxu0 0.0
    %1322 = vmatpush1.msra.mxu0 0.0
    %1323 = vmatprep.subr.mxu0 0.0
    %1324 = vmatpush1.msra.mxu0 0.0
    %1325 = vmatprep.subr.mxu0 0.0
    %1326 = vmatpush1.msra.mxu0 0.0
    %1327 = vmatprep.subr.mxu0 0.0
    %1328 = vmatpush1.msra.mxu0 0.0
    %1329 = vmatprep.subr.mxu0 0.0
    %1330 = vmatpush1.msra.mxu0 0.0
    %1331 = vmatprep.subr.mxu0 0.0
    %1332 = vmatpush1.msra.mxu0 0.0
    %1333 = vmatprep.subr.mxu0 0.0
    %1334 = vmatpush1.msra.mxu0 0.0
    %1335 = vmatprep.subr.mxu0 0.0
    %1336 = vmatpush1.msra.mxu0 0.0
    %1337 = vmatprep.subr.mxu0 0.0
    %1338 = vmatpush1.msra.mxu0 0.0
    %1339 = vmatprep.subr.mxu0 0.0
    %1340 = vmatpush1.msra.mxu0 0.0
    %1341 = vmatprep.subr.mxu0 0.0
    %1342 = vmatpush1.msra.mxu0 0.0
    %1343 = vmatprep.subr.mxu0 0.0
    %1344 = vmatpush1.msra.mxu0 0.0
    %1345 = vmatprep.subr.mxu0 0.0
    %1346 = vmatpush1.msra.mxu0 0.0
    %1347 = vmatprep.mubr.f32.mxu0 0.0
    %1348 = vmatmul.mubr.f32.gmra.mrb[0].mxu0 %v1281
    %v1349 = vpop.f32.mrb[0].mxu0
    %v1350 = vadd.f32 0.0, %v1349
    %v1351 = vpop.f32.mrb[0].mxu0
    %1352 = vdwg.mxu0
    %v1353 = vadd.f32 %v1195, %v1350
    %1354 = vrot.lane.b32.xlu0 %v1280, 64
    %v1355 = vpop.permute.xlu0 %1354
    %v1356 = vsel %vm173, %v1355, 0
    %1358 = vmatprep.subr.mxu0 0.0
    %1359 = vmatpush1.msra.mxu0 %v1272
    %1360 = vmatprep.subr.mxu0 0.0
    %1361 = vmatpush1.msra.mxu0 %v1273
    %1362 = vmatprep.subr.mxu0 0.0
    %1363 = vmatpush1.msra.mxu0 %v1274
    %1364 = vmatprep.subr.mxu0 0.0
    %1365 = vmatpush1.msra.mxu0 %v1275
    %1366 = vmatprep.subr.mxu0 0.0
    %1367 = vmatpush1.msra.mxu0 %v1276
    %1368 = vmatprep.subr.mxu0 0.0
    %1369 = vmatpush1.msra.mxu0 %v1277
    %1370 = vmatprep.subr.mxu0 0.0
    %1371 = vmatpush1.msra.mxu0 %v1278
    %1372 = vmatprep.subr.mxu0 0.0
    %1373 = vmatpush1.msra.mxu0 %v1279
    %1374 = vmatprep.subr.mxu0 0.0
    %1375 = vmatpush1.msra.mxu0 0.0
    %1376 = vmatprep.subr.mxu0 0.0
    %1377 = vmatpush1.msra.mxu0 0.0
    %1378 = vmatprep.subr.mxu0 0.0
    %1379 = vmatpush1.msra.mxu0 0.0
    %1380 = vmatprep.subr.mxu0 0.0
    %1381 = vmatpush1.msra.mxu0 0.0
    %1382 = vmatprep.subr.mxu0 0.0
    %1383 = vmatpush1.msra.mxu0 0.0
    %1384 = vmatprep.subr.mxu0 0.0
    %1385 = vmatpush1.msra.mxu0 0.0
    %1386 = vmatprep.subr.mxu0 0.0
    %1387 = vmatpush1.msra.mxu0 0.0
    %1388 = vmatprep.subr.mxu0 0.0
    %1389 = vmatpush1.msra.mxu0 0.0
    %1390 = vmatprep.subr.mxu0 0.0
    %1391 = vmatpush1.msra.mxu0 0.0
    %1392 = vmatprep.subr.mxu0 0.0
    %1393 = vmatpush1.msra.mxu0 0.0
    %1394 = vmatprep.subr.mxu0 0.0
    %1395 = vmatpush1.msra.mxu0 0.0
    %1396 = vmatprep.subr.mxu0 0.0
    %1397 = vmatpush1.msra.mxu0 0.0
    %1398 = vmatprep.subr.mxu0 0.0
    %1399 = vmatpush1.msra.mxu0 0.0
    %1400 = vmatprep.subr.mxu0 0.0
    %1401 = vmatpush1.msra.mxu0 0.0
    %1402 = vmatprep.subr.mxu0 0.0
    %1403 = vmatpush1.msra.mxu0 0.0
    %1404 = vmatprep.subr.mxu0 0.0
    %1405 = vmatpush1.msra.mxu0 0.0
    %1406 = vmatprep.subr.mxu0 0.0
    %1407 = vmatpush1.msra.mxu0 0.0
    %1408 = vmatprep.subr.mxu0 0.0
    %1409 = vmatpush1.msra.mxu0 0.0
    %1410 = vmatprep.subr.mxu0 0.0
    %1411 = vmatpush1.msra.mxu0 0.0
    %1412 = vmatprep.subr.mxu0 0.0
    %1413 = vmatpush1.msra.mxu0 0.0
    %1414 = vmatprep.subr.mxu0 0.0
    %1415 = vmatpush1.msra.mxu0 0.0
    %1416 = vmatprep.subr.mxu0 0.0
    %1417 = vmatpush1.msra.mxu0 0.0
    %1418 = vmatprep.subr.mxu0 0.0
    %1419 = vmatpush1.msra.mxu0 0.0
    %1420 = vmatprep.subr.mxu0 0.0
    %1421 = vmatpush1.msra.mxu0 0.0
    %1422 = vmatprep.mubr.f32.mxu0 0.0
    %1423 = vmatmul.mubr.f32.gmra.mrb[0].mxu0 %v1356
    %v1424 = vpop.f32.mrb[0].mxu0
    %v1425 = vadd.f32 0.0, %v1424
    %v1426 = vpop.f32.mrb[0].mxu0
    %1427 = vdwg.mxu0
    %v1428 = vadd.f32 %v1270, %v1425
    %s1429 = scalar_lea.vmem %s4, 512
    %v1430 = vld [vmem:[%s1429] sm:$0xff]
    %v1431 = vld [vmem:[%s1429 + $0x8] sm:$0xff]
    %v1432 = vld [vmem:[%s1429 + $0x10] sm:$0xff]
    %v1433 = vld [vmem:[%s1429 + $0x18] sm:$0xff]
    %v1434 = vld [vmem:[%s1429 + $0x20] sm:$0xff]
    %v1435 = vld [vmem:[%s1429 + $0x28] sm:$0xff]
    %v1436 = vld [vmem:[%s1429 + $0x30] sm:$0xff]
    %v1437 = vld [vmem:[%s1429 + $0x38] sm:$0xff]
    %v1439 = vsel %vm173, %v163, 0
    %1441 = vmatprep.subr.mxu0 0.0
    %1442 = vmatpush1.msra.mxu0 %v1430
    %1443 = vmatprep.subr.mxu0 0.0
    %1444 = vmatpush1.msra.mxu0 %v1431
    %1445 = vmatprep.subr.mxu0 0.0
    %1446 = vmatpush1.msra.mxu0 %v1432
    %1447 = vmatprep.subr.mxu0 0.0
    %1448 = vmatpush1.msra.mxu0 %v1433
    %1449 = vmatprep.subr.mxu0 0.0
    %1450 = vmatpush1.msra.mxu0 %v1434
    %1451 = vmatprep.subr.mxu0 0.0
    %1452 = vmatpush1.msra.mxu0 %v1435
    %1453 = vmatprep.subr.mxu0 0.0
    %1454 = vmatpush1.msra.mxu0 %v1436
    %1455 = vmatprep.subr.mxu0 0.0
    %1456 = vmatpush1.msra.mxu0 %v1437
    %1457 = vmatprep.subr.mxu0 0.0
    %1458 = vmatpush1.msra.mxu0 0.0
    %1459 = vmatprep.subr.mxu0 0.0
    %1460 = vmatpush1.msra.mxu0 0.0
    %1461 = vmatprep.subr.mxu0 0.0
    %1462 = vmatpush1.msra.mxu0 0.0
    %1463 = vmatprep.subr.mxu0 0.0
    %1464 = vmatpush1.msra.mxu0 0.0
    %1465 = vmatprep.subr.mxu0 0.0
    %1466 = vmatpush1.msra.mxu0 0.0
    %1467 = vmatprep.subr.mxu0 0.0
    %1468 = vmatpush1.msra.mxu0 0.0
    %1469 = vmatprep.subr.mxu0 0.0
    %1470 = vmatpush1.msra.mxu0 0.0
    %1471 = vmatprep.subr.mxu0 0.0
    %1472 = vmatpush1.msra.mxu0 0.0
    %1473 = vmatprep.subr.mxu0 0.0
    %1474 = vmatpush1.msra.mxu0 0.0
    %1475 = vmatprep.subr.mxu0 0.0
    %1476 = vmatpush1.msra.mxu0 0.0
    %1477 = vmatprep.subr.mxu0 0.0
    %1478 = vmatpush1.msra.mxu0 0.0
    %1479 = vmatprep.subr.mxu0 0.0
    %1480 = vmatpush1.msra.mxu0 0.0
    %1481 = vmatprep.subr.mxu0 0.0
    %1482 = vmatpush1.msra.mxu0 0.0
    %1483 = vmatprep.subr.mxu0 0.0
    %1484 = vmatpush1.msra.mxu0 0.0
    %1485 = vmatprep.subr.mxu0 0.0
    %1486 = vmatpush1.msra.mxu0 0.0
    %1487 = vmatprep.subr.mxu0 0.0
    %1488 = vmatpush1.msra.mxu0 0.0
    %1489 = vmatprep.subr.mxu0 0.0
    %1490 = vmatpush1.msra.mxu0 0.0
    %1491 = vmatprep.subr.mxu0 0.0
    %1492 = vmatpush1.msra.mxu0 0.0
    %1493 = vmatprep.subr.mxu0 0.0
    %1494 = vmatpush1.msra.mxu0 0.0
    %1495 = vmatprep.subr.mxu0 0.0
    %1496 = vmatpush1.msra.mxu0 0.0
    %1497 = vmatprep.subr.mxu0 0.0
    %1498 = vmatpush1.msra.mxu0 0.0
    %1499 = vmatprep.subr.mxu0 0.0
    %1500 = vmatpush1.msra.mxu0 0.0
    %1501 = vmatprep.subr.mxu0 0.0
    %1502 = vmatpush1.msra.mxu0 0.0
    %1503 = vmatprep.subr.mxu0 0.0
    %1504 = vmatpush1.msra.mxu0 0.0
    %1505 = vmatprep.mubr.f32.mxu0 0.0
    %1506 = vmatmul.mubr.f32.gmra.mrb[0].mxu0 %v1439
    %v1507 = vpop.f32.mrb[0].mxu0
    %v1508 = vadd.f32 0.0, %v1507
    %v1509 = vpop.f32.mrb[0].mxu0
    %1510 = vdwg.mxu0
    %v1511 = vadd.f32 %v1353, %v1508
    %1512 = vrot.lane.b32.xlu0 %v163, 64
    %v1513 = vpop.permute.xlu0 %1512
    %v1514 = vsel %vm173, %v1513, 0
    %1516 = vmatprep.subr.mxu0 0.0
    %1517 = vmatpush1.msra.mxu0 %v1430
    %1518 = vmatprep.subr.mxu0 0.0
    %1519 = vmatpush1.msra.mxu0 %v1431
    %1520 = vmatprep.subr.mxu0 0.0
    %1521 = vmatpush1.msra.mxu0 %v1432
    %1522 = vmatprep.subr.mxu0 0.0
    %1523 = vmatpush1.msra.mxu0 %v1433
    %1524 = vmatprep.subr.mxu0 0.0
    %1525 = vmatpush1.msra.mxu0 %v1434
    %1526 = vmatprep.subr.mxu0 0.0
    %1527 = vmatpush1.msra.mxu0 %v1435
    %1528 = vmatprep.subr.mxu0 0.0
    %1529 = vmatpush1.msra.mxu0 %v1436
    %1530 = vmatprep.subr.mxu0 0.0
    %1531 = vmatpush1.msra.mxu0 %v1437
    %1532 = vmatprep.subr.mxu0 0.0
    %1533 = vmatpush1.msra.mxu0 0.0
    %1534 = vmatprep.subr.mxu0 0.0
    %1535 = vmatpush1.msra.mxu0 0.0
    %1536 = vmatprep.subr.mxu0 0.0
    %1537 = vmatpush1.msra.mxu0 0.0
    %1538 = vmatprep.subr.mxu0 0.0
    %1539 = vmatpush1.msra.mxu0 0.0
    %1540 = vmatprep.subr.mxu0 0.0
    %1541 = vmatpush1.msra.mxu0 0.0
    %1542 = vmatprep.subr.mxu0 0.0
    %1543 = vmatpush1.msra.mxu0 0.0
    %1544 = vmatprep.subr.mxu0 0.0
    %1545 = vmatpush1.msra.mxu0 0.0
    %1546 = vmatprep.subr.mxu0 0.0
    %1547 = vmatpush1.msra.mxu0 0.0
    %1548 = vmatprep.subr.mxu0 0.0
    %1549 = vmatpush1.msra.mxu0 0.0
    %1550 = vmatprep.subr.mxu0 0.0
    %1551 = vmatpush1.msra.mxu0 0.0
    %1552 = vmatprep.subr.mxu0 0.0
    %1553 = vmatpush1.msra.mxu0 0.0
    %1554 = vmatprep.subr.mxu0 0.0
    %1555 = vmatpush1.msra.mxu0 0.0
    %1556 = vmatprep.subr.mxu0 0.0
    %1557 = vmatpush1.msra.mxu0 0.0
    %1558 = vmatprep.subr.mxu0 0.0
    %1559 = vmatpush1.msra.mxu0 0.0
    %1560 = vmatprep.subr.mxu0 0.0
    %1561 = vmatpush1.msra.mxu0 0.0
    %1562 = vmatprep.subr.mxu0 0.0
    %1563 = vmatpush1.msra.mxu0 0.0
    %1564 = vmatprep.subr.mxu0 0.0
    %1565 = vmatpush1.msra.mxu0 0.0
    %1566 = vmatprep.subr.mxu0 0.0
    %1567 = vmatpush1.msra.mxu0 0.0
    %1568 = vmatprep.subr.mxu0 0.0
    %1569 = vmatpush1.msra.mxu0 0.0
    %1570 = vmatprep.subr.mxu0 0.0
    %1571 = vmatpush1.msra.mxu0 0.0
    %1572 = vmatprep.subr.mxu0 0.0
    %1573 = vmatpush1.msra.mxu0 0.0
    %1574 = vmatprep.subr.mxu0 0.0
    %1575 = vmatpush1.msra.mxu0 0.0
    %1576 = vmatprep.subr.mxu0 0.0
    %1577 = vmatpush1.msra.mxu0 0.0
    %1578 = vmatprep.subr.mxu0 0.0
    %1579 = vmatpush1.msra.mxu0 0.0
    %1580 = vmatprep.mubr.f32.mxu0 0.0
    %1581 = vmatmul.mubr.f32.gmra.mrb[0].mxu0 %v1514
    %v1582 = vpop.f32.mrb[0].mxu0
    %v1583 = vadd.f32 0.0, %v1582
    %v1584 = vpop.f32.mrb[0].mxu0
    %1585 = vdwg.mxu0
    %v1586 = vadd.f32 %v1428, %v1583
    %s1587 = scalar_lea.vmem %s4, 576
    %v1588 = vld [vmem:[%s1587] sm:$0xff]
    %v1589 = vld [vmem:[%s1587 + $0x8] sm:$0xff]
    %v1590 = vld [vmem:[%s1587 + $0x10] sm:$0xff]
    %v1591 = vld [vmem:[%s1587 + $0x18] sm:$0xff]
    %v1592 = vld [vmem:[%s1587 + $0x20] sm:$0xff]
    %v1593 = vld [vmem:[%s1587 + $0x28] sm:$0xff]
    %v1594 = vld [vmem:[%s1587 + $0x30] sm:$0xff]
    %v1595 = vld [vmem:[%s1587 + $0x38] sm:$0xff]
    %v1596 = vrot.slane %v163, 1
    %v1597 = vsel %vm173, %v1596, 0
    %1599 = vmatprep.subr.mxu0 0.0
    %1600 = vmatpush1.msra.mxu0 %v1588
    %1601 = vmatprep.subr.mxu0 0.0
    %1602 = vmatpush1.msra.mxu0 %v1589
    %1603 = vmatprep.subr.mxu0 0.0
    %1604 = vmatpush1.msra.mxu0 %v1590
    %1605 = vmatprep.subr.mxu0 0.0
    %1606 = vmatpush1.msra.mxu0 %v1591
    %1607 = vmatprep.subr.mxu0 0.0
    %1608 = vmatpush1.msra.mxu0 %v1592
    %1609 = vmatprep.subr.mxu0 0.0
    %1610 = vmatpush1.msra.mxu0 %v1593
    %1611 = vmatprep.subr.mxu0 0.0
    %1612 = vmatpush1.msra.mxu0 %v1594
    %1613 = vmatprep.subr.mxu0 0.0
    %1614 = vmatpush1.msra.mxu0 %v1595
    %1615 = vmatprep.subr.mxu0 0.0
    %1616 = vmatpush1.msra.mxu0 0.0
    %1617 = vmatprep.subr.mxu0 0.0
    %1618 = vmatpush1.msra.mxu0 0.0
    %1619 = vmatprep.subr.mxu0 0.0
    %1620 = vmatpush1.msra.mxu0 0.0
    %1621 = vmatprep.subr.mxu0 0.0
    %1622 = vmatpush1.msra.mxu0 0.0
    %1623 = vmatprep.subr.mxu0 0.0
    %1624 = vmatpush1.msra.mxu0 0.0
    %1625 = vmatprep.subr.mxu0 0.0
    %1626 = vmatpush1.msra.mxu0 0.0
    %1627 = vmatprep.subr.mxu0 0.0
    %1628 = vmatpush1.msra.mxu0 0.0
    %1629 = vmatprep.subr.mxu0 0.0
    %1630 = vmatpush1.msra.mxu0 0.0
    %1631 = vmatprep.subr.mxu0 0.0
    %1632 = vmatpush1.msra.mxu0 0.0
    %1633 = vmatprep.subr.mxu0 0.0
    %1634 = vmatpush1.msra.mxu0 0.0
    %1635 = vmatprep.subr.mxu0 0.0
    %1636 = vmatpush1.msra.mxu0 0.0
    %1637 = vmatprep.subr.mxu0 0.0
    %1638 = vmatpush1.msra.mxu0 0.0
    %1639 = vmatprep.subr.mxu0 0.0
    %1640 = vmatpush1.msra.mxu0 0.0
    %1641 = vmatprep.subr.mxu0 0.0
    %1642 = vmatpush1.msra.mxu0 0.0
    %1643 = vmatprep.subr.mxu0 0.0
    %1644 = vmatpush1.msra.mxu0 0.0
    %1645 = vmatprep.subr.mxu0 0.0
    %1646 = vmatpush1.msra.mxu0 0.0
    %1647 = vmatprep.subr.mxu0 0.0
    %1648 = vmatpush1.msra.mxu0 0.0
    %1649 = vmatprep.subr.mxu0 0.0
    %1650 = vmatpush1.msra.mxu0 0.0
    %1651 = vmatprep.subr.mxu0 0.0
    %1652 = vmatpush1.msra.mxu0 0.0
    %1653 = vmatprep.subr.mxu0 0.0
    %1654 = vmatpush1.msra.mxu0 0.0
    %1655 = vmatprep.subr.mxu0 0.0
    %1656 = vmatpush1.msra.mxu0 0.0
    %1657 = vmatprep.subr.mxu0 0.0
    %1658 = vmatpush1.msra.mxu0 0.0
    %1659 = vmatprep.subr.mxu0 0.0
    %1660 = vmatpush1.msra.mxu0 0.0
    %1661 = vmatprep.subr.mxu0 0.0
    %1662 = vmatpush1.msra.mxu0 0.0
    %1663 = vmatprep.mubr.f32.mxu0 0.0
    %1664 = vmatmul.mubr.f32.gmra.mrb[0].mxu0 %v1597
    %v1665 = vpop.f32.mrb[0].mxu0
    %v1666 = vadd.f32 0.0, %v1665
    %v1667 = vpop.f32.mrb[0].mxu0
    %1668 = vdwg.mxu0
    %v1669 = vadd.f32 %v1511, %v1666
    %1670 = vrot.lane.b32.xlu0 %v1596, 64
    %v1671 = vpop.permute.xlu0 %1670
    %v1672 = vsel %vm173, %v1671, 0
    %1674 = vmatprep.subr.mxu0 0.0
    %1675 = vmatpush1.msra.mxu0 %v1588
    %1676 = vmatprep.subr.mxu0 0.0
    %1677 = vmatpush1.msra.mxu0 %v1589
    %1678 = vmatprep.subr.mxu0 0.0
    %1679 = vmatpush1.msra.mxu0 %v1590
    %1680 = vmatprep.subr.mxu0 0.0
    %1681 = vmatpush1.msra.mxu0 %v1591
    %1682 = vmatprep.subr.mxu0 0.0
    %1683 = vmatpush1.msra.mxu0 %v1592
    %1684 = vmatprep.subr.mxu0 0.0
    %1685 = vmatpush1.msra.mxu0 %v1593
    %1686 = vmatprep.subr.mxu0 0.0
    %1687 = vmatpush1.msra.mxu0 %v1594
    %1688 = vmatprep.subr.mxu0 0.0
    %1689 = vmatpush1.msra.mxu0 %v1595
    %1690 = vmatprep.subr.mxu0 0.0
    %1691 = vmatpush1.msra.mxu0 0.0
    %1692 = vmatprep.subr.mxu0 0.0
    %1693 = vmatpush1.msra.mxu0 0.0
    %1694 = vmatprep.subr.mxu0 0.0
    %1695 = vmatpush1.msra.mxu0 0.0
    %1696 = vmatprep.subr.mxu0 0.0
    %1697 = vmatpush1.msra.mxu0 0.0
    %1698 = vmatprep.subr.mxu0 0.0
    %1699 = vmatpush1.msra.mxu0 0.0
    %1700 = vmatprep.subr.mxu0 0.0
    %1701 = vmatpush1.msra.mxu0 0.0
    %1702 = vmatprep.subr.mxu0 0.0
    %1703 = vmatpush1.msra.mxu0 0.0
    %1704 = vmatprep.subr.mxu0 0.0
    %1705 = vmatpush1.msra.mxu0 0.0
    %1706 = vmatprep.subr.mxu0 0.0
    %1707 = vmatpush1.msra.mxu0 0.0
    %1708 = vmatprep.subr.mxu0 0.0
    %1709 = vmatpush1.msra.mxu0 0.0
    %1710 = vmatprep.subr.mxu0 0.0
    %1711 = vmatpush1.msra.mxu0 0.0
    %1712 = vmatprep.subr.mxu0 0.0
    %1713 = vmatpush1.msra.mxu0 0.0
    %1714 = vmatprep.subr.mxu0 0.0
    %1715 = vmatpush1.msra.mxu0 0.0
    %1716 = vmatprep.subr.mxu0 0.0
    %1717 = vmatpush1.msra.mxu0 0.0
    %1718 = vmatprep.subr.mxu0 0.0
    %1719 = vmatpush1.msra.mxu0 0.0
    %1720 = vmatprep.subr.mxu0 0.0
    %1721 = vmatpush1.msra.mxu0 0.0
    %1722 = vmatprep.subr.mxu0 0.0
    %1723 = vmatpush1.msra.mxu0 0.0
    %1724 = vmatprep.subr.mxu0 0.0
    %1725 = vmatpush1.msra.mxu0 0.0
    %1726 = vmatprep.subr.mxu0 0.0
    %1727 = vmatpush1.msra.mxu0 0.0
    %1728 = vmatprep.subr.mxu0 0.0
    %1729 = vmatpush1.msra.mxu0 0.0
    %1730 = vmatprep.subr.mxu0 0.0
    %1731 = vmatpush1.msra.mxu0 0.0
    %1732 = vmatprep.subr.mxu0 0.0
    %1733 = vmatpush1.msra.mxu0 0.0
    %1734 = vmatprep.subr.mxu0 0.0
    %1735 = vmatpush1.msra.mxu0 0.0
    %1736 = vmatprep.subr.mxu0 0.0
    %1737 = vmatpush1.msra.mxu0 0.0
    %1738 = vmatprep.mubr.f32.mxu0 0.0
    %1739 = vmatmul.mubr.f32.gmra.mrb[0].mxu0 %v1672
    %v1740 = vpop.f32.mrb[0].mxu0
    %v1741 = vadd.f32 0.0, %v1740
    %v1742 = vpop.f32.mrb[0].mxu0
    %1743 = vdwg.mxu0
    %v1744 = vadd.f32 %v1586, %v1741
    %s1745 = scalar_lea.vmem %s4, 640
    %v1746 = vld [vmem:[%s1745] sm:$0xff]
    %v1747 = vld [vmem:[%s1745 + $0x8] sm:$0xff]
    %v1748 = vld [vmem:[%s1745 + $0x10] sm:$0xff]
    %v1749 = vld [vmem:[%s1745 + $0x18] sm:$0xff]
    %v1750 = vld [vmem:[%s1745 + $0x20] sm:$0xff]
    %v1751 = vld [vmem:[%s1745 + $0x28] sm:$0xff]
    %v1752 = vld [vmem:[%s1745 + $0x30] sm:$0xff]
    %v1753 = vld [vmem:[%s1745 + $0x38] sm:$0xff]
    %v1754 = vrot.slane %v163, 2
    %v1755 = vsel %vm173, %v1754, 0
    %1757 = vmatprep.subr.mxu0 0.0
    %1758 = vmatpush1.msra.mxu0 %v1746
    %1759 = vmatprep.subr.mxu0 0.0
    %1760 = vmatpush1.msra.mxu0 %v1747
    %1761 = vmatprep.subr.mxu0 0.0
    %1762 = vmatpush1.msra.mxu0 %v1748
    %1763 = vmatprep.subr.mxu0 0.0
    %1764 = vmatpush1.msra.mxu0 %v1749
    %1765 = vmatprep.subr.mxu0 0.0
    %1766 = vmatpush1.msra.mxu0 %v1750
    %1767 = vmatprep.subr.mxu0 0.0
    %1768 = vmatpush1.msra.mxu0 %v1751
    %1769 = vmatprep.subr.mxu0 0.0
    %1770 = vmatpush1.msra.mxu0 %v1752
    %1771 = vmatprep.subr.mxu0 0.0
    %1772 = vmatpush1.msra.mxu0 %v1753
    %1773 = vmatprep.subr.mxu0 0.0
    %1774 = vmatpush1.msra.mxu0 0.0
    %1775 = vmatprep.subr.mxu0 0.0
    %1776 = vmatpush1.msra.mxu0 0.0
    %1777 = vmatprep.subr.mxu0 0.0
    %1778 = vmatpush1.msra.mxu0 0.0
    %1779 = vmatprep.subr.mxu0 0.0
    %1780 = vmatpush1.msra.mxu0 0.0
    %1781 = vmatprep.subr.mxu0 0.0
    %1782 = vmatpush1.msra.mxu0 0.0
    %1783 = vmatprep.subr.mxu0 0.0
    %1784 = vmatpush1.msra.mxu0 0.0
    %1785 = vmatprep.subr.mxu0 0.0
    %1786 = vmatpush1.msra.mxu0 0.0
    %1787 = vmatprep.subr.mxu0 0.0
    %1788 = vmatpush1.msra.mxu0 0.0
    %1789 = vmatprep.subr.mxu0 0.0
    %1790 = vmatpush1.msra.mxu0 0.0
    %1791 = vmatprep.subr.mxu0 0.0
    %1792 = vmatpush1.msra.mxu0 0.0
    %1793 = vmatprep.subr.mxu0 0.0
    %1794 = vmatpush1.msra.mxu0 0.0
    %1795 = vmatprep.subr.mxu0 0.0
    %1796 = vmatpush1.msra.mxu0 0.0
    %1797 = vmatprep.subr.mxu0 0.0
    %1798 = vmatpush1.msra.mxu0 0.0
    %1799 = vmatprep.subr.mxu0 0.0
    %1800 = vmatpush1.msra.mxu0 0.0
    %1801 = vmatprep.subr.mxu0 0.0
    %1802 = vmatpush1.msra.mxu0 0.0
    %1803 = vmatprep.subr.mxu0 0.0
    %1804 = vmatpush1.msra.mxu0 0.0
    %1805 = vmatprep.subr.mxu0 0.0
    %1806 = vmatpush1.msra.mxu0 0.0
    %1807 = vmatprep.subr.mxu0 0.0
    %1808 = vmatpush1.msra.mxu0 0.0
    %1809 = vmatprep.subr.mxu0 0.0
    %1810 = vmatpush1.msra.mxu0 0.0
    %1811 = vmatprep.subr.mxu0 0.0
    %1812 = vmatpush1.msra.mxu0 0.0
    %1813 = vmatprep.subr.mxu0 0.0
    %1814 = vmatpush1.msra.mxu0 0.0
    %1815 = vmatprep.subr.mxu0 0.0
    %1816 = vmatpush1.msra.mxu0 0.0
    %1817 = vmatprep.subr.mxu0 0.0
    %1818 = vmatpush1.msra.mxu0 0.0
    %1819 = vmatprep.subr.mxu0 0.0
    %1820 = vmatpush1.msra.mxu0 0.0
    %1821 = vmatprep.mubr.f32.mxu0 0.0
    %1822 = vmatmul.mubr.f32.gmra.mrb[0].mxu0 %v1755
    %v1823 = vpop.f32.mrb[0].mxu0
    %v1824 = vadd.f32 0.0, %v1823
    %v1825 = vpop.f32.mrb[0].mxu0
    %1826 = vdwg.mxu0
    %v1827 = vadd.f32 %v1669, %v1824
    %1828 = vrot.lane.b32.xlu0 %v1754, 64
    %v1829 = vpop.permute.xlu0 %1828
    %v1830 = vsel %vm173, %v1829, 0
    %1832 = vmatprep.subr.mxu0 0.0
    %1833 = vmatpush1.msra.mxu0 %v1746
    %1834 = vmatprep.subr.mxu0 0.0
    %1835 = vmatpush1.msra.mxu0 %v1747
    %1836 = vmatprep.subr.mxu0 0.0
    %1837 = vmatpush1.msra.mxu0 %v1748
    %1838 = vmatprep.subr.mxu0 0.0
    %1839 = vmatpush1.msra.mxu0 %v1749
    %1840 = vmatprep.subr.mxu0 0.0
    %1841 = vmatpush1.msra.mxu0 %v1750
    %1842 = vmatprep.subr.mxu0 0.0
    %1843 = vmatpush1.msra.mxu0 %v1751
    %1844 = vmatprep.subr.mxu0 0.0
    %1845 = vmatpush1.msra.mxu0 %v1752
    %1846 = vmatprep.subr.mxu0 0.0
    %1847 = vmatpush1.msra.mxu0 %v1753
    %1848 = vmatprep.subr.mxu0 0.0
    %1849 = vmatpush1.msra.mxu0 0.0
    %1850 = vmatprep.subr.mxu0 0.0
    %1851 = vmatpush1.msra.mxu0 0.0
    %1852 = vmatprep.subr.mxu0 0.0
    %1853 = vmatpush1.msra.mxu0 0.0
    %1854 = vmatprep.subr.mxu0 0.0
    %1855 = vmatpush1.msra.mxu0 0.0
    %1856 = vmatprep.subr.mxu0 0.0
    %1857 = vmatpush1.msra.mxu0 0.0
    %1858 = vmatprep.subr.mxu0 0.0
    %1859 = vmatpush1.msra.mxu0 0.0
    %1860 = vmatprep.subr.mxu0 0.0
    %1861 = vmatpush1.msra.mxu0 0.0
    %1862 = vmatprep.subr.mxu0 0.0
    %1863 = vmatpush1.msra.mxu0 0.0
    %1864 = vmatprep.subr.mxu0 0.0
    %1865 = vmatpush1.msra.mxu0 0.0
    %1866 = vmatprep.subr.mxu0 0.0
    %1867 = vmatpush1.msra.mxu0 0.0
    %1868 = vmatprep.subr.mxu0 0.0
    %1869 = vmatpush1.msra.mxu0 0.0
    %1870 = vmatprep.subr.mxu0 0.0
    %1871 = vmatpush1.msra.mxu0 0.0
    %1872 = vmatprep.subr.mxu0 0.0
    %1873 = vmatpush1.msra.mxu0 0.0
    %1874 = vmatprep.subr.mxu0 0.0
    %1875 = vmatpush1.msra.mxu0 0.0
    %1876 = vmatprep.subr.mxu0 0.0
    %1877 = vmatpush1.msra.mxu0 0.0
    %1878 = vmatprep.subr.mxu0 0.0
    %1879 = vmatpush1.msra.mxu0 0.0
    %1880 = vmatprep.subr.mxu0 0.0
    %1881 = vmatpush1.msra.mxu0 0.0
    %1882 = vmatprep.subr.mxu0 0.0
    %1883 = vmatpush1.msra.mxu0 0.0
    %1884 = vmatprep.subr.mxu0 0.0
    %1885 = vmatpush1.msra.mxu0 0.0
    %1886 = vmatprep.subr.mxu0 0.0
    %1887 = vmatpush1.msra.mxu0 0.0
    %1888 = vmatprep.subr.mxu0 0.0
    %1889 = vmatpush1.msra.mxu0 0.0
    %1890 = vmatprep.subr.mxu0 0.0
    %1891 = vmatpush1.msra.mxu0 0.0
    %1892 = vmatprep.subr.mxu0 0.0
    %1893 = vmatpush1.msra.mxu0 0.0
    %1894 = vmatprep.subr.mxu0 0.0
    %1895 = vmatpush1.msra.mxu0 0.0
    %1896 = vmatprep.mubr.f32.mxu0 0.0
    %1897 = vmatmul.mubr.f32.gmra.mrb[0].mxu0 %v1830
    %v1898 = vpop.f32.mrb[0].mxu0
    %v1899 = vadd.f32 0.0, %v1898
    %v1900 = vpop.f32.mrb[0].mxu0
    %1901 = vdwg.mxu0
    %v1902 = vadd.f32 %v1744, %v1899
    %s1903 = scalar_lea.vmem %s4, 704
    %v1904 = vld [vmem:[%s1903] sm:$0xff]
    %v1905 = vld [vmem:[%s1903 + $0x8] sm:$0xff]
    %v1906 = vld [vmem:[%s1903 + $0x10] sm:$0xff]
    %v1907 = vld [vmem:[%s1903 + $0x18] sm:$0xff]
    %v1908 = vld [vmem:[%s1903 + $0x20] sm:$0xff]
    %v1909 = vld [vmem:[%s1903 + $0x28] sm:$0xff]
    %v1910 = vld [vmem:[%s1903 + $0x30] sm:$0xff]
    %v1911 = vld [vmem:[%s1903 + $0x38] sm:$0xff]
    %v1912 = vrot.slane %v163, 3
    %v1913 = vsel %vm173, %v1912, 0
    %1915 = vmatprep.subr.mxu0 0.0
    %1916 = vmatpush1.msra.mxu0 %v1904
    %1917 = vmatprep.subr.mxu0 0.0
    %1918 = vmatpush1.msra.mxu0 %v1905
    %1919 = vmatprep.subr.mxu0 0.0
    %1920 = vmatpush1.msra.mxu0 %v1906
    %1921 = vmatprep.subr.mxu0 0.0
    %1922 = vmatpush1.msra.mxu0 %v1907
    %1923 = vmatprep.subr.mxu0 0.0
    %1924 = vmatpush1.msra.mxu0 %v1908
    %1925 = vmatprep.subr.mxu0 0.0
    %1926 = vmatpush1.msra.mxu0 %v1909
    %1927 = vmatprep.subr.mxu0 0.0
    %1928 = vmatpush1.msra.mxu0 %v1910
    %1929 = vmatprep.subr.mxu0 0.0
    %1930 = vmatpush1.msra.mxu0 %v1911
    %1931 = vmatprep.subr.mxu0 0.0
    %1932 = vmatpush1.msra.mxu0 0.0
    %1933 = vmatprep.subr.mxu0 0.0
    %1934 = vmatpush1.msra.mxu0 0.0
    %1935 = vmatprep.subr.mxu0 0.0
    %1936 = vmatpush1.msra.mxu0 0.0
    %1937 = vmatprep.subr.mxu0 0.0
    %1938 = vmatpush1.msra.mxu0 0.0
    %1939 = vmatprep.subr.mxu0 0.0
    %1940 = vmatpush1.msra.mxu0 0.0
    %1941 = vmatprep.subr.mxu0 0.0
    %1942 = vmatpush1.msra.mxu0 0.0
    %1943 = vmatprep.subr.mxu0 0.0
    %1944 = vmatpush1.msra.mxu0 0.0
    %1945 = vmatprep.subr.mxu0 0.0
    %1946 = vmatpush1.msra.mxu0 0.0
    %1947 = vmatprep.subr.mxu0 0.0
    %1948 = vmatpush1.msra.mxu0 0.0
    %1949 = vmatprep.subr.mxu0 0.0
    %1950 = vmatpush1.msra.mxu0 0.0
    %1951 = vmatprep.subr.mxu0 0.0
    %1952 = vmatpush1.msra.mxu0 0.0
    %1953 = vmatprep.subr.mxu0 0.0
    %1954 = vmatpush1.msra.mxu0 0.0
    %1955 = vmatprep.subr.mxu0 0.0
    %1956 = vmatpush1.msra.mxu0 0.0
    %1957 = vmatprep.subr.mxu0 0.0
    %1958 = vmatpush1.msra.mxu0 0.0
    %1959 = vmatprep.subr.mxu0 0.0
    %1960 = vmatpush1.msra.mxu0 0.0
    %1961 = vmatprep.subr.mxu0 0.0
    %1962 = vmatpush1.msra.mxu0 0.0
    %1963 = vmatprep.subr.mxu0 0.0
    %1964 = vmatpush1.msra.mxu0 0.0
    %1965 = vmatprep.subr.mxu0 0.0
    %1966 = vmatpush1.msra.mxu0 0.0
    %1967 = vmatprep.subr.mxu0 0.0
    %1968 = vmatpush1.msra.mxu0 0.0
    %1969 = vmatprep.subr.mxu0 0.0
    %1970 = vmatpush1.msra.mxu0 0.0
    %1971 = vmatprep.subr.mxu0 0.0
    %1972 = vmatpush1.msra.mxu0 0.0
    %1973 = vmatprep.subr.mxu0 0.0
    %1974 = vmatpush1.msra.mxu0 0.0
    %1975 = vmatprep.subr.mxu0 0.0
    %1976 = vmatpush1.msra.mxu0 0.0
    %1977 = vmatprep.subr.mxu0 0.0
    %1978 = vmatpush1.msra.mxu0 0.0
    %1979 = vmatprep.mubr.f32.mxu0 0.0
    %1980 = vmatmul.mubr.f32.gmra.mrb[0].mxu0 %v1913
    %v1981 = vpop.f32.mrb[0].mxu0
    %v1982 = vadd.f32 0.0, %v1981
    %v1983 = vpop.f32.mrb[0].mxu0
    %1984 = vdwg.mxu0
    %v1985 = vadd.f32 %v1827, %v1982
    %1986 = vrot.lane.b32.xlu0 %v1912, 64
    %v1987 = vpop.permute.xlu0 %1986
    %v1988 = vsel %vm173, %v1987, 0
    %1990 = vmatprep.subr.mxu0 0.0
    %1991 = vmatpush1.msra.mxu0 %v1904
    %1992 = vmatprep.subr.mxu0 0.0
    %1993 = vmatpush1.msra.mxu0 %v1905
    %1994 = vmatprep.subr.mxu0 0.0
    %1995 = vmatpush1.msra.mxu0 %v1906
    %1996 = vmatprep.subr.mxu0 0.0
    %1997 = vmatpush1.msra.mxu0 %v1907
    %1998 = vmatprep.subr.mxu0 0.0
    %1999 = vmatpush1.msra.mxu0 %v1908
    %2000 = vmatprep.subr.mxu0 0.0
    %2001 = vmatpush1.msra.mxu0 %v1909
    %2002 = vmatprep.subr.mxu0 0.0
    %2003 = vmatpush1.msra.mxu0 %v1910
    %2004 = vmatprep.subr.mxu0 0.0
    %2005 = vmatpush1.msra.mxu0 %v1911
    %2006 = vmatprep.subr.mxu0 0.0
    %2007 = vmatpush1.msra.mxu0 0.0
    %2008 = vmatprep.subr.mxu0 0.0
    %2009 = vmatpush1.msra.mxu0 0.0
    %2010 = vmatprep.subr.mxu0 0.0
    %2011 = vmatpush1.msra.mxu0 0.0
    %2012 = vmatprep.subr.mxu0 0.0
    %2013 = vmatpush1.msra.mxu0 0.0
    %2014 = vmatprep.subr.mxu0 0.0
    %2015 = vmatpush1.msra.mxu0 0.0
    %2016 = vmatprep.subr.mxu0 0.0
    %2017 = vmatpush1.msra.mxu0 0.0
    %2018 = vmatprep.subr.mxu0 0.0
    %2019 = vmatpush1.msra.mxu0 0.0
    %2020 = vmatprep.subr.mxu0 0.0
    %2021 = vmatpush1.msra.mxu0 0.0
    %2022 = vmatprep.subr.mxu0 0.0
    %2023 = vmatpush1.msra.mxu0 0.0
    %2024 = vmatprep.subr.mxu0 0.0
    %2025 = vmatpush1.msra.mxu0 0.0
    %2026 = vmatprep.subr.mxu0 0.0
    %2027 = vmatpush1.msra.mxu0 0.0
    %2028 = vmatprep.subr.mxu0 0.0
    %2029 = vmatpush1.msra.mxu0 0.0
    %2030 = vmatprep.subr.mxu0 0.0
    %2031 = vmatpush1.msra.mxu0 0.0
    %2032 = vmatprep.subr.mxu0 0.0
    %2033 = vmatpush1.msra.mxu0 0.0
    %2034 = vmatprep.subr.mxu0 0.0
    %2035 = vmatpush1.msra.mxu0 0.0
    %2036 = vmatprep.subr.mxu0 0.0
    %2037 = vmatpush1.msra.mxu0 0.0
    %2038 = vmatprep.subr.mxu0 0.0
    %2039 = vmatpush1.msra.mxu0 0.0
    %2040 = vmatprep.subr.mxu0 0.0
    %2041 = vmatpush1.msra.mxu0 0.0
    %2042 = vmatprep.subr.mxu0 0.0
    %2043 = vmatpush1.msra.mxu0 0.0
    %2044 = vmatprep.subr.mxu0 0.0
    %2045 = vmatpush1.msra.mxu0 0.0
    %2046 = vmatprep.subr.mxu0 0.0
    %2047 = vmatpush1.msra.mxu0 0.0
    %2048 = vmatprep.subr.mxu0 0.0
    %2049 = vmatpush1.msra.mxu0 0.0
    %2050 = vmatprep.subr.mxu0 0.0
    %2051 = vmatpush1.msra.mxu0 0.0
    %2052 = vmatprep.subr.mxu0 0.0
    %2053 = vmatpush1.msra.mxu0 0.0
    %2054 = vmatprep.mubr.f32.mxu0 0.0
    %2055 = vmatmul.mubr.f32.gmra.mrb[0].mxu0 %v1988
    %v2056 = vpop.f32.mrb[0].mxu0
    %v2057 = vadd.f32 0.0, %v2056
    %v2058 = vpop.f32.mrb[0].mxu0
    %2059 = vdwg.mxu0
    %v2060 = vadd.f32 %v1902, %v2057
    %s2061 = scalar_lea.vmem %s4, 768
    %v2062 = vld [vmem:[%s2061] sm:$0xff]
    %v2063 = vld [vmem:[%s2061 + $0x8] sm:$0xff]
    %v2064 = vld [vmem:[%s2061 + $0x10] sm:$0xff]
    %v2065 = vld [vmem:[%s2061 + $0x18] sm:$0xff]
    %v2066 = vld [vmem:[%s2061 + $0x20] sm:$0xff]
    %v2067 = vld [vmem:[%s2061 + $0x28] sm:$0xff]
    %v2068 = vld [vmem:[%s2061 + $0x30] sm:$0xff]
    %v2069 = vld [vmem:[%s2061 + $0x38] sm:$0xff]
    %v2070 = vrot.slane %v163, 4
    %v2071 = vsel %vm173, %v2070, 0
    %2073 = vmatprep.subr.mxu0 0.0
    %2074 = vmatpush1.msra.mxu0 %v2062
    %2075 = vmatprep.subr.mxu0 0.0
    %2076 = vmatpush1.msra.mxu0 %v2063
    %2077 = vmatprep.subr.mxu0 0.0
    %2078 = vmatpush1.msra.mxu0 %v2064
    %2079 = vmatprep.subr.mxu0 0.0
    %2080 = vmatpush1.msra.mxu0 %v2065
    %2081 = vmatprep.subr.mxu0 0.0
    %2082 = vmatpush1.msra.mxu0 %v2066
    %2083 = vmatprep.subr.mxu0 0.0
    %2084 = vmatpush1.msra.mxu0 %v2067
    %2085 = vmatprep.subr.mxu0 0.0
    %2086 = vmatpush1.msra.mxu0 %v2068
    %2087 = vmatprep.subr.mxu0 0.0
    %2088 = vmatpush1.msra.mxu0 %v2069
    %2089 = vmatprep.subr.mxu0 0.0
    %2090 = vmatpush1.msra.mxu0 0.0
    %2091 = vmatprep.subr.mxu0 0.0
    %2092 = vmatpush1.msra.mxu0 0.0
    %2093 = vmatprep.subr.mxu0 0.0
    %2094 = vmatpush1.msra.mxu0 0.0
    %2095 = vmatprep.subr.mxu0 0.0
    %2096 = vmatpush1.msra.mxu0 0.0
    %2097 = vmatprep.subr.mxu0 0.0
    %2098 = vmatpush1.msra.mxu0 0.0
    %2099 = vmatprep.subr.mxu0 0.0
    %2100 = vmatpush1.msra.mxu0 0.0
    %2101 = vmatprep.subr.mxu0 0.0
    %2102 = vmatpush1.msra.mxu0 0.0
    %2103 = vmatprep.subr.mxu0 0.0
    %2104 = vmatpush1.msra.mxu0 0.0
    %2105 = vmatprep.subr.mxu0 0.0
    %2106 = vmatpush1.msra.mxu0 0.0
    %2107 = vmatprep.subr.mxu0 0.0
    %2108 = vmatpush1.msra.mxu0 0.0
    %2109 = vmatprep.subr.mxu0 0.0
    %2110 = vmatpush1.msra.mxu0 0.0
    %2111 = vmatprep.subr.mxu0 0.0
    %2112 = vmatpush1.msra.mxu0 0.0
    %2113 = vmatprep.subr.mxu0 0.0
    %2114 = vmatpush1.msra.mxu0 0.0
    %2115 = vmatprep.subr.mxu0 0.0
    %2116 = vmatpush1.msra.mxu0 0.0
    %2117 = vmatprep.subr.mxu0 0.0
    %2118 = vmatpush1.msra.mxu0 0.0
    %2119 = vmatprep.subr.mxu0 0.0
    %2120 = vmatpush1.msra.mxu0 0.0
    %2121 = vmatprep.subr.mxu0 0.0
    %2122 = vmatpush1.msra.mxu0 0.0
    %2123 = vmatprep.subr.mxu0 0.0
    %2124 = vmatpush1.msra.mxu0 0.0
    %2125 = vmatprep.subr.mxu0 0.0
    %2126 = vmatpush1.msra.mxu0 0.0
    %2127 = vmatprep.subr.mxu0 0.0
    %2128 = vmatpush1.msra.mxu0 0.0
    %2129 = vmatprep.subr.mxu0 0.0
    %2130 = vmatpush1.msra.mxu0 0.0
    %2131 = vmatprep.subr.mxu0 0.0
    %2132 = vmatpush1.msra.mxu0 0.0
    %2133 = vmatprep.subr.mxu0 0.0
    %2134 = vmatpush1.msra.mxu0 0.0
    %2135 = vmatprep.subr.mxu0 0.0
    %2136 = vmatpush1.msra.mxu0 0.0
    %2137 = vmatprep.mubr.f32.mxu0 0.0
    %2138 = vmatmul.mubr.f32.gmra.mrb[0].mxu0 %v2071
    %v2139 = vpop.f32.mrb[0].mxu0
    %v2140 = vadd.f32 0.0, %v2139
    %v2141 = vpop.f32.mrb[0].mxu0
    %2142 = vdwg.mxu0
    %v2143 = vadd.f32 %v1985, %v2140
    %2144 = vrot.lane.b32.xlu0 %v2070, 64
    %v2145 = vpop.permute.xlu0 %2144
    %v2146 = vsel %vm173, %v2145, 0
    %2148 = vmatprep.subr.mxu0 0.0
    %2149 = vmatpush1.msra.mxu0 %v2062
    %2150 = vmatprep.subr.mxu0 0.0
    %2151 = vmatpush1.msra.mxu0 %v2063
    %2152 = vmatprep.subr.mxu0 0.0
    %2153 = vmatpush1.msra.mxu0 %v2064
    %2154 = vmatprep.subr.mxu0 0.0
    %2155 = vmatpush1.msra.mxu0 %v2065
    %2156 = vmatprep.subr.mxu0 0.0
    %2157 = vmatpush1.msra.mxu0 %v2066
    %2158 = vmatprep.subr.mxu0 0.0
    %2159 = vmatpush1.msra.mxu0 %v2067
    %2160 = vmatprep.subr.mxu0 0.0
    %2161 = vmatpush1.msra.mxu0 %v2068
    %2162 = vmatprep.subr.mxu0 0.0
    %2163 = vmatpush1.msra.mxu0 %v2069
    %2164 = vmatprep.subr.mxu0 0.0
    %2165 = vmatpush1.msra.mxu0 0.0
    %2166 = vmatprep.subr.mxu0 0.0
    %2167 = vmatpush1.msra.mxu0 0.0
    %2168 = vmatprep.subr.mxu0 0.0
    %2169 = vmatpush1.msra.mxu0 0.0
    %2170 = vmatprep.subr.mxu0 0.0
    %2171 = vmatpush1.msra.mxu0 0.0
    %2172 = vmatprep.subr.mxu0 0.0
    %2173 = vmatpush1.msra.mxu0 0.0
    %2174 = vmatprep.subr.mxu0 0.0
    %2175 = vmatpush1.msra.mxu0 0.0
    %2176 = vmatprep.subr.mxu0 0.0
    %2177 = vmatpush1.msra.mxu0 0.0
    %2178 = vmatprep.subr.mxu0 0.0
    %2179 = vmatpush1.msra.mxu0 0.0
    %2180 = vmatprep.subr.mxu0 0.0
    %2181 = vmatpush1.msra.mxu0 0.0
    %2182 = vmatprep.subr.mxu0 0.0
    %2183 = vmatpush1.msra.mxu0 0.0
    %2184 = vmatprep.subr.mxu0 0.0
    %2185 = vmatpush1.msra.mxu0 0.0
    %2186 = vmatprep.subr.mxu0 0.0
    %2187 = vmatpush1.msra.mxu0 0.0
    %2188 = vmatprep.subr.mxu0 0.0
    %2189 = vmatpush1.msra.mxu0 0.0
    %2190 = vmatprep.subr.mxu0 0.0
    %2191 = vmatpush1.msra.mxu0 0.0
    %2192 = vmatprep.subr.mxu0 0.0
    %2193 = vmatpush1.msra.mxu0 0.0
    %2194 = vmatprep.subr.mxu0 0.0
    %2195 = vmatpush1.msra.mxu0 0.0
    %2196 = vmatprep.subr.mxu0 0.0
    %2197 = vmatpush1.msra.mxu0 0.0
    %2198 = vmatprep.subr.mxu0 0.0
    %2199 = vmatpush1.msra.mxu0 0.0
    %2200 = vmatprep.subr.mxu0 0.0
    %2201 = vmatpush1.msra.mxu0 0.0
    %2202 = vmatprep.subr.mxu0 0.0
    %2203 = vmatpush1.msra.mxu0 0.0
    %2204 = vmatprep.subr.mxu0 0.0
    %2205 = vmatpush1.msra.mxu0 0.0
    %2206 = vmatprep.subr.mxu0 0.0
    %2207 = vmatpush1.msra.mxu0 0.0
    %2208 = vmatprep.subr.mxu0 0.0
    %2209 = vmatpush1.msra.mxu0 0.0
    %2210 = vmatprep.subr.mxu0 0.0
    %2211 = vmatpush1.msra.mxu0 0.0
    %2212 = vmatprep.mubr.f32.mxu0 0.0
    %2213 = vmatmul.mubr.f32.gmra.mrb[0].mxu0 %v2146
    %v2214 = vpop.f32.mrb[0].mxu0
    %v2215 = vadd.f32 0.0, %v2214
    %v2216 = vpop.f32.mrb[0].mxu0
    %2217 = vdwg.mxu0
    %v2218 = vadd.f32 %v2060, %v2215
    %s2219 = scalar_lea.vmem %s4, 832
    %v2220 = vld [vmem:[%s2219] sm:$0xff]
    %v2221 = vld [vmem:[%s2219 + $0x8] sm:$0xff]
    %v2222 = vld [vmem:[%s2219 + $0x10] sm:$0xff]
    %v2223 = vld [vmem:[%s2219 + $0x18] sm:$0xff]
    %v2224 = vld [vmem:[%s2219 + $0x20] sm:$0xff]
    %v2225 = vld [vmem:[%s2219 + $0x28] sm:$0xff]
    %v2226 = vld [vmem:[%s2219 + $0x30] sm:$0xff]
    %v2227 = vld [vmem:[%s2219 + $0x38] sm:$0xff]
    %v2228 = vrot.slane %v163, 5
    %v2229 = vsel %vm173, %v2228, 0
    %2231 = vmatprep.subr.mxu0 0.0
    %2232 = vmatpush1.msra.mxu0 %v2220
    %2233 = vmatprep.subr.mxu0 0.0
    %2234 = vmatpush1.msra.mxu0 %v2221
    %2235 = vmatprep.subr.mxu0 0.0
    %2236 = vmatpush1.msra.mxu0 %v2222
    %2237 = vmatprep.subr.mxu0 0.0
    %2238 = vmatpush1.msra.mxu0 %v2223
    %2239 = vmatprep.subr.mxu0 0.0
    %2240 = vmatpush1.msra.mxu0 %v2224
    %2241 = vmatprep.subr.mxu0 0.0
    %2242 = vmatpush1.msra.mxu0 %v2225
    %2243 = vmatprep.subr.mxu0 0.0
    %2244 = vmatpush1.msra.mxu0 %v2226
    %2245 = vmatprep.subr.mxu0 0.0
    %2246 = vmatpush1.msra.mxu0 %v2227
    %2247 = vmatprep.subr.mxu0 0.0
    %2248 = vmatpush1.msra.mxu0 0.0
    %2249 = vmatprep.subr.mxu0 0.0
    %2250 = vmatpush1.msra.mxu0 0.0
    %2251 = vmatprep.subr.mxu0 0.0
    %2252 = vmatpush1.msra.mxu0 0.0
    %2253 = vmatprep.subr.mxu0 0.0
    %2254 = vmatpush1.msra.mxu0 0.0
    %2255 = vmatprep.subr.mxu0 0.0
    %2256 = vmatpush1.msra.mxu0 0.0
    %2257 = vmatprep.subr.mxu0 0.0
    %2258 = vmatpush1.msra.mxu0 0.0
    %2259 = vmatprep.subr.mxu0 0.0
    %2260 = vmatpush1.msra.mxu0 0.0
    %2261 = vmatprep.subr.mxu0 0.0
    %2262 = vmatpush1.msra.mxu0 0.0
    %2263 = vmatprep.subr.mxu0 0.0
    %2264 = vmatpush1.msra.mxu0 0.0
    %2265 = vmatprep.subr.mxu0 0.0
    %2266 = vmatpush1.msra.mxu0 0.0
    %2267 = vmatprep.subr.mxu0 0.0
    %2268 = vmatpush1.msra.mxu0 0.0
    %2269 = vmatprep.subr.mxu0 0.0
    %2270 = vmatpush1.msra.mxu0 0.0
    %2271 = vmatprep.subr.mxu0 0.0
    %2272 = vmatpush1.msra.mxu0 0.0
    %2273 = vmatprep.subr.mxu0 0.0
    %2274 = vmatpush1.msra.mxu0 0.0
    %2275 = vmatprep.subr.mxu0 0.0
    %2276 = vmatpush1.msra.mxu0 0.0
    %2277 = vmatprep.subr.mxu0 0.0
    %2278 = vmatpush1.msra.mxu0 0.0
    %2279 = vmatprep.subr.mxu0 0.0
    %2280 = vmatpush1.msra.mxu0 0.0
    %2281 = vmatprep.subr.mxu0 0.0
    %2282 = vmatpush1.msra.mxu0 0.0
    %2283 = vmatprep.subr.mxu0 0.0
    %2284 = vmatpush1.msra.mxu0 0.0
    %2285 = vmatprep.subr.mxu0 0.0
    %2286 = vmatpush1.msra.mxu0 0.0
    %2287 = vmatprep.subr.mxu0 0.0
    %2288 = vmatpush1.msra.mxu0 0.0
    %2289 = vmatprep.subr.mxu0 0.0
    %2290 = vmatpush1.msra.mxu0 0.0
    %2291 = vmatprep.subr.mxu0 0.0
    %2292 = vmatpush1.msra.mxu0 0.0
    %2293 = vmatprep.subr.mxu0 0.0
    %2294 = vmatpush1.msra.mxu0 0.0
    %2295 = vmatprep.mubr.f32.mxu0 0.0
    %2296 = vmatmul.mubr.f32.gmra.mrb[0].mxu0 %v2229
    %v2297 = vpop.f32.mrb[0].mxu0
    %v2298 = vadd.f32 0.0, %v2297
    %v2299 = vpop.f32.mrb[0].mxu0
    %2300 = vdwg.mxu0
    %v2301 = vadd.f32 %v2143, %v2298
    %2302 = vrot.lane.b32.xlu0 %v2228, 64
    %v2303 = vpop.permute.xlu0 %2302
    %v2304 = vsel %vm173, %v2303, 0
    %2306 = vmatprep.subr.mxu0 0.0
    %2307 = vmatpush1.msra.mxu0 %v2220
    %2308 = vmatprep.subr.mxu0 0.0
    %2309 = vmatpush1.msra.mxu0 %v2221
    %2310 = vmatprep.subr.mxu0 0.0
    %2311 = vmatpush1.msra.mxu0 %v2222
    %2312 = vmatprep.subr.mxu0 0.0
    %2313 = vmatpush1.msra.mxu0 %v2223
    %2314 = vmatprep.subr.mxu0 0.0
    %2315 = vmatpush1.msra.mxu0 %v2224
    %2316 = vmatprep.subr.mxu0 0.0
    %2317 = vmatpush1.msra.mxu0 %v2225
    %2318 = vmatprep.subr.mxu0 0.0
    %2319 = vmatpush1.msra.mxu0 %v2226
    %2320 = vmatprep.subr.mxu0 0.0
    %2321 = vmatpush1.msra.mxu0 %v2227
    %2322 = vmatprep.subr.mxu0 0.0
    %2323 = vmatpush1.msra.mxu0 0.0
    %2324 = vmatprep.subr.mxu0 0.0
    %2325 = vmatpush1.msra.mxu0 0.0
    %2326 = vmatprep.subr.mxu0 0.0
    %2327 = vmatpush1.msra.mxu0 0.0
    %2328 = vmatprep.subr.mxu0 0.0
    %2329 = vmatpush1.msra.mxu0 0.0
    %2330 = vmatprep.subr.mxu0 0.0
    %2331 = vmatpush1.msra.mxu0 0.0
    %2332 = vmatprep.subr.mxu0 0.0
    %2333 = vmatpush1.msra.mxu0 0.0
    %2334 = vmatprep.subr.mxu0 0.0
    %2335 = vmatpush1.msra.mxu0 0.0
    %2336 = vmatprep.subr.mxu0 0.0
    %2337 = vmatpush1.msra.mxu0 0.0
    %2338 = vmatprep.subr.mxu0 0.0
    %2339 = vmatpush1.msra.mxu0 0.0
    %2340 = vmatprep.subr.mxu0 0.0
    %2341 = vmatpush1.msra.mxu0 0.0
    %2342 = vmatprep.subr.mxu0 0.0
    %2343 = vmatpush1.msra.mxu0 0.0
    %2344 = vmatprep.subr.mxu0 0.0
    %2345 = vmatpush1.msra.mxu0 0.0
    %2346 = vmatprep.subr.mxu0 0.0
    %2347 = vmatpush1.msra.mxu0 0.0
    %2348 = vmatprep.subr.mxu0 0.0
    %2349 = vmatpush1.msra.mxu0 0.0
    %2350 = vmatprep.subr.mxu0 0.0
    %2351 = vmatpush1.msra.mxu0 0.0
    %2352 = vmatprep.subr.mxu0 0.0
    %2353 = vmatpush1.msra.mxu0 0.0
    %2354 = vmatprep.subr.mxu0 0.0
    %2355 = vmatpush1.msra.mxu0 0.0
    %2356 = vmatprep.subr.mxu0 0.0
    %2357 = vmatpush1.msra.mxu0 0.0
    %2358 = vmatprep.subr.mxu0 0.0
    %2359 = vmatpush1.msra.mxu0 0.0
    %2360 = vmatprep.subr.mxu0 0.0
    %2361 = vmatpush1.msra.mxu0 0.0
    %2362 = vmatprep.subr.mxu0 0.0
    %2363 = vmatpush1.msra.mxu0 0.0
    %2364 = vmatprep.subr.mxu0 0.0
    %2365 = vmatpush1.msra.mxu0 0.0
    %2366 = vmatprep.subr.mxu0 0.0
    %2367 = vmatpush1.msra.mxu0 0.0
    %2368 = vmatprep.subr.mxu0 0.0
    %2369 = vmatpush1.msra.mxu0 0.0
    %2370 = vmatprep.mubr.f32.mxu0 0.0
    %2371 = vmatmul.mubr.f32.gmra.mrb[0].mxu0 %v2304
    %v2372 = vpop.f32.mrb[0].mxu0
    %v2373 = vadd.f32 0.0, %v2372
    %v2374 = vpop.f32.mrb[0].mxu0
    %2375 = vdwg.mxu0
    %v2376 = vadd.f32 %v2218, %v2373
    %s2377 = scalar_lea.vmem %s4, 896
    %v2378 = vld [vmem:[%s2377] sm:$0xff]
    %v2379 = vld [vmem:[%s2377 + $0x8] sm:$0xff]
    %v2380 = vld [vmem:[%s2377 + $0x10] sm:$0xff]
    %v2381 = vld [vmem:[%s2377 + $0x18] sm:$0xff]
    %v2382 = vld [vmem:[%s2377 + $0x20] sm:$0xff]
    %v2383 = vld [vmem:[%s2377 + $0x28] sm:$0xff]
    %v2384 = vld [vmem:[%s2377 + $0x30] sm:$0xff]
    %v2385 = vld [vmem:[%s2377 + $0x38] sm:$0xff]
    %v2386 = vrot.slane %v163, 6
    %v2387 = vsel %vm173, %v2386, 0
    %2389 = vmatprep.subr.mxu0 0.0
    %2390 = vmatpush1.msra.mxu0 %v2378
    %2391 = vmatprep.subr.mxu0 0.0
    %2392 = vmatpush1.msra.mxu0 %v2379
    %2393 = vmatprep.subr.mxu0 0.0
    %2394 = vmatpush1.msra.mxu0 %v2380
    %2395 = vmatprep.subr.mxu0 0.0
    %2396 = vmatpush1.msra.mxu0 %v2381
    %2397 = vmatprep.subr.mxu0 0.0
    %2398 = vmatpush1.msra.mxu0 %v2382
    %2399 = vmatprep.subr.mxu0 0.0
    %2400 = vmatpush1.msra.mxu0 %v2383
    %2401 = vmatprep.subr.mxu0 0.0
    %2402 = vmatpush1.msra.mxu0 %v2384
    %2403 = vmatprep.subr.mxu0 0.0
    %2404 = vmatpush1.msra.mxu0 %v2385
    %2405 = vmatprep.subr.mxu0 0.0
    %2406 = vmatpush1.msra.mxu0 0.0
    %2407 = vmatprep.subr.mxu0 0.0
    %2408 = vmatpush1.msra.mxu0 0.0
    %2409 = vmatprep.subr.mxu0 0.0
    %2410 = vmatpush1.msra.mxu0 0.0
    %2411 = vmatprep.subr.mxu0 0.0
    %2412 = vmatpush1.msra.mxu0 0.0
    %2413 = vmatprep.subr.mxu0 0.0
    %2414 = vmatpush1.msra.mxu0 0.0
    %2415 = vmatprep.subr.mxu0 0.0
    %2416 = vmatpush1.msra.mxu0 0.0
    %2417 = vmatprep.subr.mxu0 0.0
    %2418 = vmatpush1.msra.mxu0 0.0
    %2419 = vmatprep.subr.mxu0 0.0
    %2420 = vmatpush1.msra.mxu0 0.0
    %2421 = vmatprep.subr.mxu0 0.0
    %2422 = vmatpush1.msra.mxu0 0.0
    %2423 = vmatprep.subr.mxu0 0.0
    %2424 = vmatpush1.msra.mxu0 0.0
    %2425 = vmatprep.subr.mxu0 0.0
    %2426 = vmatpush1.msra.mxu0 0.0
    %2427 = vmatprep.subr.mxu0 0.0
    %2428 = vmatpush1.msra.mxu0 0.0
    %2429 = vmatprep.subr.mxu0 0.0
    %2430 = vmatpush1.msra.mxu0 0.0
    %2431 = vmatprep.subr.mxu0 0.0
    %2432 = vmatpush1.msra.mxu0 0.0
    %2433 = vmatprep.subr.mxu0 0.0
    %2434 = vmatpush1.msra.mxu0 0.0
    %2435 = vmatprep.subr.mxu0 0.0
    %2436 = vmatpush1.msra.mxu0 0.0
    %2437 = vmatprep.subr.mxu0 0.0
    %2438 = vmatpush1.msra.mxu0 0.0
    %2439 = vmatprep.subr.mxu0 0.0
    %2440 = vmatpush1.msra.mxu0 0.0
    %2441 = vmatprep.subr.mxu0 0.0
    %2442 = vmatpush1.msra.mxu0 0.0
    %2443 = vmatprep.subr.mxu0 0.0
    %2444 = vmatpush1.msra.mxu0 0.0
    %2445 = vmatprep.subr.mxu0 0.0
    %2446 = vmatpush1.msra.mxu0 0.0
    %2447 = vmatprep.subr.mxu0 0.0
    %2448 = vmatpush1.msra.mxu0 0.0
    %2449 = vmatprep.subr.mxu0 0.0
    %2450 = vmatpush1.msra.mxu0 0.0
    %2451 = vmatprep.subr.mxu0 0.0
    %2452 = vmatpush1.msra.mxu0 0.0
    %2453 = vmatprep.mubr.f32.mxu0 0.0
    %2454 = vmatmul.mubr.f32.gmra.mrb[0].mxu0 %v2387
    %v2455 = vpop.f32.mrb[0].mxu0
    %v2456 = vadd.f32 0.0, %v2455
    %v2457 = vpop.f32.mrb[0].mxu0
    %2458 = vdwg.mxu0
    %v2459 = vadd.f32 %v2301, %v2456
    %2460 = vrot.lane.b32.xlu0 %v2386, 64
    %v2461 = vpop.permute.xlu0 %2460
    %v2462 = vsel %vm173, %v2461, 0
    %2464 = vmatprep.subr.mxu0 0.0
    %2465 = vmatpush1.msra.mxu0 %v2378
    %2466 = vmatprep.subr.mxu0 0.0
    %2467 = vmatpush1.msra.mxu0 %v2379
    %2468 = vmatprep.subr.mxu0 0.0
    %2469 = vmatpush1.msra.mxu0 %v2380
    %2470 = vmatprep.subr.mxu0 0.0
    %2471 = vmatpush1.msra.mxu0 %v2381
    %2472 = vmatprep.subr.mxu0 0.0
    %2473 = vmatpush1.msra.mxu0 %v2382
    %2474 = vmatprep.subr.mxu0 0.0
    %2475 = vmatpush1.msra.mxu0 %v2383
    %2476 = vmatprep.subr.mxu0 0.0
    %2477 = vmatpush1.msra.mxu0 %v2384
    %2478 = vmatprep.subr.mxu0 0.0
    %2479 = vmatpush1.msra.mxu0 %v2385
    %2480 = vmatprep.subr.mxu0 0.0
    %2481 = vmatpush1.msra.mxu0 0.0
    %2482 = vmatprep.subr.mxu0 0.0
    %2483 = vmatpush1.msra.mxu0 0.0
    %2484 = vmatprep.subr.mxu0 0.0
    %2485 = vmatpush1.msra.mxu0 0.0
    %2486 = vmatprep.subr.mxu0 0.0
    %2487 = vmatpush1.msra.mxu0 0.0
    %2488 = vmatprep.subr.mxu0 0.0
    %2489 = vmatpush1.msra.mxu0 0.0
    %2490 = vmatprep.subr.mxu0 0.0
    %2491 = vmatpush1.msra.mxu0 0.0
    %2492 = vmatprep.subr.mxu0 0.0
    %2493 = vmatpush1.msra.mxu0 0.0
    %2494 = vmatprep.subr.mxu0 0.0
    %2495 = vmatpush1.msra.mxu0 0.0
    %2496 = vmatprep.subr.mxu0 0.0
    %2497 = vmatpush1.msra.mxu0 0.0
    %2498 = vmatprep.subr.mxu0 0.0
    %2499 = vmatpush1.msra.mxu0 0.0
    %2500 = vmatprep.subr.mxu0 0.0
    %2501 = vmatpush1.msra.mxu0 0.0
    %2502 = vmatprep.subr.mxu0 0.0
    %2503 = vmatpush1.msra.mxu0 0.0
    %2504 = vmatprep.subr.mxu0 0.0
    %2505 = vmatpush1.msra.mxu0 0.0
    %2506 = vmatprep.subr.mxu0 0.0
    %2507 = vmatpush1.msra.mxu0 0.0
    %2508 = vmatprep.subr.mxu0 0.0
    %2509 = vmatpush1.msra.mxu0 0.0
    %2510 = vmatprep.subr.mxu0 0.0
    %2511 = vmatpush1.msra.mxu0 0.0
    %2512 = vmatprep.subr.mxu0 0.0
    %2513 = vmatpush1.msra.mxu0 0.0
    %2514 = vmatprep.subr.mxu0 0.0
    %2515 = vmatpush1.msra.mxu0 0.0
    %2516 = vmatprep.subr.mxu0 0.0
    %2517 = vmatpush1.msra.mxu0 0.0
    %2518 = vmatprep.subr.mxu0 0.0
    %2519 = vmatpush1.msra.mxu0 0.0
    %2520 = vmatprep.subr.mxu0 0.0
    %2521 = vmatpush1.msra.mxu0 0.0
    %2522 = vmatprep.subr.mxu0 0.0
    %2523 = vmatpush1.msra.mxu0 0.0
    %2524 = vmatprep.subr.mxu0 0.0
    %2525 = vmatpush1.msra.mxu0 0.0
    %2526 = vmatprep.subr.mxu0 0.0
    %2527 = vmatpush1.msra.mxu0 0.0
    %2528 = vmatprep.mubr.f32.mxu0 0.0
    %2529 = vmatmul.mubr.f32.gmra.mrb[0].mxu0 %v2462
    %v2530 = vpop.f32.mrb[0].mxu0
    %v2531 = vadd.f32 0.0, %v2530
    %v2532 = vpop.f32.mrb[0].mxu0
    %2533 = vdwg.mxu0
    %v2534 = vadd.f32 %v2376, %v2531
    %s2535 = scalar_lea.vmem %s4, 960
    %v2536 = vld [vmem:[%s2535] sm:$0xff]
    %v2537 = vld [vmem:[%s2535 + $0x8] sm:$0xff]
    %v2538 = vld [vmem:[%s2535 + $0x10] sm:$0xff]
    %v2539 = vld [vmem:[%s2535 + $0x18] sm:$0xff]
    %v2540 = vld [vmem:[%s2535 + $0x20] sm:$0xff]
    %v2541 = vld [vmem:[%s2535 + $0x28] sm:$0xff]
    %v2542 = vld [vmem:[%s2535 + $0x30] sm:$0xff]
    %v2543 = vld [vmem:[%s2535 + $0x38] sm:$0xff]
    %v2544 = vrot.slane %v163, 7
    %v2545 = vsel %vm173, %v2544, 0
    %2547 = vmatprep.subr.mxu0 0.0
    %2548 = vmatpush1.msra.mxu0 %v2536
    %2549 = vmatprep.subr.mxu0 0.0
    %2550 = vmatpush1.msra.mxu0 %v2537
    %2551 = vmatprep.subr.mxu0 0.0
    %2552 = vmatpush1.msra.mxu0 %v2538
    %2553 = vmatprep.subr.mxu0 0.0
    %2554 = vmatpush1.msra.mxu0 %v2539
    %2555 = vmatprep.subr.mxu0 0.0
    %2556 = vmatpush1.msra.mxu0 %v2540
    %2557 = vmatprep.subr.mxu0 0.0
    %2558 = vmatpush1.msra.mxu0 %v2541
    %2559 = vmatprep.subr.mxu0 0.0
    %2560 = vmatpush1.msra.mxu0 %v2542
    %2561 = vmatprep.subr.mxu0 0.0
    %2562 = vmatpush1.msra.mxu0 %v2543
    %2563 = vmatprep.subr.mxu0 0.0
    %2564 = vmatpush1.msra.mxu0 0.0
    %2565 = vmatprep.subr.mxu0 0.0
    %2566 = vmatpush1.msra.mxu0 0.0
    %2567 = vmatprep.subr.mxu0 0.0
    %2568 = vmatpush1.msra.mxu0 0.0
    %2569 = vmatprep.subr.mxu0 0.0
    %2570 = vmatpush1.msra.mxu0 0.0
    %2571 = vmatprep.subr.mxu0 0.0
    %2572 = vmatpush1.msra.mxu0 0.0
    %2573 = vmatprep.subr.mxu0 0.0
    %2574 = vmatpush1.msra.mxu0 0.0
    %2575 = vmatprep.subr.mxu0 0.0
    %2576 = vmatpush1.msra.mxu0 0.0
    %2577 = vmatprep.subr.mxu0 0.0
    %2578 = vmatpush1.msra.mxu0 0.0
    %2579 = vmatprep.subr.mxu0 0.0
    %2580 = vmatpush1.msra.mxu0 0.0
    %2581 = vmatprep.subr.mxu0 0.0
    %2582 = vmatpush1.msra.mxu0 0.0
    %2583 = vmatprep.subr.mxu0 0.0
    %2584 = vmatpush1.msra.mxu0 0.0
    %2585 = vmatprep.subr.mxu0 0.0
    %2586 = vmatpush1.msra.mxu0 0.0
    %2587 = vmatprep.subr.mxu0 0.0
    %2588 = vmatpush1.msra.mxu0 0.0
    %2589 = vmatprep.subr.mxu0 0.0
    %2590 = vmatpush1.msra.mxu0 0.0
    %2591 = vmatprep.subr.mxu0 0.0
    %2592 = vmatpush1.msra.mxu0 0.0
    %2593 = vmatprep.subr.mxu0 0.0
    %2594 = vmatpush1.msra.mxu0 0.0
    %2595 = vmatprep.subr.mxu0 0.0
    %2596 = vmatpush1.msra.mxu0 0.0
    %2597 = vmatprep.subr.mxu0 0.0
    %2598 = vmatpush1.msra.mxu0 0.0
    %2599 = vmatprep.subr.mxu0 0.0
    %2600 = vmatpush1.msra.mxu0 0.0
    %2601 = vmatprep.subr.mxu0 0.0
    %2602 = vmatpush1.msra.mxu0 0.0
    %2603 = vmatprep.subr.mxu0 0.0
    %2604 = vmatpush1.msra.mxu0 0.0
    %2605 = vmatprep.subr.mxu0 0.0
    %2606 = vmatpush1.msra.mxu0 0.0
    %2607 = vmatprep.subr.mxu0 0.0
    %2608 = vmatpush1.msra.mxu0 0.0
    %2609 = vmatprep.subr.mxu0 0.0
    %2610 = vmatpush1.msra.mxu0 0.0
    %2611 = vmatprep.mubr.f32.mxu0 0.0
    %2612 = vmatmul.mubr.f32.gmra.mrb[0].mxu0 %v2545
    %v2613 = vpop.f32.mrb[0].mxu0
    %v2614 = vadd.f32 0.0, %v2613
    %v2615 = vpop.f32.mrb[0].mxu0
    %2616 = vdwg.mxu0
    %v2617 = vadd.f32 %v2459, %v2614
    %2618 = vrot.lane.b32.xlu0 %v2544, 64
    %v2619 = vpop.permute.xlu0 %2618
    %v2620 = vsel %vm173, %v2619, 0
    %2622 = vmatprep.subr.mxu0 0.0
    %2623 = vmatpush1.msra.mxu0 %v2536
    %2624 = vmatprep.subr.mxu0 0.0
    %2625 = vmatpush1.msra.mxu0 %v2537
    %2626 = vmatprep.subr.mxu0 0.0
    %2627 = vmatpush1.msra.mxu0 %v2538
    %2628 = vmatprep.subr.mxu0 0.0
    %2629 = vmatpush1.msra.mxu0 %v2539
    %2630 = vmatprep.subr.mxu0 0.0
    %2631 = vmatpush1.msra.mxu0 %v2540
    %2632 = vmatprep.subr.mxu0 0.0
    %2633 = vmatpush1.msra.mxu0 %v2541
    %2634 = vmatprep.subr.mxu0 0.0
    %2635 = vmatpush1.msra.mxu0 %v2542
    %2636 = vmatprep.subr.mxu0 0.0
    %2637 = vmatpush1.msra.mxu0 %v2543
    %2638 = vmatprep.subr.mxu0 0.0
    %2639 = vmatpush1.msra.mxu0 0.0
    %2640 = vmatprep.subr.mxu0 0.0
    %2641 = vmatpush1.msra.mxu0 0.0
    %2642 = vmatprep.subr.mxu0 0.0
    %2643 = vmatpush1.msra.mxu0 0.0
    %2644 = vmatprep.subr.mxu0 0.0
    %2645 = vmatpush1.msra.mxu0 0.0
    %2646 = vmatprep.subr.mxu0 0.0
    %2647 = vmatpush1.msra.mxu0 0.0
    %2648 = vmatprep.subr.mxu0 0.0
    %2649 = vmatpush1.msra.mxu0 0.0
    %2650 = vmatprep.subr.mxu0 0.0
    %2651 = vmatpush1.msra.mxu0 0.0
    %2652 = vmatprep.subr.mxu0 0.0
    %2653 = vmatpush1.msra.mxu0 0.0
    %2654 = vmatprep.subr.mxu0 0.0
    %2655 = vmatpush1.msra.mxu0 0.0
    %2656 = vmatprep.subr.mxu0 0.0
    %2657 = vmatpush1.msra.mxu0 0.0
    %2658 = vmatprep.subr.mxu0 0.0
    %2659 = vmatpush1.msra.mxu0 0.0
    %2660 = vmatprep.subr.mxu0 0.0
    %2661 = vmatpush1.msra.mxu0 0.0
    %2662 = vmatprep.subr.mxu0 0.0
    %2663 = vmatpush1.msra.mxu0 0.0
    %2664 = vmatprep.subr.mxu0 0.0
    %2665 = vmatpush1.msra.mxu0 0.0
    %2666 = vmatprep.subr.mxu0 0.0
    %2667 = vmatpush1.msra.mxu0 0.0
    %2668 = vmatprep.subr.mxu0 0.0
    %2669 = vmatpush1.msra.mxu0 0.0
    %2670 = vmatprep.subr.mxu0 0.0
    %2671 = vmatpush1.msra.mxu0 0.0
    %2672 = vmatprep.subr.mxu0 0.0
    %2673 = vmatpush1.msra.mxu0 0.0
    %2674 = vmatprep.subr.mxu0 0.0
    %2675 = vmatpush1.msra.mxu0 0.0
    %2676 = vmatprep.subr.mxu0 0.0
    %2677 = vmatpush1.msra.mxu0 0.0
    %2678 = vmatprep.subr.mxu0 0.0
    %2679 = vmatpush1.msra.mxu0 0.0
    %2680 = vmatprep.subr.mxu0 0.0
    %2681 = vmatpush1.msra.mxu0 0.0
    %2682 = vmatprep.subr.mxu0 0.0
    %2683 = vmatpush1.msra.mxu0 0.0
    %2684 = vmatprep.subr.mxu0 0.0
    %2685 = vmatpush1.msra.mxu0 0.0
    %2686 = vmatprep.mubr.f32.mxu0 0.0
    %2687 = vmatmul.mubr.f32.gmra.mrb[0].mxu0 %v2620
    %v2688 = vpop.f32.mrb[0].mxu0
    %v2689 = vadd.f32 0.0, %v2688
    %v2690 = vpop.f32.mrb[0].mxu0
    %2691 = vdwg.mxu0
    %v2692 = vadd.f32 %v2534, %v2689
    %v2694 = vlaneseq
    %v2695 = vshrl.u32 %v2694, 7
    %v2696 = vsub.s32 0, %v2695
    %v2697 = vrot.slane %v2692, %v2696
    %vm2699 = vcmask 1040384
    %v2700 = vsel %vm2699, %v2617, %v2697
    %vm2701 = vcmask 74752
    %2702 = vst.msk [vmem:[#allocation2] sm:$0x3] %vm2701, %v2700
    // Predicated region
    $region26: #{forward.1} parent=1 // pred_check
      _
    $region27: #{forward.1} parent=1 // pred_check_branch
      %2704 = sbr.rel (0) target = $region29
    $region28: #{forward.1} parent=1 // pred_region
      %s2706 = ssub.s32 32, 32
      %2707 = vsyncadd [#allocation3], %s2706
      %s2709 = sshll.u32 [#allocation2], 4
      %s2710 = int_to_ptr.vmem [resolvable:$true] %s2709
      %2712 = dma.vmem_to_hbm [thread:$0]  %s2710, 32, %s6, [#allocation3]
    $region29: #{forward.1} parent=1 // pred_fallthru
      _
    // Predicated region
    $region30: #{forward.1} parent=1 // pred_check
      _
    $region31: #{forward.1} parent=1 // pred_check_branch
      %2714 = sbr.rel (0) target = $region33
    $region32: #{forward.1} parent=1 // pred_region
      %2715 = dma.done [#allocation3], 32
    $region33: #{forward.1} parent=1 // pred_fallthru
      _
    %2716 = vsyncpa [#allocation3], 1

</llo_original>
